<compile_context>
chip_gen: v7x
topology: tpu7x:2x2x1
jax: 0.10.0
libtpu: 0.0.40
codegen_flags: <defaults>
</compile_context>

<pallas_src>
import jax
import jax.numpy as jnp
from jax.experimental import pallas as pl
from jax.experimental.pallas import tpu as pltpu

LANE = 128        # lane width / feature padding
MAX_TILE_N = 512  # node row / reduction tile (A block = 512 KiB bf16 per step)
MAX_TILE_E = 2048 # edges per edge-MLP grid step (lane-dense logits width)


def _round_up(v, m):
    return ((v + m - 1) // m) * m


def _pad2(a, rows, cols):
    return jnp.pad(a, ((0, rows - a.shape[0]), (0, cols - a.shape[1])))


def _compiler_params(dims):
    # 48 MiB: plenty of headroom for the ~2-3 MiB working sets here while staying
    # well inside v7x's 64 MiB physical VMEM.
    return pltpu.CompilerParams(
        dimension_semantics=dims,
        vmem_limit_bytes=48 * 1024 * 1024,
    )


# ----------------------------------------------------------------------------
# Kernels
# ----------------------------------------------------------------------------
def node_linear_kernel(x_ref, w_ref, o_ref):
    # bf16 x bf16 -> f32 accumulate -> bf16 store
    o_ref[...] = jnp.dot(
        x_ref[...], w_ref[...], preferred_element_type=jnp.float32
    ).astype(jnp.bfloat16)


def gcn_agg_next_kernel(a_ref, xw_ref, b_ref, wnext_ref, y_ref, acc_ref):
    # acc_i = sum_k A[i,k] @ XW[k]; finalize: relu(acc + b) @ W_next  (bf16 out)
    k = pl.program_id(1)

    @pl.when(k == 0)
    def _init():
        acc_ref[...] = jnp.zeros_like(acc_ref)

    acc_ref[...] += jnp.dot(
        a_ref[...], xw_ref[...], preferred_element_type=jnp.float32
    )

    @pl.when(k == pl.num_programs(1) - 1)
    def _finalize():
        h1 = jnp.maximum(acc_ref[...] + b_ref[...], 0.0).astype(jnp.bfloat16)
        y_ref[...] = jnp.dot(
            h1, wnext_ref[...], preferred_element_type=jnp.float32
        ).astype(jnp.bfloat16)


def gcn_agg_project_kernel(a_ref, xw_ref, b_ref, wsd_ref, proj_ref, acc_ref):
    # acc_i = sum_k A[i,k] @ Y1[k]; finalize: h2 = relu(acc + b);
    # emit the fused [src|dst] edge-MLP projection (h2 itself never leaves VMEM,
    # single full-width 256-lane MXU matmul + one wide bf16 store).
    k = pl.program_id(1)

    @pl.when(k == 0)
    def _init():
        acc_ref[...] = jnp.zeros_like(acc_ref)

    acc_ref[...] += jnp.dot(
        a_ref[...], xw_ref[...], preferred_element_type=jnp.float32
    )

    @pl.when(k == pl.num_programs(1) - 1)
    def _finalize():
        h2 = jnp.maximum(acc_ref[...] + b_ref[...], 0.0).astype(jnp.bfloat16)
        proj_ref[...] = jnp.dot(
            h2, wsd_ref[...], preferred_element_type=jnp.float32
        ).astype(jnp.bfloat16)


def edge_mlp_kernel(psrc_ref, pdst_ref, w2_ref, b2_ref, o_ref):
    # The edge-feature term and first-layer bias are already folded into psrc.
    # First layer = add the two projections (f32) + ReLU; second layer as a
    # lane-dense row: [1, Hp] contracted with [TILE_E, Hp] over Hp -> [1, TILE_E].
    pre = psrc_ref[...].astype(jnp.float32) + pdst_ref[...].astype(jnp.float32)
    hdn = jnp.maximum(pre, 0.0)                                   # [TILE_E, Hp]
    logits = jax.lax.dot_general(
        w2_ref[...], hdn,
        dimension_numbers=(((1,), (1,)), ((), ())),
        preferred_element_type=jnp.float32)                       # [1, TILE_E]
    o_ref[...] = logits + b2_ref[...]


# ----------------------------------------------------------------------------
# Pallas wrappers
# ----------------------------------------------------------------------------
def node_linear(x_bf16, w_bf16, tile_m):
    n_pad, fp = x_bf16.shape
    hp = w_bf16.shape[1]
    return pl.pallas_call(
        node_linear_kernel,
        out_shape=jax.ShapeDtypeStruct((n_pad, hp), jnp.bfloat16),
        grid=(n_pad // tile_m,),
        in_specs=[
            pl.BlockSpec((tile_m, fp), lambda i: (i, 0)),
            pl.BlockSpec((fp, hp), lambda i: (0, 0)),
        ],
        out_specs=pl.BlockSpec((tile_m, hp), lambda i: (i, 0)),
        compiler_params=_compiler_params(("parallel",)),
    )(x_bf16, w_bf16)


def gcn_layer_fused_next(a_bf16, xw_bf16, b_f32, w_next_bf16, tile_m, tile_k):
    n_pad = a_bf16.shape[0]
    hp = xw_bf16.shape[1]
    return pl.pallas_call(
        gcn_agg_next_kernel,
        out_shape=jax.ShapeDtypeStruct((n_pad, hp), jnp.bfloat16),
        grid=(n_pad // tile_m, n_pad // tile_k),
        in_specs=[
            pl.BlockSpec((tile_m, tile_k), lambda i, k: (i, k)),
            pl.BlockSpec((tile_k, hp), lambda i, k: (k, 0)),
            pl.BlockSpec((1, hp), lambda i, k: (0, 0)),
            pl.BlockSpec((hp, hp), lambda i, k: (0, 0)),
        ],
        out_specs=pl.BlockSpec((tile_m, hp), lambda i, k: (i, 0)),
        scratch_shapes=[pltpu.VMEM((tile_m, hp), jnp.float32)],
        compiler_params=_compiler_params(("parallel", "arbitrary")),
    )(a_bf16, xw_bf16, b_f32, w_next_bf16)


def gcn_layer_project(a_bf16, xw_bf16, b_f32, w_sd_bf16, tile_m, tile_k):
    n_pad = a_bf16.shape[0]
    hp = xw_bf16.shape[1]
    hp2 = w_sd_bf16.shape[1]           # 2*hp: fused [w_src | w_dst]
    return pl.pallas_call(
        gcn_agg_project_kernel,
        out_shape=jax.ShapeDtypeStruct((n_pad, hp2), jnp.bfloat16),
        grid=(n_pad // tile_m, n_pad // tile_k),
        in_specs=[
            pl.BlockSpec((tile_m, tile_k), lambda i, k: (i, k)),
            pl.BlockSpec((tile_k, hp), lambda i, k: (k, 0)),
            pl.BlockSpec((1, hp), lambda i, k: (0, 0)),
            pl.BlockSpec((hp, hp2), lambda i, k: (0, 0)),
        ],
        out_specs=pl.BlockSpec((tile_m, hp2), lambda i, k: (i, 0)),
        scratch_shapes=[pltpu.VMEM((tile_m, hp), jnp.float32)],
        compiler_params=_compiler_params(("parallel", "arbitrary")),
    )(a_bf16, xw_bf16, b_f32, w_sd_bf16)


def edge_mlp_lanedense(psrc_g, pdst_g, w2_row, b2, tile_e):
    e_pad, hp = psrc_g.shape
    n_tiles = e_pad // tile_e
    out = pl.pallas_call(
        edge_mlp_kernel,
        out_shape=jax.ShapeDtypeStruct((n_tiles, tile_e), jnp.float32),
        grid=(n_tiles,),
        in_specs=[
            pl.BlockSpec((tile_e, hp), lambda i: (i, 0)),
            pl.BlockSpec((tile_e, hp), lambda i: (i, 0)),
            pl.BlockSpec((1, hp), lambda i: (0, 0)),
            pl.BlockSpec((1, 1), lambda i: (0, 0)),
        ],
        out_specs=pl.BlockSpec((1, tile_e), lambda i: (i, 0)),
        compiler_params=_compiler_params(("parallel",)),
    )(psrc_g, pdst_g, w2_row, b2)
    return out.reshape(-1)


# ----------------------------------------------------------------------------
# GCN normalization (glue, plain JAX): matches torch_geometric gcn_norm defaults
# (add_remaining_self_loops: only add a self loop where none exists).
# Built directly at the padded size so the scale / cast fuse into one pass.
# ----------------------------------------------------------------------------
def build_normalized_adjacency_padded(edge_index, num_nodes, n_pad):
    src = edge_index[0]
    dst = edge_index[1]
    a = jnp.zeros((n_pad, n_pad), jnp.float32)
    a = a.at[dst, src].add(1.0)                        # message flows src -> dst
    diag = jnp.diagonal(a)
    is_real = jnp.arange(n_pad) < num_nodes
    # add_remaining_self_loops (real nodes only; padded rows/cols stay zero)
    a = a + jnp.diag(jnp.where((diag > 0.0) | (~is_real), 0.0, 1.0))
    deg = jnp.sum(a, axis=1)
    d_inv_sqrt = jnp.where(deg > 0, jax.lax.rsqrt(deg), 0.0)
    return (d_inv_sqrt[:, None] * a * d_inv_sqrt[None, :]).astype(jnp.bfloat16)


# ----------------------------------------------------------------------------
# GNNPolicy forward
# ----------------------------------------------------------------------------
def gnn_policy_forward(params, x, edge_index, edge_attr):
    n, f_in = x.shape
    e, fe = edge_attr.shape
    h = params["w_gcn1"].shape[1]

    tile_n = min(MAX_TILE_N, _round_up(n, 256))
    tile_e = min(MAX_TILE_E, _round_up(e, 512))
    n_pad = _round_up(n, tile_n)
    e_pad = _round_up(e, tile_e)
    hp = _round_up(h, LANE)
    fp = _round_up(f_in, LANE)

    # --- adjacency: scatter-add at padded size, normalize+cast in one pass ---
    a = build_normalized_adjacency_padded(edge_index, n, n_pad)

    # --- padded / cast parameters (bf16 for all N^2-path MXU operands) ---
    x_p = _pad2(x, n_pad, fp).astype(jnp.bfloat16)
    w_gcn1 = _pad2(params["w_gcn1"], fp, hp).astype(jnp.bfloat16)
    b_gcn1 = _pad2(params["b_gcn1"].reshape(1, -1), 1, hp)
    w_gcn2 = _pad2(params["w_gcn2"], hp, hp).astype(jnp.bfloat16)
    b_gcn2 = _pad2(params["b_gcn2"].reshape(1, -1), 1, hp)

    wm1 = params["w_mlp1"]                                   # [2h + fe, h]
    w_src = _pad2(wm1[:h], hp, hp)                           # acts on x[src]
    w_dst = _pad2(wm1[h:2 * h], hp, hp)                      # acts on x[dst]
    w_sd = jnp.concatenate([w_src, w_dst], axis=1).astype(jnp.bfloat16)  # [hp, 2hp]
    w_edge = wm1[2 * h:]                                     # [fe, h], plain-JAX matmul
    b_mlp1 = _pad2(params["b_mlp1"].reshape(1, -1), 1, hp)
    w_mlp2_row = _pad2(params["w_mlp2"].reshape(1, -1), 1, hp)
    b_mlp2 = params["b_mlp2"].reshape(1, 1)

    # --- node path: conv1 -> conv2, fused [src|dst] W1 projection in conv2 finalize ---
    xw1 = node_linear(x_p, w_gcn1, tile_n)
    y1 = gcn_layer_fused_next(a, xw1, b_gcn1, w_gcn2, tile_n, tile_n)
    proj = gcn_layer_project(a, y1, b_gcn2, w_sd, tile_n, tile_n)   # bf16 [n_pad, 2hp]
    p_src = proj[:, :hp]
    p_dst = proj[:, hp:]

    # --- edge path: gather endpoints (data-dependent indexing, plain JAX glue) ---
    # TODO(synk): fold the endpoint gather into the edge kernel by keeping the
    #             bf16 projections VMEM-resident + PrefetchScalarGridSpec indices.
    src_p = jnp.pad(edge_index[0], (0, e_pad - e))
    dst_p = jnp.pad(edge_index[1], (0, e_pad - e))

    # edge-feature term (tiny [E,fe]x[fe,h] matmul) + first-layer bias, folded
    # into the src stream so the edge kernel only streams two bf16 [E,hp] arrays.
    p_edge = _pad2(edge_attr @ w_edge, e_pad, hp)            # f32 [e_pad, hp]
    psrc_g = (jnp.take(p_src, src_p, axis=0).astype(jnp.float32)
              + p_edge + b_mlp1).astype(jnp.bfloat16)
    pdst_g = jnp.take(p_dst, dst_p, axis=0)                  # bf16 [e_pad, hp]

    logits = edge_mlp_lanedense(psrc_g, pdst_g, w_mlp2_row, b_mlp2, tile_e)
    return logits[:e]


# ----------------------------------------------------------------------------
# Deterministic parameter initialization (synthetic; matches __init__ shapes)
# ----------------------------------------------------------------------------
def init_params(key, in_channels, edge_feat_dim, hidden_dim):
    ks = jax.random.split(key, 8)

    def glorot(k, shape):
        fan_in, fan_out = shape
        scale = jnp.sqrt(6.0 / (fan_in + fan_out))
        return jax.random.uniform(k, shape, jnp.float32, -scale, scale)

    return {
        # GCNConv(in_channels, hidden_dim): weight [in, hidden], bias [hidden]
        "w_gcn1": glorot(ks[0], (in_channels, hidden_dim)),
        "b_gcn1": jax.random.normal(ks[1], (hidden_dim,), jnp.float32) * 0.01,
        # GCNConv(hidden_dim, hidden_dim)
        "w_gcn2": glorot(ks[2], (hidden_dim, hidden_dim)),
        "b_gcn2": jax.random.normal(ks[3], (hidden_dim,), jnp.float32) * 0.01,
        # edge_mlp: Linear(2*hidden + edge_feat, hidden), Linear(hidden, 1)
        "w_mlp1": glorot(ks[4], (2 * hidden_dim + edge_feat_dim, hidden_dim)),
        "b_mlp1": jax.random.normal(ks[5], (hidden_dim,), jnp.float32) * 0.01,
        "w_mlp2": glorot(ks[6], (hidden_dim, 1)),
        "b_mlp2": jax.random.normal(ks[7], (1,), jnp.float32) * 0.01,
    }


# TODO(synk): GATConv (use_attention=True) branch not implemented; default GCN path only.
# TODO(synk): for large sparse graphs, replace the dense A_norm aggregation with a
#             scalar-prefetch gather/segment-sum kernel (dense A is O(N^2)); optional
#             int8 (v5e/v6e) / fp8 (v7x) quantization of A not applied.

if __name__ == "__main__":
    IN_CHANNELS = 4
    EDGE_FEAT_DIM = 4
    HIDDEN_DIM = 64
    NUM_NODES = 16
    NUM_EDGES = 48

    key = jax.random.PRNGKey(0)
    k_param, k_x, k_src, k_dst, k_ea = jax.random.split(key, 5)

    params = init_params(k_param, IN_CHANNELS, EDGE_FEAT_DIM, HIDDEN_DIM)

    x = jax.random.normal(k_x, (NUM_NODES, IN_CHANNELS), jnp.float32)
    src = jax.random.randint(k_src, (NUM_EDGES,), 0, NUM_NODES, jnp.int32)
    dst = jax.random.randint(k_dst, (NUM_EDGES,), 0, NUM_NODES, jnp.int32)
    edge_index = jnp.stack([src, dst], axis=0)  # [2, E]
    edge_attr = jax.random.normal(k_ea, (NUM_EDGES, EDGE_FEAT_DIM), jnp.float32)

    logits = jax.jit(gnn_policy_forward)(params, x, edge_index, edge_attr)
    jax.block_until_ready(logits)

    assert logits.shape == (NUM_EDGES,), logits.shape
    assert logits.dtype == jnp.float32
    print("KERNEL_OK")
</pallas_src>

<mosaic_0001>
module attributes {stable_mosaic.version = 11 : i64} {
  func.func private @main(%arg0: i32) attributes {dimension_semantics = [#tpu.dimension_semantics<core_parallel>], iteration_bounds = array<i64: 2>, tpu.core_type = #tpu.core_type<sc_scalar_subcore>, window_params = []} {
    return
  }
}

module attributes {stable_mosaic.version = 11 : i64} {
  func.func private @main(%arg0: i32) attributes {dimension_semantics = [#tpu.dimension_semantics<core_parallel>], iteration_bounds = array<i64: 2>, tpu.core_type = #tpu.core_type<sc_scalar_subcore>, window_params = []} {
    return
  }
}

module attributes {stable_mosaic.version = 11 : i64} {
  func.func @gcn_agg_next_kernel(%arg0: i32, %arg1: i32, %arg2: memref<256x256xbf16, #tpu.memory_space<vmem>>, %arg3: memref<256x128xbf16, #tpu.memory_space<vmem>>, %arg4: memref<1x128xf32, #tpu.memory_space<vmem>>, %arg5: memref<128x128xbf16, #tpu.memory_space<vmem>>, %arg6: memref<256x128xbf16, #tpu.memory_space<vmem>>, %arg7: memref<256x128xf32, #tpu.memory_space<vmem>>) attributes {dimension_semantics = [#tpu.dimension_semantics<parallel>, #tpu.dimension_semantics<arbitrary>], iteration_bounds = array<i64: 1, 1>, scalar_prefetch = 0 : i64, scratch_operands = 1 : i64, tpu.core_type = #tpu.core_type<tc>, window_params = [{transform_indices = @transform_0, window_bounds = array<i64: 256, 256>}, {transform_indices = @transform_1, window_bounds = array<i64: 256, 128>}, {pipeline_mode = #tpu.pipeline_mode<synchronous>, transform_indices = @transform_2, window_bounds = array<i64: 1, 128>}, {pipeline_mode = #tpu.pipeline_mode<synchronous>, transform_indices = @transform_3, window_bounds = array<i64: 128, 128>}, {transform_indices = @transform_4, window_bounds = array<i64: 256, 128>}]} {
    %c0_i32 = arith.constant 0 : i32
    %0 = arith.cmpi eq, %arg1, %c0_i32 : i32
    %1 = arith.extui %0 : i1 to i32
    %c0_i32_0 = arith.constant 0 : i32
    %2 = arith.cmpi ne, %1, %c0_i32_0 : i32
    scf.if %2 {
      %cst_10 = arith.constant 0.000000e+00 : f32
      %12 = vector.broadcast %cst_10 : f32 to vector<256x128xf32>
      %c0_11 = arith.constant 0 : index
      %c0_12 = arith.constant 0 : index
      %13 = vector.load %arg7[%c0_11, %c0_12] : memref<256x128xf32, #tpu.memory_space<vmem>>, vector<256x128xf32>
      tpu.vector_store %arg7[%c0_11, %c0_12], %12 {strides = array<i32>} : memref<256x128xf32, #tpu.memory_space<vmem>>, vector<256x128xf32>,
    } else {
    }
    %c0 = arith.constant 0 : index
    %c0_1 = arith.constant 0 : index
    %3 = vector.load %arg7[%c0, %c0_1] : memref<256x128xf32, #tpu.memory_space<vmem>>, vector<256x128xf32>
    %c0_2 = arith.constant 0 : index
    %c0_3 = arith.constant 0 : index
    %4 = vector.load %arg2[%c0_2, %c0_3] : memref<256x256xbf16, #tpu.memory_space<vmem>>, vector<256x256xbf16>
    %c0_4 = arith.constant 0 : index
    %c0_5 = arith.constant 0 : index
    %5 = vector.load %arg3[%c0_4, %c0_5] : memref<256x128xbf16, #tpu.memory_space<vmem>>, vector<256x128xbf16>
    %cst = arith.constant dense<0.000000e+00> : vector<256x128xf32>
    %6 = tpu.matmul %4, %5, %cst {dimension_numbers = #tpu.dot_dimension_numbers<[1], [0], [0], [1], [0, 0, 1, 1], [], []>} : vector<256x256xbf16>, vector<256x128xbf16>, vector<256x128xf32> -> vector<256x128xf32>
    %7 = arith.addf %3, %6 : vector<256x128xf32>
    %c0_6 = arith.constant 0 : index
    %c0_7 = arith.constant 0 : index
    %8 = vector.load %arg7[%c0_6, %c0_7] : memref<256x128xf32, #tpu.memory_space<vmem>>, vector<256x128xf32>
    tpu.vector_store %arg7[%c0_6, %c0_7], %7 {strides = array<i32>} : memref<256x128xf32, #tpu.memory_space<vmem>>, vector<256x128xf32>,
    %c0_i32_8 = arith.constant 0 : i32
    %9 = arith.cmpi eq, %arg1, %c0_i32_8 : i32
    %10 = arith.extui %9 : i1 to i32
    %c0_i32_9 = arith.constant 0 : i32
    %11 = arith.cmpi ne, %10, %c0_i32_9 : i32
    scf.if %11 {
      %c0_10 = arith.constant 0 : index
      %c0_11 = arith.constant 0 : index
      %12 = vector.load %arg7[%c0_10, %c0_11] : memref<256x128xf32, #tpu.memory_space<vmem>>, vector<256x128xf32>
      %c0_12 = arith.constant 0 : index
      %c0_13 = arith.constant 0 : index
      %13 = vector.load %arg4[%c0_12, %c0_13] : memref<1x128xf32, #tpu.memory_space<vmem>>, vector<1x128xf32>
      %14 = vector.broadcast %13 : vector<1x128xf32> to vector<256x128xf32>
      %15 = arith.addf %12, %14 : vector<256x128xf32>
      %cst_14 = arith.constant 0.000000e+00 : f32
      %16 = vector.broadcast %cst_14 : f32 to vector<256x128xf32>
      %17 = arith.maximumf %15, %16 : vector<256x128xf32>
      %18 = arith.truncf %17 : vector<256x128xf32> to vector<256x128xbf16>
      %c0_15 = arith.constant 0 : index
      %c0_16 = arith.constant 0 : index
      %19 = vector.load %arg5[%c0_15, %c0_16] : memref<128x128xbf16, #tpu.memory_space<vmem>>, vector<128x128xbf16>
      %cst_17 = arith.constant dense<0.000000e+00> : vector<256x128xf32>
      %20 = tpu.matmul %18, %19, %cst_17 {dimension_numbers = #tpu.dot_dimension_numbers<[1], [0], [0], [1], [0, 0, 1, 1], [], []>} : vector<256x128xbf16>, vector<128x128xbf16>, vector<256x128xf32> -> vector<256x128xf32>
      %21 = arith.truncf %20 : vector<256x128xf32> to vector<256x128xbf16>
      %c0_18 = arith.constant 0 : index
      %c0_19 = arith.constant 0 : index
      %22 = vector.load %arg6[%c0_18, %c0_19] : memref<256x128xbf16, #tpu.memory_space<vmem>>, vector<256x128xbf16>
      tpu.vector_store %arg6[%c0_18, %c0_19], %21 {strides = array<i32>} : memref<256x128xbf16, #tpu.memory_space<vmem>>, vector<256x128xbf16>,
    } else {
    }
    return
  }
  func.func @transform_0(%arg0: i32, %arg1: i32) -> (i32, i32) {
    %c0_i32 = arith.constant 0 : i32
    return %arg0, %arg1 : i32, i32
  }
  func.func @transform_1(%arg0: i32, %arg1: i32) -> (i32, i32) {
    %c0_i32 = arith.constant 0 : i32
    %c0_i32_0 = arith.constant 0 : i32
    return %arg1, %c0_i32 : i32, i32
  }
  func.func @transform_2(%arg0: i32, %arg1: i32) -> (i32, i32) {
    %c0_i32 = arith.constant 0 : i32
    %c0_i32_0 = arith.constant 0 : i32
    %c0_i32_1 = arith.constant 0 : i32
    return %c0_i32, %c0_i32_0 : i32, i32
  }
  func.func @transform_3(%arg0: i32, %arg1: i32) -> (i32, i32) {
    %c0_i32 = arith.constant 0 : i32
    %c0_i32_0 = arith.constant 0 : i32
    %c0_i32_1 = arith.constant 0 : i32
    return %c0_i32, %c0_i32_0 : i32, i32
  }
  func.func @transform_4(%arg0: i32, %arg1: i32) -> (i32, i32) {
    %c0_i32 = arith.constant 0 : i32
    %c0_i32_0 = arith.constant 0 : i32
    return %arg0, %c0_i32 : i32, i32
  }
}

module attributes {stable_mosaic.version = 11 : i64} {
  func.func @node_linear_kernel(%arg0: i32, %arg1: memref<256x128xbf16, #tpu.memory_space<vmem>>, %arg2: memref<128x128xbf16, #tpu.memory_space<vmem>>, %arg3: memref<256x128xbf16, #tpu.memory_space<vmem>>) attributes {dimension_semantics = [#tpu.dimension_semantics<parallel>], iteration_bounds = array<i64: 1>, scalar_prefetch = 0 : i64, scratch_operands = 0 : i64, tpu.core_type = #tpu.core_type<tc>, window_params = [{transform_indices = @transform_0, window_bounds = array<i64: 256, 128>}, {pipeline_mode = #tpu.pipeline_mode<synchronous>, transform_indices = @transform_1, window_bounds = array<i64: 128, 128>}, {transform_indices = @transform_2, window_bounds = array<i64: 256, 128>}]} {
    %c0 = arith.constant 0 : index
    %c0_0 = arith.constant 0 : index
    %0 = vector.load %arg1[%c0, %c0_0] : memref<256x128xbf16, #tpu.memory_space<vmem>>, vector<256x128xbf16>
    %c0_1 = arith.constant 0 : index
    %c0_2 = arith.constant 0 : index
    %1 = vector.load %arg2[%c0_1, %c0_2] : memref<128x128xbf16, #tpu.memory_space<vmem>>, vector<128x128xbf16>
    %cst = arith.constant dense<0.000000e+00> : vector<256x128xf32>
    %2 = tpu.matmul %0, %1, %cst {dimension_numbers = #tpu.dot_dimension_numbers<[1], [0], [0], [1], [0, 0, 1, 1], [], []>} : vector<256x128xbf16>, vector<128x128xbf16>, vector<256x128xf32> -> vector<256x128xf32>
    %3 = arith.truncf %2 : vector<256x128xf32> to vector<256x128xbf16>
    %c0_3 = arith.constant 0 : index
    %c0_4 = arith.constant 0 : index
    %4 = vector.load %arg3[%c0_3, %c0_4] : memref<256x128xbf16, #tpu.memory_space<vmem>>, vector<256x128xbf16>
    tpu.vector_store %arg3[%c0_3, %c0_4], %3 {strides = array<i32>} : memref<256x128xbf16, #tpu.memory_space<vmem>>, vector<256x128xbf16>,
    return
  }
  func.func @transform_0(%arg0: i32) -> (i32, i32) {
    %c0_i32 = arith.constant 0 : i32
    %c0_i32_0 = arith.constant 0 : i32
    return %arg0, %c0_i32 : i32, i32
  }
  func.func @transform_1(%arg0: i32) -> (i32, i32) {
    %c0_i32 = arith.constant 0 : i32
    %c0_i32_0 = arith.constant 0 : i32
    %c0_i32_1 = arith.constant 0 : i32
    return %c0_i32, %c0_i32_0 : i32, i32
  }
  func.func @transform_2(%arg0: i32) -> (i32, i32) {
    %c0_i32 = arith.constant 0 : i32
    %c0_i32_0 = arith.constant 0 : i32
    return %arg0, %c0_i32 : i32, i32
  }
}

module attributes {stable_mosaic.version = 11 : i64} {
  func.func @gcn_agg_project_kernel(%arg0: i32, %arg1: i32, %arg2: memref<256x256xbf16, #tpu.memory_space<vmem>>, %arg3: memref<256x128xbf16, #tpu.memory_space<vmem>>, %arg4: memref<1x128xf32, #tpu.memory_space<vmem>>, %arg5: memref<128x256xbf16, #tpu.memory_space<vmem>>, %arg6: memref<256x256xbf16, #tpu.memory_space<vmem>>, %arg7: memref<256x128xf32, #tpu.memory_space<vmem>>) attributes {dimension_semantics = [#tpu.dimension_semantics<parallel>, #tpu.dimension_semantics<arbitrary>], iteration_bounds = array<i64: 1, 1>, scalar_prefetch = 0 : i64, scratch_operands = 1 : i64, tpu.core_type = #tpu.core_type<tc>, window_params = [{transform_indices = @transform_0, window_bounds = array<i64: 256, 256>}, {transform_indices = @transform_1, window_bounds = array<i64: 256, 128>}, {pipeline_mode = #tpu.pipeline_mode<synchronous>, transform_indices = @transform_2, window_bounds = array<i64: 1, 128>}, {pipeline_mode = #tpu.pipeline_mode<synchronous>, transform_indices = @transform_3, window_bounds = array<i64: 128, 256>}, {transform_indices = @transform_4, window_bounds = array<i64: 256, 256>}]} {
    %c0_i32 = arith.constant 0 : i32
    %0 = arith.cmpi eq, %arg1, %c0_i32 : i32
    %1 = arith.extui %0 : i1 to i32
    %c0_i32_0 = arith.constant 0 : i32
    %2 = arith.cmpi ne, %1, %c0_i32_0 : i32
    scf.if %2 {
      %cst_10 = arith.constant 0.000000e+00 : f32
      %12 = vector.broadcast %cst_10 : f32 to vector<256x128xf32>
      %c0_11 = arith.constant 0 : index
      %c0_12 = arith.constant 0 : index
      %13 = vector.load %arg7[%c0_11, %c0_12] : memref<256x128xf32, #tpu.memory_space<vmem>>, vector<256x128xf32>
      tpu.vector_store %arg7[%c0_11, %c0_12], %12 {strides = array<i32>} : memref<256x128xf32, #tpu.memory_space<vmem>>, vector<256x128xf32>,
    } else {
    }
    %c0 = arith.constant 0 : index
    %c0_1 = arith.constant 0 : index
    %3 = vector.load %arg7[%c0, %c0_1] : memref<256x128xf32, #tpu.memory_space<vmem>>, vector<256x128xf32>
    %c0_2 = arith.constant 0 : index
    %c0_3 = arith.constant 0 : index
    %4 = vector.load %arg2[%c0_2, %c0_3] : memref<256x256xbf16, #tpu.memory_space<vmem>>, vector<256x256xbf16>
    %c0_4 = arith.constant 0 : index
    %c0_5 = arith.constant 0 : index
    %5 = vector.load %arg3[%c0_4, %c0_5] : memref<256x128xbf16, #tpu.memory_space<vmem>>, vector<256x128xbf16>
    %cst = arith.constant dense<0.000000e+00> : vector<256x128xf32>
    %6 = tpu.matmul %4, %5, %cst {dimension_numbers = #tpu.dot_dimension_numbers<[1], [0], [0], [1], [0, 0, 1, 1], [], []>} : vector<256x256xbf16>, vector<256x128xbf16>, vector<256x128xf32> -> vector<256x128xf32>
    %7 = arith.addf %3, %6 : vector<256x128xf32>
    %c0_6 = arith.constant 0 : index
    %c0_7 = arith.constant 0 : index
    %8 = vector.load %arg7[%c0_6, %c0_7] : memref<256x128xf32, #tpu.memory_space<vmem>>, vector<256x128xf32>
    tpu.vector_store %arg7[%c0_6, %c0_7], %7 {strides = array<i32>} : memref<256x128xf32, #tpu.memory_space<vmem>>, vector<256x128xf32>,
    %c0_i32_8 = arith.constant 0 : i32
    %9 = arith.cmpi eq, %arg1, %c0_i32_8 : i32
    %10 = arith.extui %9 : i1 to i32
    %c0_i32_9 = arith.constant 0 : i32
    %11 = arith.cmpi ne, %10, %c0_i32_9 : i32
    scf.if %11 {
      %c0_10 = arith.constant 0 : index
      %c0_11 = arith.constant 0 : index
      %12 = vector.load %arg7[%c0_10, %c0_11] : memref<256x128xf32, #tpu.memory_space<vmem>>, vector<256x128xf32>
      %c0_12 = arith.constant 0 : index
      %c0_13 = arith.constant 0 : index
      %13 = vector.load %arg4[%c0_12, %c0_13] : memref<1x128xf32, #tpu.memory_space<vmem>>, vector<1x128xf32>
      %14 = vector.broadcast %13 : vector<1x128xf32> to vector<256x128xf32>
      %15 = arith.addf %12, %14 : vector<256x128xf32>
      %cst_14 = arith.constant 0.000000e+00 : f32
      %16 = vector.broadcast %cst_14 : f32 to vector<256x128xf32>
      %17 = arith.maximumf %15, %16 : vector<256x128xf32>
      %18 = arith.truncf %17 : vector<256x128xf32> to vector<256x128xbf16>
      %c0_15 = arith.constant 0 : index
      %c0_16 = arith.constant 0 : index
      %19 = vector.load %arg5[%c0_15, %c0_16] : memref<128x256xbf16, #tpu.memory_space<vmem>>, vector<128x256xbf16>
      %cst_17 = arith.constant dense<0.000000e+00> : vector<256x256xf32>
      %20 = tpu.matmul %18, %19, %cst_17 {dimension_numbers = #tpu.dot_dimension_numbers<[1], [0], [0], [1], [0, 0, 1, 1], [], []>} : vector<256x128xbf16>, vector<128x256xbf16>, vector<256x256xf32> -> vector<256x256xf32>
      %21 = arith.truncf %20 : vector<256x256xf32> to vector<256x256xbf16>
      %c0_18 = arith.constant 0 : index
      %c0_19 = arith.constant 0 : index
      %22 = vector.load %arg6[%c0_18, %c0_19] : memref<256x256xbf16, #tpu.memory_space<vmem>>, vector<256x256xbf16>
      tpu.vector_store %arg6[%c0_18, %c0_19], %21 {strides = array<i32>} : memref<256x256xbf16, #tpu.memory_space<vmem>>, vector<256x256xbf16>,
    } else {
    }
    return
  }
  func.func @transform_0(%arg0: i32, %arg1: i32) -> (i32, i32) {
    %c0_i32 = arith.constant 0 : i32
    return %arg0, %arg1 : i32, i32
  }
  func.func @transform_1(%arg0: i32, %arg1: i32) -> (i32, i32) {
    %c0_i32 = arith.constant 0 : i32
    %c0_i32_0 = arith.constant 0 : i32
    return %arg1, %c0_i32 : i32, i32
  }
  func.func @transform_2(%arg0: i32, %arg1: i32) -> (i32, i32) {
    %c0_i32 = arith.constant 0 : i32
    %c0_i32_0 = arith.constant 0 : i32
    %c0_i32_1 = arith.constant 0 : i32
    return %c0_i32, %c0_i32_0 : i32, i32
  }
  func.func @transform_3(%arg0: i32, %arg1: i32) -> (i32, i32) {
    %c0_i32 = arith.constant 0 : i32
    %c0_i32_0 = arith.constant 0 : i32
    %c0_i32_1 = arith.constant 0 : i32
    return %c0_i32, %c0_i32_0 : i32, i32
  }
  func.func @transform_4(%arg0: i32, %arg1: i32) -> (i32, i32) {
    %c0_i32 = arith.constant 0 : i32
    %c0_i32_0 = arith.constant 0 : i32
    return %arg0, %c0_i32 : i32, i32
  }
}

module attributes {stable_mosaic.version = 11 : i64} {
  func.func @edge_mlp_kernel(%arg0: i32, %arg1: memref<512x128xbf16, #tpu.memory_space<vmem>>, %arg2: memref<512x128xbf16, #tpu.memory_space<vmem>>, %arg3: memref<1x128xf32, #tpu.memory_space<vmem>>, %arg4: memref<1x1xf32, #tpu.memory_space<vmem>>, %arg5: memref<1x512xf32, #tpu.memory_space<vmem>>) attributes {dimension_semantics = [#tpu.dimension_semantics<parallel>], iteration_bounds = array<i64: 1>, scalar_prefetch = 0 : i64, scratch_operands = 0 : i64, tpu.core_type = #tpu.core_type<tc>, window_params = [{transform_indices = @transform_0, window_bounds = array<i64: 512, 128>}, {transform_indices = @transform_1, window_bounds = array<i64: 512, 128>}, {pipeline_mode = #tpu.pipeline_mode<synchronous>, transform_indices = @transform_2, window_bounds = array<i64: 1, 128>}, {pipeline_mode = #tpu.pipeline_mode<synchronous>, transform_indices = @transform_3, window_bounds = array<i64: 1, 1>}, {transform_indices = @transform_4, window_bounds = array<i64: 1, 512>}]} {
    %c0 = arith.constant 0 : index
    %c0_0 = arith.constant 0 : index
    %0 = vector.load %arg1[%c0, %c0_0] : memref<512x128xbf16, #tpu.memory_space<vmem>>, vector<512x128xbf16>
    %1 = arith.extf %0 : vector<512x128xbf16> to vector<512x128xf32>
    %c0_1 = arith.constant 0 : index
    %c0_2 = arith.constant 0 : index
    %2 = vector.load %arg2[%c0_1, %c0_2] : memref<512x128xbf16, #tpu.memory_space<vmem>>, vector<512x128xbf16>
    %3 = arith.extf %2 : vector<512x128xbf16> to vector<512x128xf32>
    %4 = arith.addf %1, %3 : vector<512x128xf32>
    %cst = arith.constant 0.000000e+00 : f32
    %5 = vector.broadcast %cst : f32 to vector<512x128xf32>
    %6 = arith.maximumf %4, %5 : vector<512x128xf32>
    %c0_3 = arith.constant 0 : index
    %c0_4 = arith.constant 0 : index
    %7 = vector.load %arg3[%c0_3, %c0_4] : memref<1x128xf32, #tpu.memory_space<vmem>>, vector<1x128xf32>
    %cst_5 = arith.constant dense<0.000000e+00> : vector<1x512xf32>
    %8 = tpu.matmul %7, %6, %cst_5 {dimension_numbers = #tpu.dot_dimension_numbers<[1], [1], [0], [0], [0, 0, 1, 0], [], []>} : vector<1x128xf32>, vector<512x128xf32>, vector<1x512xf32> -> vector<1x512xf32>
    %c0_6 = arith.constant 0 : index
    %c0_7 = arith.constant 0 : index
    %9 = vector.load %arg4[%c0_6, %c0_7] : memref<1x1xf32, #tpu.memory_space<vmem>>, vector<1x1xf32>
    %10 = vector.broadcast %9 : vector<1x1xf32> to vector<1x512xf32>
    %11 = arith.addf %8, %10 : vector<1x512xf32>
    %c0_8 = arith.constant 0 : index
    %c0_9 = arith.constant 0 : index
    %12 = vector.load %arg5[%c0_8, %c0_9] : memref<1x512xf32, #tpu.memory_space<vmem>>, vector<1x512xf32>
    tpu.vector_store %arg5[%c0_8, %c0_9], %11 {strides = array<i32>} : memref<1x512xf32, #tpu.memory_space<vmem>>, vector<1x512xf32>,
    return
  }
  func.func @transform_0(%arg0: i32) -> (i32, i32) {
    %c0_i32 = arith.constant 0 : i32
    %c0_i32_0 = arith.constant 0 : i32
    return %arg0, %c0_i32 : i32, i32
  }
  func.func @transform_1(%arg0: i32) -> (i32, i32) {
    %c0_i32 = arith.constant 0 : i32
    %c0_i32_0 = arith.constant 0 : i32
    return %arg0, %c0_i32 : i32, i32
  }
  func.func @transform_2(%arg0: i32) -> (i32, i32) {
    %c0_i32 = arith.constant 0 : i32
    %c0_i32_0 = arith.constant 0 : i32
    %c0_i32_1 = arith.constant 0 : i32
    return %c0_i32, %c0_i32_0 : i32, i32
  }
  func.func @transform_3(%arg0: i32) -> (i32, i32) {
    %c0_i32 = arith.constant 0 : i32
    %c0_i32_0 = arith.constant 0 : i32
    %c0_i32_1 = arith.constant 0 : i32
    return %c0_i32, %c0_i32_0 : i32, i32
  }
  func.func @transform_4(%arg0: i32) -> (i32, i32) {
    %c0_i32 = arith.constant 0 : i32
    %c0_i32_0 = arith.constant 0 : i32
    return %arg0, %c0_i32 : i32, i32
  }
}

</mosaic_0001>

<llo_original>
// kernel: gnn_policy_forward.4
$region0: #{gnn_policy_forward.4}
  #allocation0 [shape = 'u32[]', space=smem, size = 0x4, offset = 0x4, fixed_abs, tag = 'smem constant byte address 0x4 - core index']
  #allocation1 [shape = 'u32[144,128]{1,0:T(1,128)}', space=vmem, size = 0x12000, scoped, tag = 'internal scratch']
  %s0 = inlined_call_operand.vmem [shape: bf16[256,128], index: 0, kind: input, shape index: {}]
  %s1 = inlined_call_operand.vmem [shape: bf16[128,128], index: 1, kind: input, shape index: {}]
  %s2 = inlined_call_operand.vmem [shape: bf16[256,128], index: 2, kind: output, shape index: {}]
  %s3 = sld [smem:[#allocation0]]
  $region18: #{gnn_policy_forward.4} parent=0
    _
  %s5 = ssub.s32 1, %s3
  %s6 = scalar_select 0, %s5, %s3
  // Predicated region
  $region2: #{gnn_policy_forward.4} parent=0 // pred_check
    _
  $region3: #{gnn_policy_forward.4} parent=0 // pred_check_branch
    %8 = sbr.rel (0) target = $region5
  $region4: #{gnn_policy_forward.4} parent=0 // pred_region
    _
  $region5: #{gnn_policy_forward.4} parent=0 // pred_fallthru
    _
  // Predicated region
  $region6: #{gnn_policy_forward.4} parent=0 // pred_check
    _
  $region7: #{gnn_policy_forward.4} parent=0 // pred_check_branch
    %10 = sbr.rel (0) target = $region9
  $region8: #{gnn_policy_forward.4} parent=0 // pred_region
    _
  $region9: #{gnn_policy_forward.4} parent=0 // pred_fallthru
    _
  %v12 = vld [vmem:[%s0] sm:$0xf]
  %v13 = vld [vmem:[%s0 + $0x4] sm:$0xf]
  %v14 = vld [vmem:[%s0 + $0x8] sm:$0xf]
  %v15 = vld [vmem:[%s0 + $0xc] sm:$0xf]
  %v16 = vld [vmem:[%s0 + $0x10] sm:$0xf]
  %v17 = vld [vmem:[%s0 + $0x14] sm:$0xf]
  %v18 = vld [vmem:[%s0 + $0x18] sm:$0xf]
  %v19 = vld [vmem:[%s0 + $0x1c] sm:$0xf]
  %v20 = vld [vmem:[%s0 + $0x20] sm:$0xf]
  %v21 = vld [vmem:[%s0 + $0x24] sm:$0xf]
  %v22 = vld [vmem:[%s0 + $0x28] sm:$0xf]
  %v23 = vld [vmem:[%s0 + $0x2c] sm:$0xf]
  %v24 = vld [vmem:[%s0 + $0x30] sm:$0xf]
  %v25 = vld [vmem:[%s0 + $0x34] sm:$0xf]
  %v26 = vld [vmem:[%s0 + $0x38] sm:$0xf]
  %v27 = vld [vmem:[%s0 + $0x3c] sm:$0xf]
  %v28 = vld [vmem:[%s0 + $0x40] sm:$0xf]
  %v29 = vld [vmem:[%s0 + $0x44] sm:$0xf]
  %v30 = vld [vmem:[%s0 + $0x48] sm:$0xf]
  %v31 = vld [vmem:[%s0 + $0x4c] sm:$0xf]
  %v32 = vld [vmem:[%s0 + $0x50] sm:$0xf]
  %v33 = vld [vmem:[%s0 + $0x54] sm:$0xf]
  %v34 = vld [vmem:[%s0 + $0x58] sm:$0xf]
  %v35 = vld [vmem:[%s0 + $0x5c] sm:$0xf]
  %v36 = vld [vmem:[%s0 + $0x60] sm:$0xf]
  %v37 = vld [vmem:[%s0 + $0x64] sm:$0xf]
  %v38 = vld [vmem:[%s0 + $0x68] sm:$0xf]
  %v39 = vld [vmem:[%s0 + $0x6c] sm:$0xf]
  %v40 = vld [vmem:[%s0 + $0x70] sm:$0xf]
  %v41 = vld [vmem:[%s0 + $0x74] sm:$0xf]
  %v42 = vld [vmem:[%s0 + $0x78] sm:$0xf]
  %v43 = vld [vmem:[%s0 + $0x7c] sm:$0xf]
  %v44 = vld [vmem:[%s1] sm:$0xf]
  %v45 = vld [vmem:[%s1 + $0x4] sm:$0xf]
  %v46 = vld [vmem:[%s1 + $0x8] sm:$0xf]
  %v47 = vld [vmem:[%s1 + $0xc] sm:$0xf]
  %v48 = vld [vmem:[%s1 + $0x10] sm:$0xf]
  %v49 = vld [vmem:[%s1 + $0x14] sm:$0xf]
  %v50 = vld [vmem:[%s1 + $0x18] sm:$0xf]
  %v51 = vld [vmem:[%s1 + $0x1c] sm:$0xf]
  %v52 = vld [vmem:[%s1 + $0x20] sm:$0xf]
  %v53 = vld [vmem:[%s1 + $0x24] sm:$0xf]
  %v54 = vld [vmem:[%s1 + $0x28] sm:$0xf]
  %v55 = vld [vmem:[%s1 + $0x2c] sm:$0xf]
  %v56 = vld [vmem:[%s1 + $0x30] sm:$0xf]
  %v57 = vld [vmem:[%s1 + $0x34] sm:$0xf]
  %v58 = vld [vmem:[%s1 + $0x38] sm:$0xf]
  %v59 = vld [vmem:[%s1 + $0x3c] sm:$0xf]
  %v92 = vunpack.c.l.b16 %v12
  %v93 = vunpack.c.l.b16 %v13
  %v94 = vunpack.c.l.b16 %v14
  %v95 = vunpack.c.l.b16 %v15
  %v96 = vunpack.c.l.b16 %v16
  %v97 = vunpack.c.l.b16 %v17
  %v98 = vunpack.c.l.b16 %v18
  %v99 = vunpack.c.l.b16 %v19
  %v100 = vunpack.c.l.b16 %v20
  %v101 = vunpack.c.l.b16 %v21
  %v102 = vunpack.c.l.b16 %v22
  %v103 = vunpack.c.l.b16 %v23
  %v104 = vunpack.c.l.b16 %v24
  %v105 = vunpack.c.l.b16 %v25
  %v106 = vunpack.c.l.b16 %v26
  %v107 = vunpack.c.l.b16 %v27
  %v108 = vunpack.c.l.b16 %v28
  %v109 = vunpack.c.l.b16 %v29
  %v110 = vunpack.c.l.b16 %v30
  %v111 = vunpack.c.l.b16 %v31
  %v112 = vunpack.c.l.b16 %v32
  %v113 = vunpack.c.l.b16 %v33
  %v114 = vunpack.c.l.b16 %v34
  %v115 = vunpack.c.l.b16 %v35
  %v116 = vunpack.c.l.b16 %v36
  %v117 = vunpack.c.l.b16 %v37
  %v118 = vunpack.c.l.b16 %v38
  %v119 = vunpack.c.l.b16 %v39
  %v120 = vunpack.c.l.b16 %v40
  %v121 = vunpack.c.l.b16 %v41
  %v122 = vunpack.c.l.b16 %v42
  %v123 = vunpack.c.l.b16 %v43
  %v124 = vpack.c.b16 %v93, %v92
  %v125 = vpack.c.b16 %v95, %v94
  %v126 = vpack.c.b16 %v97, %v96
  %v127 = vpack.c.b16 %v99, %v98
  %v128 = vpack.c.b16 %v101, %v100
  %v129 = vpack.c.b16 %v103, %v102
  %v130 = vpack.c.b16 %v105, %v104
  %v131 = vpack.c.b16 %v107, %v106
  %v132 = vpack.c.b16 %v109, %v108
  %v133 = vpack.c.b16 %v111, %v110
  %v134 = vpack.c.b16 %v113, %v112
  %v135 = vpack.c.b16 %v115, %v114
  %v136 = vpack.c.b16 %v117, %v116
  %v137 = vpack.c.b16 %v119, %v118
  %v138 = vpack.c.b16 %v121, %v120
  %v139 = vpack.c.b16 %v123, %v122
  %v172 = vunpack.c.l.b16 %v44
  %v173 = vunpack.c.l.b16 %v45
  %v174 = vunpack.c.l.b16 %v46
  %v175 = vunpack.c.l.b16 %v47
  %v176 = vunpack.c.l.b16 %v48
  %v177 = vunpack.c.l.b16 %v49
  %v178 = vunpack.c.l.b16 %v50
  %v179 = vunpack.c.l.b16 %v51
  %v180 = vunpack.c.l.b16 %v52
  %v181 = vunpack.c.l.b16 %v53
  %v182 = vunpack.c.l.b16 %v54
  %v183 = vunpack.c.l.b16 %v55
  %v184 = vunpack.c.l.b16 %v56
  %v185 = vunpack.c.l.b16 %v57
  %v186 = vunpack.c.l.b16 %v58
  %v187 = vunpack.c.l.b16 %v59
  %v188 = vpack.c.b16 %v173, %v172
  %v189 = vpack.c.b16 %v175, %v174
  %v190 = vpack.c.b16 %v177, %v176
  %v191 = vpack.c.b16 %v179, %v178
  %v192 = vpack.c.b16 %v181, %v180
  %v193 = vpack.c.b16 %v183, %v182
  %v194 = vpack.c.b16 %v185, %v184
  %v195 = vpack.c.b16 %v187, %v186
  %204 = vmatprep.subr.bf16.mxu0 0
  %205 = vmatpush1.bf16.msra.mxu0 %v188
  %206 = vmatprep.subr.bf16.mxu0 0
  %207 = vmatpush1.bf16.msra.mxu0 %v189
  %208 = vmatprep.subr.bf16.mxu0 0
  %209 = vmatpush1.bf16.msra.mxu0 %v190
  %210 = vmatprep.subr.bf16.mxu0 0
  %211 = vmatpush1.bf16.msra.mxu0 %v191
  %212 = vmatprep.subr.bf16.mxu0 0
  %213 = vmatpush1.bf16.msra.mxu0 %v192
  %214 = vmatprep.subr.bf16.mxu0 0
  %215 = vmatpush1.bf16.msra.mxu0 %v193
  %216 = vmatprep.subr.bf16.mxu0 0
  %217 = vmatpush1.bf16.msra.mxu0 %v194
  %218 = vmatprep.subr.bf16.mxu0 0
  %219 = vmatpush1.bf16.msra.mxu0 %v195
  %220 = vmatprep.subr.bf16.mxu0 0
  %221 = vmatpush1.bf16.msra.mxu0 0
  %222 = vmatprep.subr.bf16.mxu0 0
  %223 = vmatpush1.bf16.msra.mxu0 0
  %224 = vmatprep.subr.bf16.mxu0 0
  %225 = vmatpush1.bf16.msra.mxu0 0
  %226 = vmatprep.subr.bf16.mxu0 0
  %227 = vmatpush1.bf16.msra.mxu0 0
  %228 = vmatprep.subr.bf16.mxu0 0
  %229 = vmatpush1.bf16.msra.mxu0 0
  %230 = vmatprep.subr.bf16.mxu0 0
  %231 = vmatpush1.bf16.msra.mxu0 0
  %232 = vmatprep.subr.bf16.mxu0 0
  %233 = vmatpush1.bf16.msra.mxu0 0
  %234 = vmatprep.subr.bf16.mxu0 0
  %235 = vmatpush1.bf16.msra.mxu0 0
  %236 = vmatprep.mubr.bf16.mxu0 0
  %237 = vmatmul.mubr.bf16.gmra.mrb[0].mxu0 %v124
  %v238 = vpop.f32.mrb[0].mxu0
  %v239 = vadd.f32 0.0, %v238
  %v240 = vpop.f32.mrb[0].mxu0
  %v241 = vpop.f32.mrb[0].mxu0
  %v242 = vadd.f32 0.0, %v241
  %v243 = vpop.f32.mrb[0].mxu0
  %244 = vmatprep.mubr.bf16.mxu0 0
  %245 = vmatmul.mubr.bf16.gmra.mrb[0].mxu0 %v125
  %v246 = vpop.f32.mrb[0].mxu0
  %v247 = vadd.f32 0.0, %v246
  %v248 = vpop.f32.mrb[0].mxu0
  %v249 = vpop.f32.mrb[0].mxu0
  %v250 = vadd.f32 0.0, %v249
  %v251 = vpop.f32.mrb[0].mxu0
  %252 = vmatprep.mubr.bf16.mxu0 0
  %253 = vmatmul.mubr.bf16.gmra.mrb[0].mxu0 %v126
  %v254 = vpop.f32.mrb[0].mxu0
  %v255 = vadd.f32 0.0, %v254
  %v256 = vpop.f32.mrb[0].mxu0
  %v257 = vpop.f32.mrb[0].mxu0
  %v258 = vadd.f32 0.0, %v257
  %v259 = vpop.f32.mrb[0].mxu0
  %260 = vmatprep.mubr.bf16.mxu0 0
  %261 = vmatmul.mubr.bf16.gmra.mrb[0].mxu0 %v127
  %v262 = vpop.f32.mrb[0].mxu0
  %v263 = vadd.f32 0.0, %v262
  %v264 = vpop.f32.mrb[0].mxu0
  %v265 = vpop.f32.mrb[0].mxu0
  %v266 = vadd.f32 0.0, %v265
  %v267 = vpop.f32.mrb[0].mxu0
  %268 = vmatprep.mubr.bf16.mxu0 0
  %269 = vmatmul.mubr.bf16.gmra.mrb[0].mxu0 %v128
  %v270 = vpop.f32.mrb[0].mxu0
  %v271 = vadd.f32 0.0, %v270
  %v272 = vpop.f32.mrb[0].mxu0
  %v273 = vpop.f32.mrb[0].mxu0
  %v274 = vadd.f32 0.0, %v273
  %v275 = vpop.f32.mrb[0].mxu0
  %276 = vmatprep.mubr.bf16.mxu0 0
  %277 = vmatmul.mubr.bf16.gmra.mrb[0].mxu0 %v129
  %v278 = vpop.f32.mrb[0].mxu0
  %v279 = vadd.f32 0.0, %v278
  %v280 = vpop.f32.mrb[0].mxu0
  %v281 = vpop.f32.mrb[0].mxu0
  %v282 = vadd.f32 0.0, %v281
  %v283 = vpop.f32.mrb[0].mxu0
  %284 = vmatprep.mubr.bf16.mxu0 0
  %285 = vmatmul.mubr.bf16.gmra.mrb[0].mxu0 %v130
  %v286 = vpop.f32.mrb[0].mxu0
  %v287 = vadd.f32 0.0, %v286
  %v288 = vpop.f32.mrb[0].mxu0
  %v289 = vpop.f32.mrb[0].mxu0
  %v290 = vadd.f32 0.0, %v289
  %v291 = vpop.f32.mrb[0].mxu0
  %292 = vmatprep.mubr.bf16.mxu0 0
  %293 = vmatmul.mubr.bf16.gmra.mrb[0].mxu0 %v131
  %v294 = vpop.f32.mrb[0].mxu0
  %v295 = vadd.f32 0.0, %v294
  %v296 = vpop.f32.mrb[0].mxu0
  %v297 = vpop.f32.mrb[0].mxu0
  %v298 = vadd.f32 0.0, %v297
  %v299 = vpop.f32.mrb[0].mxu0
  %300 = vmatprep.mubr.bf16.mxu0 0
  %301 = vmatmul.mubr.bf16.gmra.mrb[0].mxu0 %v132
  %v302 = vpop.f32.mrb[0].mxu0
  %v303 = vadd.f32 0.0, %v302
  %v304 = vpop.f32.mrb[0].mxu0
  %v305 = vpop.f32.mrb[0].mxu0
  %v306 = vadd.f32 0.0, %v305
  %v307 = vpop.f32.mrb[0].mxu0
  %308 = vmatprep.mubr.bf16.mxu0 0
  %309 = vmatmul.mubr.bf16.gmra.mrb[0].mxu0 %v133
  %v310 = vpop.f32.mrb[0].mxu0
  %v311 = vadd.f32 0.0, %v310
  %v312 = vpop.f32.mrb[0].mxu0
  %v313 = vpop.f32.mrb[0].mxu0
  %v314 = vadd.f32 0.0, %v313
  %v315 = vpop.f32.mrb[0].mxu0
  %316 = vmatprep.mubr.bf16.mxu0 0
  %317 = vmatmul.mubr.bf16.gmra.mrb[0].mxu0 %v134
  %v318 = vpop.f32.mrb[0].mxu0
  %v319 = vadd.f32 0.0, %v318
  %v320 = vpop.f32.mrb[0].mxu0
  %v321 = vpop.f32.mrb[0].mxu0
  %v322 = vadd.f32 0.0, %v321
  %v323 = vpop.f32.mrb[0].mxu0
  %324 = vmatprep.mubr.bf16.mxu0 0
  %325 = vmatmul.mubr.bf16.gmra.mrb[0].mxu0 %v135
  %v326 = vpop.f32.mrb[0].mxu0
  %v327 = vadd.f32 0.0, %v326
  %v328 = vpop.f32.mrb[0].mxu0
  %v329 = vpop.f32.mrb[0].mxu0
  %v330 = vadd.f32 0.0, %v329
  %v331 = vpop.f32.mrb[0].mxu0
  %332 = vmatprep.mubr.bf16.mxu0 0
  %333 = vmatmul.mubr.bf16.gmra.mrb[0].mxu0 %v136
  %v334 = vpop.f32.mrb[0].mxu0
  %v335 = vadd.f32 0.0, %v334
  %v336 = vpop.f32.mrb[0].mxu0
  %v337 = vpop.f32.mrb[0].mxu0
  %v338 = vadd.f32 0.0, %v337
  %v339 = vpop.f32.mrb[0].mxu0
  %340 = vmatprep.mubr.bf16.mxu0 0
  %341 = vmatmul.mubr.bf16.gmra.mrb[0].mxu0 %v137
  %v342 = vpop.f32.mrb[0].mxu0
  %v343 = vadd.f32 0.0, %v342
  %v344 = vpop.f32.mrb[0].mxu0
  %v345 = vpop.f32.mrb[0].mxu0
  %v346 = vadd.f32 0.0, %v345
  %v347 = vpop.f32.mrb[0].mxu0
  %348 = vmatprep.mubr.bf16.mxu0 0
  %349 = vmatmul.mubr.bf16.gmra.mrb[0].mxu0 %v138
  %v350 = vpop.f32.mrb[0].mxu0
  %v351 = vadd.f32 0.0, %v350
  %v352 = vpop.f32.mrb[0].mxu0
  %v353 = vpop.f32.mrb[0].mxu0
  %v354 = vadd.f32 0.0, %v353
  %v355 = vpop.f32.mrb[0].mxu0
  %356 = vmatprep.mubr.bf16.mxu0 0
  %357 = vmatmul.mubr.bf16.gmra.mrb[0].mxu0 %v139
  %v358 = vpop.f32.mrb[0].mxu0
  %v359 = vadd.f32 0.0, %v358
  %v360 = vpop.f32.mrb[0].mxu0
  %v361 = vpop.f32.mrb[0].mxu0
  %v362 = vadd.f32 0.0, %v361
  %v363 = vpop.f32.mrb[0].mxu0
  %364 = vdwg.mxu0
  %v365 = vpack.c.bf16 %v242, %v239
  %v366 = vpack.c.bf16 %v250, %v247
  %v367 = vpack.c.bf16 %v258, %v255
  %v368 = vpack.c.bf16 %v266, %v263
  %v369 = vpack.c.bf16 %v274, %v271
  %v370 = vpack.c.bf16 %v282, %v279
  %v371 = vpack.c.bf16 %v290, %v287
  %v372 = vpack.c.bf16 %v298, %v295
  %v373 = vpack.c.bf16 %v306, %v303
  %v374 = vpack.c.bf16 %v314, %v311
  %v375 = vpack.c.bf16 %v322, %v319
  %v376 = vpack.c.bf16 %v330, %v327
  %v377 = vpack.c.bf16 %v338, %v335
  %v378 = vpack.c.bf16 %v346, %v343
  %v379 = vpack.c.bf16 %v354, %v351
  %v380 = vpack.c.bf16 %v362, %v359
  %v397 = vunpack.c.l.b16 %v365
  %v398 = vunpack.c.h.b16 %v365
  %v399 = vunpack.c.l.b16 %v366
  %v400 = vunpack.c.h.b16 %v366
  %v401 = vunpack.c.l.b16 %v367
  %v402 = vunpack.c.h.b16 %v367
  %v403 = vunpack.c.l.b16 %v368
  %v404 = vunpack.c.h.b16 %v368
  %v405 = vunpack.c.l.b16 %v369
  %v406 = vunpack.c.h.b16 %v369
  %v407 = vunpack.c.l.b16 %v370
  %v408 = vunpack.c.h.b16 %v370
  %v409 = vunpack.c.l.b16 %v371
  %v410 = vunpack.c.h.b16 %v371
  %v411 = vunpack.c.l.b16 %v372
  %v412 = vunpack.c.h.b16 %v372
  %v413 = vunpack.c.l.b16 %v373
  %v414 = vunpack.c.h.b16 %v373
  %v415 = vunpack.c.l.b16 %v374
  %v416 = vunpack.c.h.b16 %v374
  %v417 = vunpack.c.l.b16 %v375
  %v418 = vunpack.c.h.b16 %v375
  %v419 = vunpack.c.l.b16 %v376
  %v420 = vunpack.c.h.b16 %v376
  %v421 = vunpack.c.l.b16 %v377
  %v422 = vunpack.c.h.b16 %v377
  %v423 = vunpack.c.l.b16 %v378
  %v424 = vunpack.c.h.b16 %v378
  %v425 = vunpack.c.l.b16 %v379
  %v426 = vunpack.c.h.b16 %v379
  %v427 = vunpack.c.l.b16 %v380
  %v428 = vunpack.c.h.b16 %v380
  %v429 = vpack.c.b16 %v397, %v397
  %v430 = vpack.c.b16 %v398, %v398
  %v431 = vpack.c.b16 %v399, %v399
  %v432 = vpack.c.b16 %v400, %v400
  %v433 = vpack.c.b16 %v401, %v401
  %v434 = vpack.c.b16 %v402, %v402
  %v435 = vpack.c.b16 %v403, %v403
  %v436 = vpack.c.b16 %v404, %v404
  %v437 = vpack.c.b16 %v405, %v405
  %v438 = vpack.c.b16 %v406, %v406
  %v439 = vpack.c.b16 %v407, %v407
  %v440 = vpack.c.b16 %v408, %v408
  %v441 = vpack.c.b16 %v409, %v409
  %v442 = vpack.c.b16 %v410, %v410
  %v443 = vpack.c.b16 %v411, %v411
  %v444 = vpack.c.b16 %v412, %v412
  %v445 = vpack.c.b16 %v413, %v413
  %v446 = vpack.c.b16 %v414, %v414
  %v447 = vpack.c.b16 %v415, %v415
  %v448 = vpack.c.b16 %v416, %v416
  %v449 = vpack.c.b16 %v417, %v417
  %v450 = vpack.c.b16 %v418, %v418
  %v451 = vpack.c.b16 %v419, %v419
  %v452 = vpack.c.b16 %v420, %v420
  %v453 = vpack.c.b16 %v421, %v421
  %v454 = vpack.c.b16 %v422, %v422
  %v455 = vpack.c.b16 %v423, %v423
  %v456 = vpack.c.b16 %v424, %v424
  %v457 = vpack.c.b16 %v425, %v425
  %v458 = vpack.c.b16 %v426, %v426
  %v459 = vpack.c.b16 %v427, %v427
  %v460 = vpack.c.b16 %v428, %v428
  %493 = vst [vmem:[%s2] sm:$0xf] %v429
  %494 = vst [vmem:[%s2 + $0x4] sm:$0xf] %v430
  %495 = vst [vmem:[%s2 + $0x8] sm:$0xf] %v431
  %496 = vst [vmem:[%s2 + $0xc] sm:$0xf] %v432
  %497 = vst [vmem:[%s2 + $0x10] sm:$0xf] %v433
  %498 = vst [vmem:[%s2 + $0x14] sm:$0xf] %v434
  %499 = vst [vmem:[%s2 + $0x18] sm:$0xf] %v435
  %500 = vst [vmem:[%s2 + $0x1c] sm:$0xf] %v436
  %501 = vst [vmem:[%s2 + $0x20] sm:$0xf] %v437
  %502 = vst [vmem:[%s2 + $0x24] sm:$0xf] %v438
  %503 = vst [vmem:[%s2 + $0x28] sm:$0xf] %v439
  %504 = vst [vmem:[%s2 + $0x2c] sm:$0xf] %v440
  %505 = vst [vmem:[%s2 + $0x30] sm:$0xf] %v441
  %506 = vst [vmem:[%s2 + $0x34] sm:$0xf] %v442
  %507 = vst [vmem:[%s2 + $0x38] sm:$0xf] %v443
  %508 = vst [vmem:[%s2 + $0x3c] sm:$0xf] %v444
  %509 = vst [vmem:[%s2 + $0x40] sm:$0xf] %v445
  %510 = vst [vmem:[%s2 + $0x44] sm:$0xf] %v446
  %511 = vst [vmem:[%s2 + $0x48] sm:$0xf] %v447
  %512 = vst [vmem:[%s2 + $0x4c] sm:$0xf] %v448
  %513 = vst [vmem:[%s2 + $0x50] sm:$0xf] %v449
  %514 = vst [vmem:[%s2 + $0x54] sm:$0xf] %v450
  %515 = vst [vmem:[%s2 + $0x58] sm:$0xf] %v451
  %516 = vst [vmem:[%s2 + $0x5c] sm:$0xf] %v452
  %517 = vst [vmem:[%s2 + $0x60] sm:$0xf] %v453
  %518 = vst [vmem:[%s2 + $0x64] sm:$0xf] %v454
  %519 = vst [vmem:[%s2 + $0x68] sm:$0xf] %v455
  %520 = vst [vmem:[%s2 + $0x6c] sm:$0xf] %v456
  %521 = vst [vmem:[%s2 + $0x70] sm:$0xf] %v457
  %522 = vst [vmem:[%s2 + $0x74] sm:$0xf] %v458
  %523 = vst [vmem:[%s2 + $0x78] sm:$0xf] %v459
  %524 = vst [vmem:[%s2 + $0x7c] sm:$0xf] %v460
  // Predicated region
  $region10: #{gnn_policy_forward.4} parent=0 // pred_check
    _
  $region11: #{gnn_policy_forward.4} parent=0 // pred_check_branch
    %526 = sbr.rel (0) target = $region13
  $region12: #{gnn_policy_forward.4} parent=0 // pred_region
    _
  $region13: #{gnn_policy_forward.4} parent=0 // pred_fallthru
    _
  // Predicated region
  $region14: #{gnn_policy_forward.4} parent=0 // pred_check
    _
  $region15: #{gnn_policy_forward.4} parent=0 // pred_check_branch
    %528 = sbr.rel (0) target = $region17
  $region16: #{gnn_policy_forward.4} parent=0 // pred_region
    _
  $region17: #{gnn_policy_forward.4} parent=0 // pred_fallthru
    _

// kernel: gnn_policy_forward.5
$region0: #{gnn_policy_forward.5}
  #allocation0 [shape = 'u32[]', space=smem, size = 0x4, offset = 0x4, fixed_abs, tag = 'smem constant byte address 0x4 - core index']
  #allocation1 [shape = 'u32[144,128]{1,0:T(1,128)}', space=vmem, size = 0x12000, scoped, tag = 'internal scratch']
  #allocation2 [shape = 'f32[256,128]{1,0:T(8,128)}', space=vmem, size = 0x20000, scoped, tag = 'scratch operand']
  %s0 = inlined_call_operand.vmem [shape: bf16[256,256], index: 0, kind: input, shape index: {}]
  %s1 = inlined_call_operand.vmem [shape: bf16[256,128], index: 1, kind: input, shape index: {}]
  %s2 = inlined_call_operand.vmem [shape: f32[1,128], index: 2, kind: input, shape index: {}]
  %s3 = inlined_call_operand.vmem [shape: bf16[128,128], index: 3, kind: input, shape index: {}]
  %s4 = inlined_call_operand.vmem [shape: bf16[256,128], index: 4, kind: output, shape index: {}]
  %s5 = sld [smem:[#allocation0]]
  $region34: #{gnn_policy_forward.5} parent=0
    _
  %s7 = ssub.s32 1, %s5
  %s8 = scalar_select 0, %s7, %s5
  // Predicated region
  $region2: #{gnn_policy_forward.5} parent=0 // pred_check
    _
  $region3: #{gnn_policy_forward.5} parent=0 // pred_check_branch
    %10 = sbr.rel (0) target = $region5
  $region4: #{gnn_policy_forward.5} parent=0 // pred_region
    _
  $region5: #{gnn_policy_forward.5} parent=0 // pred_fallthru
    _
  // Predicated region
  $region6: #{gnn_policy_forward.5} parent=0 // pred_check
    _
  $region7: #{gnn_policy_forward.5} parent=0 // pred_check_branch
    %12 = sbr.rel (0) target = $region9
  $region8: #{gnn_policy_forward.5} parent=0 // pred_region
    _
  $region9: #{gnn_policy_forward.5} parent=0 // pred_fallthru
    _
  // Predicated region
  $region10: #{gnn_policy_forward.5} parent=0 // pred_check
    _
  $region11: #{gnn_policy_forward.5} parent=0 // pred_check_branch
    %14 = sbr.rel (0) target = $region13
  $region12: #{gnn_policy_forward.5} parent=0 // pred_region
    _
  $region13: #{gnn_policy_forward.5} parent=0 // pred_fallthru
    _
  // Predicated region
  $region14: #{gnn_policy_forward.5} parent=0 // pred_check
    _
  $region15: #{gnn_policy_forward.5} parent=0 // pred_check_branch
    %16 = sbr.rel (0) target = $region17
  $region16: #{gnn_policy_forward.5} parent=0 // pred_region
    _
  $region17: #{gnn_policy_forward.5} parent=0 // pred_fallthru
    _
  %p18 = scmp.eq.s32.totalorder 0, 0
  // Predicated region
  $region18: #{gnn_policy_forward.5} parent=0 // pred_check
    %p19 = pneg %p18
  $region19: #{gnn_policy_forward.5} parent=0 // pred_check_branch
    %21 = sbr.rel (%p19) target = $region21
  $region20: #{gnn_policy_forward.5} parent=0 // pred_region
    %22 = vst [vmem:[#allocation2] sm:$0xff] 0.0
    %23 = vst [vmem:[#allocation2 + $0x8] sm:$0xff] 0.0
    %24 = vst [vmem:[#allocation2 + $0x10] sm:$0xff] 0.0
    %25 = vst [vmem:[#allocation2 + $0x18] sm:$0xff] 0.0
    %26 = vst [vmem:[#allocation2 + $0x20] sm:$0xff] 0.0
    %27 = vst [vmem:[#allocation2 + $0x28] sm:$0xff] 0.0
    %28 = vst [vmem:[#allocation2 + $0x30] sm:$0xff] 0.0
    %29 = vst [vmem:[#allocation2 + $0x38] sm:$0xff] 0.0
    %30 = vst [vmem:[#allocation2 + $0x40] sm:$0xff] 0.0
    %31 = vst [vmem:[#allocation2 + $0x48] sm:$0xff] 0.0
    %32 = vst [vmem:[#allocation2 + $0x50] sm:$0xff] 0.0
    %33 = vst [vmem:[#allocation2 + $0x58] sm:$0xff] 0.0
    %34 = vst [vmem:[#allocation2 + $0x60] sm:$0xff] 0.0
    %35 = vst [vmem:[#allocation2 + $0x68] sm:$0xff] 0.0
    %36 = vst [vmem:[#allocation2 + $0x70] sm:$0xff] 0.0
    %37 = vst [vmem:[#allocation2 + $0x78] sm:$0xff] 0.0
    %38 = vst [vmem:[#allocation2 + $0x80] sm:$0xff] 0.0
    %39 = vst [vmem:[#allocation2 + $0x88] sm:$0xff] 0.0
    %40 = vst [vmem:[#allocation2 + $0x90] sm:$0xff] 0.0
    %41 = vst [vmem:[#allocation2 + $0x98] sm:$0xff] 0.0
    %42 = vst [vmem:[#allocation2 + $0xa0] sm:$0xff] 0.0
    %43 = vst [vmem:[#allocation2 + $0xa8] sm:$0xff] 0.0
    %44 = vst [vmem:[#allocation2 + $0xb0] sm:$0xff] 0.0
    %45 = vst [vmem:[#allocation2 + $0xb8] sm:$0xff] 0.0
    %46 = vst [vmem:[#allocation2 + $0xc0] sm:$0xff] 0.0
    %47 = vst [vmem:[#allocation2 + $0xc8] sm:$0xff] 0.0
    %48 = vst [vmem:[#allocation2 + $0xd0] sm:$0xff] 0.0
    %49 = vst [vmem:[#allocation2 + $0xd8] sm:$0xff] 0.0
    %50 = vst [vmem:[#allocation2 + $0xe0] sm:$0xff] 0.0
    %51 = vst [vmem:[#allocation2 + $0xe8] sm:$0xff] 0.0
    %52 = vst [vmem:[#allocation2 + $0xf0] sm:$0xff] 0.0
    %53 = vst [vmem:[#allocation2 + $0xf8] sm:$0xff] 0.0
  $region21: #{gnn_policy_forward.5} parent=0 // pred_fallthru
    _
  %v54 = vld [vmem:[#allocation2] sm:$0xff]
  %v55 = vld [vmem:[#allocation2 + $0x8] sm:$0xff]
  %v56 = vld [vmem:[#allocation2 + $0x10] sm:$0xff]
  %v57 = vld [vmem:[#allocation2 + $0x18] sm:$0xff]
  %v58 = vld [vmem:[#allocation2 + $0x20] sm:$0xff]
  %v59 = vld [vmem:[#allocation2 + $0x28] sm:$0xff]
  %v60 = vld [vmem:[#allocation2 + $0x30] sm:$0xff]
  %v61 = vld [vmem:[#allocation2 + $0x38] sm:$0xff]
  %v62 = vld [vmem:[#allocation2 + $0x40] sm:$0xff]
  %v63 = vld [vmem:[#allocation2 + $0x48] sm:$0xff]
  %v64 = vld [vmem:[#allocation2 + $0x50] sm:$0xff]
  %v65 = vld [vmem:[#allocation2 + $0x58] sm:$0xff]
  %v66 = vld [vmem:[#allocation2 + $0x60] sm:$0xff]
  %v67 = vld [vmem:[#allocation2 + $0x68] sm:$0xff]
  %v68 = vld [vmem:[#allocation2 + $0x70] sm:$0xff]
  %v69 = vld [vmem:[#allocation2 + $0x78] sm:$0xff]
  %v70 = vld [vmem:[#allocation2 + $0x80] sm:$0xff]
  %v71 = vld [vmem:[#allocation2 + $0x88] sm:$0xff]
  %v72 = vld [vmem:[#allocation2 + $0x90] sm:$0xff]
  %v73 = vld [vmem:[#allocation2 + $0x98] sm:$0xff]
  %v74 = vld [vmem:[#allocation2 + $0xa0] sm:$0xff]
  %v75 = vld [vmem:[#allocation2 + $0xa8] sm:$0xff]
  %v76 = vld [vmem:[#allocation2 + $0xb0] sm:$0xff]
  %v77 = vld [vmem:[#allocation2 + $0xb8] sm:$0xff]
  %v78 = vld [vmem:[#allocation2 + $0xc0] sm:$0xff]
  %v79 = vld [vmem:[#allocation2 + $0xc8] sm:$0xff]
  %v80 = vld [vmem:[#allocation2 + $0xd0] sm:$0xff]
  %v81 = vld [vmem:[#allocation2 + $0xd8] sm:$0xff]
  %v82 = vld [vmem:[#allocation2 + $0xe0] sm:$0xff]
  %v83 = vld [vmem:[#allocation2 + $0xe8] sm:$0xff]
  %v84 = vld [vmem:[#allocation2 + $0xf0] sm:$0xff]
  %v85 = vld [vmem:[#allocation2 + $0xf8] sm:$0xff]
  %v86 = vld [vmem:[%s0] sm:$0xff]
  %v87 = vld [vmem:[%s0 + $0x8] sm:$0xff]
  %v88 = vld [vmem:[%s0 + $0x10] sm:$0xff]
  %v89 = vld [vmem:[%s0 + $0x18] sm:$0xff]
  %v90 = vld [vmem:[%s0 + $0x20] sm:$0xff]
  %v91 = vld [vmem:[%s0 + $0x28] sm:$0xff]
  %v92 = vld [vmem:[%s0 + $0x30] sm:$0xff]
  %v93 = vld [vmem:[%s0 + $0x38] sm:$0xff]
  %v94 = vld [vmem:[%s0 + $0x40] sm:$0xff]
  %v95 = vld [vmem:[%s0 + $0x48] sm:$0xff]
  %v96 = vld [vmem:[%s0 + $0x50] sm:$0xff]
  %v97 = vld [vmem:[%s0 + $0x58] sm:$0xff]
  %v98 = vld [vmem:[%s0 + $0x60] sm:$0xff]
  %v99 = vld [vmem:[%s0 + $0x68] sm:$0xff]
  %v100 = vld [vmem:[%s0 + $0x70] sm:$0xff]
  %v101 = vld [vmem:[%s0 + $0x78] sm:$0xff]
  %v102 = vld [vmem:[%s0 + $0x80] sm:$0xff]
  %v103 = vld [vmem:[%s0 + $0x88] sm:$0xff]
  %v104 = vld [vmem:[%s0 + $0x90] sm:$0xff]
  %v105 = vld [vmem:[%s0 + $0x98] sm:$0xff]
  %v106 = vld [vmem:[%s0 + $0xa0] sm:$0xff]
  %v107 = vld [vmem:[%s0 + $0xa8] sm:$0xff]
  %v108 = vld [vmem:[%s0 + $0xb0] sm:$0xff]
  %v109 = vld [vmem:[%s0 + $0xb8] sm:$0xff]
  %v110 = vld [vmem:[%s0 + $0xc0] sm:$0xff]
  %v111 = vld [vmem:[%s0 + $0xc8] sm:$0xff]
  %v112 = vld [vmem:[%s0 + $0xd0] sm:$0xff]
  %v113 = vld [vmem:[%s0 + $0xd8] sm:$0xff]
  %v114 = vld [vmem:[%s0 + $0xe0] sm:$0xff]
  %v115 = vld [vmem:[%s0 + $0xe8] sm:$0xff]
  %v116 = vld [vmem:[%s0 + $0xf0] sm:$0xff]
  %v117 = vld [vmem:[%s0 + $0xf8] sm:$0xff]
  %v118 = vld [vmem:[%s1] sm:$0xf]
  %v119 = vld [vmem:[%s1 + $0x4] sm:$0xf]
  %v120 = vld [vmem:[%s1 + $0x8] sm:$0xf]
  %v121 = vld [vmem:[%s1 + $0xc] sm:$0xf]
  %v122 = vld [vmem:[%s1 + $0x10] sm:$0xf]
  %v123 = vld [vmem:[%s1 + $0x14] sm:$0xf]
  %v124 = vld [vmem:[%s1 + $0x18] sm:$0xf]
  %v125 = vld [vmem:[%s1 + $0x1c] sm:$0xf]
  %v126 = vld [vmem:[%s1 + $0x20] sm:$0xf]
  %v127 = vld [vmem:[%s1 + $0x24] sm:$0xf]
  %v128 = vld [vmem:[%s1 + $0x28] sm:$0xf]
  %v129 = vld [vmem:[%s1 + $0x2c] sm:$0xf]
  %v130 = vld [vmem:[%s1 + $0x30] sm:$0xf]
  %v131 = vld [vmem:[%s1 + $0x34] sm:$0xf]
  %v132 = vld [vmem:[%s1 + $0x38] sm:$0xf]
  %v133 = vld [vmem:[%s1 + $0x3c] sm:$0xf]
  %v134 = vld [vmem:[%s1 + $0x40] sm:$0xf]
  %v135 = vld [vmem:[%s1 + $0x44] sm:$0xf]
  %v136 = vld [vmem:[%s1 + $0x48] sm:$0xf]
  %v137 = vld [vmem:[%s1 + $0x4c] sm:$0xf]
  %v138 = vld [vmem:[%s1 + $0x50] sm:$0xf]
  %v139 = vld [vmem:[%s1 + $0x54] sm:$0xf]
  %v140 = vld [vmem:[%s1 + $0x58] sm:$0xf]
  %v141 = vld [vmem:[%s1 + $0x5c] sm:$0xf]
  %v142 = vld [vmem:[%s1 + $0x60] sm:$0xf]
  %v143 = vld [vmem:[%s1 + $0x64] sm:$0xf]
  %v144 = vld [vmem:[%s1 + $0x68] sm:$0xf]
  %v145 = vld [vmem:[%s1 + $0x6c] sm:$0xf]
  %v146 = vld [vmem:[%s1 + $0x70] sm:$0xf]
  %v147 = vld [vmem:[%s1 + $0x74] sm:$0xf]
  %v148 = vld [vmem:[%s1 + $0x78] sm:$0xf]
  %v149 = vld [vmem:[%s1 + $0x7c] sm:$0xf]
  %v182 = vunpack.c.l.b16 %v86
  %v183 = vunpack.c.h.b16 %v86
  %v184 = vunpack.c.l.b16 %v87
  %v185 = vunpack.c.h.b16 %v87
  %v186 = vunpack.c.l.b16 %v88
  %v187 = vunpack.c.h.b16 %v88
  %v188 = vunpack.c.l.b16 %v89
  %v189 = vunpack.c.h.b16 %v89
  %v190 = vunpack.c.l.b16 %v90
  %v191 = vunpack.c.h.b16 %v90
  %v192 = vunpack.c.l.b16 %v91
  %v193 = vunpack.c.h.b16 %v91
  %v194 = vunpack.c.l.b16 %v92
  %v195 = vunpack.c.h.b16 %v92
  %v196 = vunpack.c.l.b16 %v93
  %v197 = vunpack.c.h.b16 %v93
  %v198 = vunpack.c.l.b16 %v94
  %v199 = vunpack.c.h.b16 %v94
  %v200 = vunpack.c.l.b16 %v95
  %v201 = vunpack.c.h.b16 %v95
  %v202 = vunpack.c.l.b16 %v96
  %v203 = vunpack.c.h.b16 %v96
  %v204 = vunpack.c.l.b16 %v97
  %v205 = vunpack.c.h.b16 %v97
  %v206 = vunpack.c.l.b16 %v98
  %v207 = vunpack.c.h.b16 %v98
  %v208 = vunpack.c.l.b16 %v99
  %v209 = vunpack.c.h.b16 %v99
  %v210 = vunpack.c.l.b16 %v100
  %v211 = vunpack.c.h.b16 %v100
  %v212 = vunpack.c.l.b16 %v101
  %v213 = vunpack.c.h.b16 %v101
  %v214 = vunpack.c.l.b16 %v102
  %v215 = vunpack.c.h.b16 %v102
  %v216 = vunpack.c.l.b16 %v103
  %v217 = vunpack.c.h.b16 %v103
  %v218 = vunpack.c.l.b16 %v104
  %v219 = vunpack.c.h.b16 %v104
  %v220 = vunpack.c.l.b16 %v105
  %v221 = vunpack.c.h.b16 %v105
  %v222 = vunpack.c.l.b16 %v106
  %v223 = vunpack.c.h.b16 %v106
  %v224 = vunpack.c.l.b16 %v107
  %v225 = vunpack.c.h.b16 %v107
  %v226 = vunpack.c.l.b16 %v108
  %v227 = vunpack.c.h.b16 %v108
  %v228 = vunpack.c.l.b16 %v109
  %v229 = vunpack.c.h.b16 %v109
  %v230 = vunpack.c.l.b16 %v110
  %v231 = vunpack.c.h.b16 %v110
  %v232 = vunpack.c.l.b16 %v111
  %v233 = vunpack.c.h.b16 %v111
  %v234 = vunpack.c.l.b16 %v112
  %v235 = vunpack.c.h.b16 %v112
  %v236 = vunpack.c.l.b16 %v113
  %v237 = vunpack.c.h.b16 %v113
  %v238 = vunpack.c.l.b16 %v114
  %v239 = vunpack.c.h.b16 %v114
  %v240 = vunpack.c.l.b16 %v115
  %v241 = vunpack.c.h.b16 %v115
  %v242 = vunpack.c.l.b16 %v116
  %v243 = vunpack.c.h.b16 %v116
  %v244 = vunpack.c.l.b16 %v117
  %v245 = vunpack.c.h.b16 %v117
  %v246 = vpack.c.b16 %v184, %v182
  %v247 = vpack.c.b16 %v185, %v183
  %v248 = vpack.c.b16 %v188, %v186
  %v249 = vpack.c.b16 %v189, %v187
  %v250 = vpack.c.b16 %v192, %v190
  %v251 = vpack.c.b16 %v193, %v191
  %v252 = vpack.c.b16 %v196, %v194
  %v253 = vpack.c.b16 %v197, %v195
  %v254 = vpack.c.b16 %v200, %v198
  %v255 = vpack.c.b16 %v201, %v199
  %v256 = vpack.c.b16 %v204, %v202
  %v257 = vpack.c.b16 %v205, %v203
  %v258 = vpack.c.b16 %v208, %v206
  %v259 = vpack.c.b16 %v209, %v207
  %v260 = vpack.c.b16 %v212, %v210
  %v261 = vpack.c.b16 %v213, %v211
  %v262 = vpack.c.b16 %v216, %v214
  %v263 = vpack.c.b16 %v217, %v215
  %v264 = vpack.c.b16 %v220, %v218
  %v265 = vpack.c.b16 %v221, %v219
  %v266 = vpack.c.b16 %v224, %v222
  %v267 = vpack.c.b16 %v225, %v223
  %v268 = vpack.c.b16 %v228, %v226
  %v269 = vpack.c.b16 %v229, %v227
  %v270 = vpack.c.b16 %v232, %v230
  %v271 = vpack.c.b16 %v233, %v231
  %v272 = vpack.c.b16 %v236, %v234
  %v273 = vpack.c.b16 %v237, %v235
  %v274 = vpack.c.b16 %v240, %v238
  %v275 = vpack.c.b16 %v241, %v239
  %v276 = vpack.c.b16 %v244, %v242
  %v277 = vpack.c.b16 %v245, %v243
  %v342 = vunpack.c.l.b16 %v118
  %v343 = vunpack.c.l.b16 %v119
  %v344 = vunpack.c.l.b16 %v120
  %v345 = vunpack.c.l.b16 %v121
  %v346 = vunpack.c.l.b16 %v122
  %v347 = vunpack.c.l.b16 %v123
  %v348 = vunpack.c.l.b16 %v124
  %v349 = vunpack.c.l.b16 %v125
  %v350 = vunpack.c.l.b16 %v126
  %v351 = vunpack.c.l.b16 %v127
  %v352 = vunpack.c.l.b16 %v128
  %v353 = vunpack.c.l.b16 %v129
  %v354 = vunpack.c.l.b16 %v130
  %v355 = vunpack.c.l.b16 %v131
  %v356 = vunpack.c.l.b16 %v132
  %v357 = vunpack.c.l.b16 %v133
  %v358 = vunpack.c.l.b16 %v134
  %v359 = vunpack.c.l.b16 %v135
  %v360 = vunpack.c.l.b16 %v136
  %v361 = vunpack.c.l.b16 %v137
  %v362 = vunpack.c.l.b16 %v138
  %v363 = vunpack.c.l.b16 %v139
  %v364 = vunpack.c.l.b16 %v140
  %v365 = vunpack.c.l.b16 %v141
  %v366 = vunpack.c.l.b16 %v142
  %v367 = vunpack.c.l.b16 %v143
  %v368 = vunpack.c.l.b16 %v144
  %v369 = vunpack.c.l.b16 %v145
  %v370 = vunpack.c.l.b16 %v146
  %v371 = vunpack.c.l.b16 %v147
  %v372 = vunpack.c.l.b16 %v148
  %v373 = vunpack.c.l.b16 %v149
  %v374 = vpack.c.b16 %v343, %v342
  %v375 = vpack.c.b16 %v345, %v344
  %v376 = vpack.c.b16 %v347, %v346
  %v377 = vpack.c.b16 %v349, %v348
  %v378 = vpack.c.b16 %v351, %v350
  %v379 = vpack.c.b16 %v353, %v352
  %v380 = vpack.c.b16 %v355, %v354
  %v381 = vpack.c.b16 %v357, %v356
  %v382 = vpack.c.b16 %v359, %v358
  %v383 = vpack.c.b16 %v361, %v360
  %v384 = vpack.c.b16 %v363, %v362
  %v385 = vpack.c.b16 %v365, %v364
  %v386 = vpack.c.b16 %v367, %v366
  %v387 = vpack.c.b16 %v369, %v368
  %v388 = vpack.c.b16 %v371, %v370
  %v389 = vpack.c.b16 %v373, %v372
  %406 = vmatprep.subr.bf16.mxu0 0
  %407 = vmatpush1.bf16.msra.mxu0 %v374
  %408 = vmatprep.subr.bf16.mxu0 0
  %409 = vmatpush1.bf16.msra.mxu0 %v375
  %410 = vmatprep.subr.bf16.mxu0 0
  %411 = vmatpush1.bf16.msra.mxu0 %v376
  %412 = vmatprep.subr.bf16.mxu0 0
  %413 = vmatpush1.bf16.msra.mxu0 %v377
  %414 = vmatprep.subr.bf16.mxu0 0
  %415 = vmatpush1.bf16.msra.mxu0 %v378
  %416 = vmatprep.subr.bf16.mxu0 0
  %417 = vmatpush1.bf16.msra.mxu0 %v379
  %418 = vmatprep.subr.bf16.mxu0 0
  %419 = vmatpush1.bf16.msra.mxu0 %v380
  %420 = vmatprep.subr.bf16.mxu0 0
  %421 = vmatpush1.bf16.msra.mxu0 %v381
  %422 = vmatprep.subr.bf16.mxu0 0
  %423 = vmatpush1.bf16.msra.mxu0 %v382
  %424 = vmatprep.subr.bf16.mxu0 0
  %425 = vmatpush1.bf16.msra.mxu0 %v383
  %426 = vmatprep.subr.bf16.mxu0 0
  %427 = vmatpush1.bf16.msra.mxu0 %v384
  %428 = vmatprep.subr.bf16.mxu0 0
  %429 = vmatpush1.bf16.msra.mxu0 %v385
  %430 = vmatprep.subr.bf16.mxu0 0
  %431 = vmatpush1.bf16.msra.mxu0 %v386
  %432 = vmatprep.subr.bf16.mxu0 0
  %433 = vmatpush1.bf16.msra.mxu0 %v387
  %434 = vmatprep.subr.bf16.mxu0 0
  %435 = vmatpush1.bf16.msra.mxu0 %v388
  %436 = vmatprep.subr.bf16.mxu0 0
  %437 = vmatpush1.bf16.msra.mxu0 %v389
  %438 = vmatprep.mubr.bf16.mxu0 %v247
  %439 = vmatmul.mubr.bf16.gmra.mrb[0].mxu0 %v246
  %v440 = vpop.f32.mrb[0].mxu0
  %v441 = vadd.f32 0.0, %v440
  %v442 = vpop.f32.mrb[0].mxu0
  %v443 = vpop.f32.mrb[0].mxu0
  %v444 = vadd.f32 0.0, %v443
  %v445 = vpop.f32.mrb[0].mxu0
  %446 = vmatprep.mubr.bf16.mxu0 %v249
  %447 = vmatmul.mubr.bf16.gmra.mrb[0].mxu0 %v248
  %v448 = vpop.f32.mrb[0].mxu0
  %v449 = vadd.f32 0.0, %v448
  %v450 = vpop.f32.mrb[0].mxu0
  %v451 = vpop.f32.mrb[0].mxu0
  %v452 = vadd.f32 0.0, %v451
  %v453 = vpop.f32.mrb[0].mxu0
  %454 = vmatprep.mubr.bf16.mxu0 %v251
  %455 = vmatmul.mubr.bf16.gmra.mrb[0].mxu0 %v250
  %v456 = vpop.f32.mrb[0].mxu0
  %v457 = vadd.f32 0.0, %v456
  %v458 = vpop.f32.mrb[0].mxu0
  %v459 = vpop.f32.mrb[0].mxu0
  %v460 = vadd.f32 0.0, %v459
  %v461 = vpop.f32.mrb[0].mxu0
  %462 = vmatprep.mubr.bf16.mxu0 %v253
  %463 = vmatmul.mubr.bf16.gmra.mrb[0].mxu0 %v252
  %v464 = vpop.f32.mrb[0].mxu0
  %v465 = vadd.f32 0.0, %v464
  %v466 = vpop.f32.mrb[0].mxu0
  %v467 = vpop.f32.mrb[0].mxu0
  %v468 = vadd.f32 0.0, %v467
  %v469 = vpop.f32.mrb[0].mxu0
  %470 = vmatprep.mubr.bf16.mxu0 %v255
  %471 = vmatmul.mubr.bf16.gmra.mrb[0].mxu0 %v254
  %v472 = vpop.f32.mrb[0].mxu0
  %v473 = vadd.f32 0.0, %v472
  %v474 = vpop.f32.mrb[0].mxu0
  %v475 = vpop.f32.mrb[0].mxu0
  %v476 = vadd.f32 0.0, %v475
  %v477 = vpop.f32.mrb[0].mxu0
  %478 = vmatprep.mubr.bf16.mxu0 %v257
  %479 = vmatmul.mubr.bf16.gmra.mrb[0].mxu0 %v256
  %v480 = vpop.f32.mrb[0].mxu0
  %v481 = vadd.f32 0.0, %v480
  %v482 = vpop.f32.mrb[0].mxu0
  %v483 = vpop.f32.mrb[0].mxu0
  %v484 = vadd.f32 0.0, %v483
  %v485 = vpop.f32.mrb[0].mxu0
  %486 = vmatprep.mubr.bf16.mxu0 %v259
  %487 = vmatmul.mubr.bf16.gmra.mrb[0].mxu0 %v258
  %v488 = vpop.f32.mrb[0].mxu0
  %v489 = vadd.f32 0.0, %v488
  %v490 = vpop.f32.mrb[0].mxu0
  %v491 = vpop.f32.mrb[0].mxu0
  %v492 = vadd.f32 0.0, %v491
  %v493 = vpop.f32.mrb[0].mxu0
  %494 = vmatprep.mubr.bf16.mxu0 %v261
  %495 = vmatmul.mubr.bf16.gmra.mrb[0].mxu0 %v260
  %v496 = vpop.f32.mrb[0].mxu0
  %v497 = vadd.f32 0.0, %v496
  %v498 = vpop.f32.mrb[0].mxu0
  %v499 = vpop.f32.mrb[0].mxu0
  %v500 = vadd.f32 0.0, %v499
  %v501 = vpop.f32.mrb[0].mxu0
  %502 = vmatprep.mubr.bf16.mxu0 %v263
  %503 = vmatmul.mubr.bf16.gmra.mrb[0].mxu0 %v262
  %v504 = vpop.f32.mrb[0].mxu0
  %v505 = vadd.f32 0.0, %v504
  %v506 = vpop.f32.mrb[0].mxu0
  %v507 = vpop.f32.mrb[0].mxu0
  %v508 = vadd.f32 0.0, %v507
  %v509 = vpop.f32.mrb[0].mxu0
  %510 = vmatprep.mubr.bf16.mxu0 %v265
  %511 = vmatmul.mubr.bf16.gmra.mrb[0].mxu0 %v264
  %v512 = vpop.f32.mrb[0].mxu0
  %v513 = vadd.f32 0.0, %v512
  %v514 = vpop.f32.mrb[0].mxu0
  %v515 = vpop.f32.mrb[0].mxu0
  %v516 = vadd.f32 0.0, %v515
  %v517 = vpop.f32.mrb[0].mxu0
  %518 = vmatprep.mubr.bf16.mxu0 %v267
  %519 = vmatmul.mubr.bf16.gmra.mrb[0].mxu0 %v266
  %v520 = vpop.f32.mrb[0].mxu0
  %v521 = vadd.f32 0.0, %v520
  %v522 = vpop.f32.mrb[0].mxu0
  %v523 = vpop.f32.mrb[0].mxu0
  %v524 = vadd.f32 0.0, %v523
  %v525 = vpop.f32.mrb[0].mxu0
  %526 = vmatprep.mubr.bf16.mxu0 %v269
  %527 = vmatmul.mubr.bf16.gmra.mrb[0].mxu0 %v268
  %v528 = vpop.f32.mrb[0].mxu0
  %v529 = vadd.f32 0.0, %v528
  %v530 = vpop.f32.mrb[0].mxu0
  %v531 = vpop.f32.mrb[0].mxu0
  %v532 = vadd.f32 0.0, %v531
  %v533 = vpop.f32.mrb[0].mxu0
  %534 = vmatprep.mubr.bf16.mxu0 %v271
  %535 = vmatmul.mubr.bf16.gmra.mrb[0].mxu0 %v270
  %v536 = vpop.f32.mrb[0].mxu0
  %v537 = vadd.f32 0.0, %v536
  %v538 = vpop.f32.mrb[0].mxu0
  %v539 = vpop.f32.mrb[0].mxu0
  %v540 = vadd.f32 0.0, %v539
  %v541 = vpop.f32.mrb[0].mxu0
  %542 = vmatprep.mubr.bf16.mxu0 %v273
  %543 = vmatmul.mubr.bf16.gmra.mrb[0].mxu0 %v272
  %v544 = vpop.f32.mrb[0].mxu0
  %v545 = vadd.f32 0.0, %v544
  %v546 = vpop.f32.mrb[0].mxu0
  %v547 = vpop.f32.mrb[0].mxu0
  %v548 = vadd.f32 0.0, %v547
  %v549 = vpop.f32.mrb[0].mxu0
  %550 = vmatprep.mubr.bf16.mxu0 %v275
  %551 = vmatmul.mubr.bf16.gmra.mrb[0].mxu0 %v274
  %v552 = vpop.f32.mrb[0].mxu0
  %v553 = vadd.f32 0.0, %v552
  %v554 = vpop.f32.mrb[0].mxu0
  %v555 = vpop.f32.mrb[0].mxu0
  %v556 = vadd.f32 0.0, %v555
  %v557 = vpop.f32.mrb[0].mxu0
  %558 = vmatprep.mubr.bf16.mxu0 %v277
  %559 = vmatmul.mubr.bf16.gmra.mrb[0].mxu0 %v276
  %v560 = vpop.f32.mrb[0].mxu0
  %v561 = vadd.f32 0.0, %v560
  %v562 = vpop.f32.mrb[0].mxu0
  %v563 = vpop.f32.mrb[0].mxu0
  %v564 = vadd.f32 0.0, %v563
  %v565 = vpop.f32.mrb[0].mxu0
  %566 = vdwg.mxu0
  %v567 = vadd.f32 %v54, %v441
  %v568 = vadd.f32 %v55, %v444
  %v569 = vadd.f32 %v56, %v449
  %v570 = vadd.f32 %v57, %v452
  %v571 = vadd.f32 %v58, %v457
  %v572 = vadd.f32 %v59, %v460
  %v573 = vadd.f32 %v60, %v465
  %v574 = vadd.f32 %v61, %v468
  %v575 = vadd.f32 %v62, %v473
  %v576 = vadd.f32 %v63, %v476
  %v577 = vadd.f32 %v64, %v481
  %v578 = vadd.f32 %v65, %v484
  %v579 = vadd.f32 %v66, %v489
  %v580 = vadd.f32 %v67, %v492
  %v581 = vadd.f32 %v68, %v497
  %v582 = vadd.f32 %v69, %v500
  %v583 = vadd.f32 %v70, %v505
  %v584 = vadd.f32 %v71, %v508
  %v585 = vadd.f32 %v72, %v513
  %v586 = vadd.f32 %v73, %v516
  %v587 = vadd.f32 %v74, %v521
  %v588 = vadd.f32 %v75, %v524
  %v589 = vadd.f32 %v76, %v529
  %v590 = vadd.f32 %v77, %v532
  %v591 = vadd.f32 %v78, %v537
  %v592 = vadd.f32 %v79, %v540
  %v593 = vadd.f32 %v80, %v545
  %v594 = vadd.f32 %v81, %v548
  %v595 = vadd.f32 %v82, %v553
  %v596 = vadd.f32 %v83, %v556
  %v597 = vadd.f32 %v84, %v561
  %v598 = vadd.f32 %v85, %v564
  %599 = vst [vmem:[#allocation2] sm:$0xff] %v567
  %600 = vst [vmem:[#allocation2 + $0x8] sm:$0xff] %v568
  %601 = vst [vmem:[#allocation2 + $0x10] sm:$0xff] %v569
  %602 = vst [vmem:[#allocation2 + $0x18] sm:$0xff] %v570
  %603 = vst [vmem:[#allocation2 + $0x20] sm:$0xff] %v571
  %604 = vst [vmem:[#allocation2 + $0x28] sm:$0xff] %v572
  %605 = vst [vmem:[#allocation2 + $0x30] sm:$0xff] %v573
  %606 = vst [vmem:[#allocation2 + $0x38] sm:$0xff] %v574
  %607 = vst [vmem:[#allocation2 + $0x40] sm:$0xff] %v575
  %608 = vst [vmem:[#allocation2 + $0x48] sm:$0xff] %v576
  %609 = vst [vmem:[#allocation2 + $0x50] sm:$0xff] %v577
  %610 = vst [vmem:[#allocation2 + $0x58] sm:$0xff] %v578
  %611 = vst [vmem:[#allocation2 + $0x60] sm:$0xff] %v579
  %612 = vst [vmem:[#allocation2 + $0x68] sm:$0xff] %v580
  %613 = vst [vmem:[#allocation2 + $0x70] sm:$0xff] %v581
  %614 = vst [vmem:[#allocation2 + $0x78] sm:$0xff] %v582
  %615 = vst [vmem:[#allocation2 + $0x80] sm:$0xff] %v583
  %616 = vst [vmem:[#allocation2 + $0x88] sm:$0xff] %v584
  %617 = vst [vmem:[#allocation2 + $0x90] sm:$0xff] %v585
  %618 = vst [vmem:[#allocation2 + $0x98] sm:$0xff] %v586
  %619 = vst [vmem:[#allocation2 + $0xa0] sm:$0xff] %v587
  %620 = vst [vmem:[#allocation2 + $0xa8] sm:$0xff] %v588
  %621 = vst [vmem:[#allocation2 + $0xb0] sm:$0xff] %v589
  %622 = vst [vmem:[#allocation2 + $0xb8] sm:$0xff] %v590
  %623 = vst [vmem:[#allocation2 + $0xc0] sm:$0xff] %v591
  %624 = vst [vmem:[#allocation2 + $0xc8] sm:$0xff] %v592
  %625 = vst [vmem:[#allocation2 + $0xd0] sm:$0xff] %v593
  %626 = vst [vmem:[#allocation2 + $0xd8] sm:$0xff] %v594
  %627 = vst [vmem:[#allocation2 + $0xe0] sm:$0xff] %v595
  %628 = vst [vmem:[#allocation2 + $0xe8] sm:$0xff] %v596
  %629 = vst [vmem:[#allocation2 + $0xf0] sm:$0xff] %v597
  %630 = vst [vmem:[#allocation2 + $0xf8] sm:$0xff] %v598
  // Predicated region
  $region22: #{gnn_policy_forward.5} parent=0 // pred_check
    %p631 = pneg %p18
  $region23: #{gnn_policy_forward.5} parent=0 // pred_check_branch
    %633 = sbr.rel (%p631) target = $region25
  $region24: #{gnn_policy_forward.5} parent=0 // pred_region
    %v634 = vld [vmem:[#allocation2] sm:$0xff]
    %v635 = vld [vmem:[#allocation2 + $0x8] sm:$0xff]
    %v636 = vld [vmem:[#allocation2 + $0x10] sm:$0xff]
    %v637 = vld [vmem:[#allocation2 + $0x18] sm:$0xff]
    %v638 = vld [vmem:[#allocation2 + $0x20] sm:$0xff]
    %v639 = vld [vmem:[#allocation2 + $0x28] sm:$0xff]
    %v640 = vld [vmem:[#allocation2 + $0x30] sm:$0xff]
    %v641 = vld [vmem:[#allocation2 + $0x38] sm:$0xff]
    %v642 = vld [vmem:[#allocation2 + $0x40] sm:$0xff]
    %v643 = vld [vmem:[#allocation2 + $0x48] sm:$0xff]
    %v644 = vld [vmem:[#allocation2 + $0x50] sm:$0xff]
    %v645 = vld [vmem:[#allocation2 + $0x58] sm:$0xff]
    %v646 = vld [vmem:[#allocation2 + $0x60] sm:$0xff]
    %v647 = vld [vmem:[#allocation2 + $0x68] sm:$0xff]
    %v648 = vld [vmem:[#allocation2 + $0x70] sm:$0xff]
    %v649 = vld [vmem:[#allocation2 + $0x78] sm:$0xff]
    %v650 = vld [vmem:[#allocation2 + $0x80] sm:$0xff]
    %v651 = vld [vmem:[#allocation2 + $0x88] sm:$0xff]
    %v652 = vld [vmem:[#allocation2 + $0x90] sm:$0xff]
    %v653 = vld [vmem:[#allocation2 + $0x98] sm:$0xff]
    %v654 = vld [vmem:[#allocation2 + $0xa0] sm:$0xff]
    %v655 = vld [vmem:[#allocation2 + $0xa8] sm:$0xff]
    %v656 = vld [vmem:[#allocation2 + $0xb0] sm:$0xff]
    %v657 = vld [vmem:[#allocation2 + $0xb8] sm:$0xff]
    %v658 = vld [vmem:[#allocation2 + $0xc0] sm:$0xff]
    %v659 = vld [vmem:[#allocation2 + $0xc8] sm:$0xff]
    %v660 = vld [vmem:[#allocation2 + $0xd0] sm:$0xff]
    %v661 = vld [vmem:[#allocation2 + $0xd8] sm:$0xff]
    %v662 = vld [vmem:[#allocation2 + $0xe0] sm:$0xff]
    %v663 = vld [vmem:[#allocation2 + $0xe8] sm:$0xff]
    %v664 = vld [vmem:[#allocation2 + $0xf0] sm:$0xff]
    %v665 = vld [vmem:[#allocation2 + $0xf8] sm:$0xff]
    %v666 = vld [vmem:[%s2] sm:$0x1]
    %v668 = vlaneseq
    %v669 = vshrl.u32 %v668, 7
    %v670 = vsub.s32 0, %v669
    %v671 = vrot.slane %v666, %v670
    %v673 = vadd.f32 %v634, %v671
    %v674 = vadd.f32 %v635, %v671
    %v675 = vadd.f32 %v636, %v671
    %v676 = vadd.f32 %v637, %v671
    %v677 = vadd.f32 %v638, %v671
    %v678 = vadd.f32 %v639, %v671
    %v679 = vadd.f32 %v640, %v671
    %v680 = vadd.f32 %v641, %v671
    %v681 = vadd.f32 %v642, %v671
    %v682 = vadd.f32 %v643, %v671
    %v683 = vadd.f32 %v644, %v671
    %v684 = vadd.f32 %v645, %v671
    %v685 = vadd.f32 %v646, %v671
    %v686 = vadd.f32 %v647, %v671
    %v687 = vadd.f32 %v648, %v671
    %v688 = vadd.f32 %v649, %v671
    %v689 = vadd.f32 %v650, %v671
    %v690 = vadd.f32 %v651, %v671
    %v691 = vadd.f32 %v652, %v671
    %v692 = vadd.f32 %v653, %v671
    %v693 = vadd.f32 %v654, %v671
    %v694 = vadd.f32 %v655, %v671
    %v695 = vadd.f32 %v656, %v671
    %v696 = vadd.f32 %v657, %v671
    %v697 = vadd.f32 %v658, %v671
    %v698 = vadd.f32 %v659, %v671
    %v699 = vadd.f32 %v660, %v671
    %v700 = vadd.f32 %v661, %v671
    %v701 = vadd.f32 %v662, %v671
    %v702 = vadd.f32 %v663, %v671
    %v703 = vadd.f32 %v664, %v671
    %v704 = vadd.f32 %v665, %v671
    %v705 = vmax.f32 %v673, 0.0
    %v706 = vmax.f32 %v674, 0.0
    %v707 = vmax.f32 %v675, 0.0
    %v708 = vmax.f32 %v676, 0.0
    %v709 = vmax.f32 %v677, 0.0
    %v710 = vmax.f32 %v678, 0.0
    %v711 = vmax.f32 %v679, 0.0
    %v712 = vmax.f32 %v680, 0.0
    %v713 = vmax.f32 %v681, 0.0
    %v714 = vmax.f32 %v682, 0.0
    %v715 = vmax.f32 %v683, 0.0
    %v716 = vmax.f32 %v684, 0.0
    %v717 = vmax.f32 %v685, 0.0
    %v718 = vmax.f32 %v686, 0.0
    %v719 = vmax.f32 %v687, 0.0
    %v720 = vmax.f32 %v688, 0.0
    %v721 = vmax.f32 %v689, 0.0
    %v722 = vmax.f32 %v690, 0.0
    %v723 = vmax.f32 %v691, 0.0
    %v724 = vmax.f32 %v692, 0.0
    %v725 = vmax.f32 %v693, 0.0
    %v726 = vmax.f32 %v694, 0.0
    %v727 = vmax.f32 %v695, 0.0
    %v728 = vmax.f32 %v696, 0.0
    %v729 = vmax.f32 %v697, 0.0
    %v730 = vmax.f32 %v698, 0.0
    %v731 = vmax.f32 %v699, 0.0
    %v732 = vmax.f32 %v700, 0.0
    %v733 = vmax.f32 %v701, 0.0
    %v734 = vmax.f32 %v702, 0.0
    %v735 = vmax.f32 %v703, 0.0
    %v736 = vmax.f32 %v704, 0.0
    %v737 = vpack.c.bf16 %v706, %v705
    %v738 = vpack.c.bf16 %v708, %v707
    %v739 = vpack.c.bf16 %v710, %v709
    %v740 = vpack.c.bf16 %v712, %v711
    %v741 = vpack.c.bf16 %v714, %v713
    %v742 = vpack.c.bf16 %v716, %v715
    %v743 = vpack.c.bf16 %v718, %v717
    %v744 = vpack.c.bf16 %v720, %v719
    %v745 = vpack.c.bf16 %v722, %v721
    %v746 = vpack.c.bf16 %v724, %v723
    %v747 = vpack.c.bf16 %v726, %v725
    %v748 = vpack.c.bf16 %v728, %v727
    %v749 = vpack.c.bf16 %v730, %v729
    %v750 = vpack.c.bf16 %v732, %v731
    %v751 = vpack.c.bf16 %v734, %v733
    %v752 = vpack.c.bf16 %v736, %v735
    %v753 = vld [vmem:[%s3] sm:$0xf]
    %v754 = vld [vmem:[%s3 + $0x4] sm:$0xf]
    %v755 = vld [vmem:[%s3 + $0x8] sm:$0xf]
    %v756 = vld [vmem:[%s3 + $0xc] sm:$0xf]
    %v757 = vld [vmem:[%s3 + $0x10] sm:$0xf]
    %v758 = vld [vmem:[%s3 + $0x14] sm:$0xf]
    %v759 = vld [vmem:[%s3 + $0x18] sm:$0xf]
    %v760 = vld [vmem:[%s3 + $0x1c] sm:$0xf]
    %v761 = vld [vmem:[%s3 + $0x20] sm:$0xf]
    %v762 = vld [vmem:[%s3 + $0x24] sm:$0xf]
    %v763 = vld [vmem:[%s3 + $0x28] sm:$0xf]
    %v764 = vld [vmem:[%s3 + $0x2c] sm:$0xf]
    %v765 = vld [vmem:[%s3 + $0x30] sm:$0xf]
    %v766 = vld [vmem:[%s3 + $0x34] sm:$0xf]
    %v767 = vld [vmem:[%s3 + $0x38] sm:$0xf]
    %v768 = vld [vmem:[%s3 + $0x3c] sm:$0xf]
    %v785 = vunpack.c.l.b16 %v753
    %v786 = vunpack.c.l.b16 %v754
    %v787 = vunpack.c.l.b16 %v755
    %v788 = vunpack.c.l.b16 %v756
    %v789 = vunpack.c.l.b16 %v757
    %v790 = vunpack.c.l.b16 %v758
    %v791 = vunpack.c.l.b16 %v759
    %v792 = vunpack.c.l.b16 %v760
    %v793 = vunpack.c.l.b16 %v761
    %v794 = vunpack.c.l.b16 %v762
    %v795 = vunpack.c.l.b16 %v763
    %v796 = vunpack.c.l.b16 %v764
    %v797 = vunpack.c.l.b16 %v765
    %v798 = vunpack.c.l.b16 %v766
    %v799 = vunpack.c.l.b16 %v767
    %v800 = vunpack.c.l.b16 %v768
    %v801 = vpack.c.b16 %v786, %v785
    %v802 = vpack.c.b16 %v788, %v787
    %v803 = vpack.c.b16 %v790, %v789
    %v804 = vpack.c.b16 %v792, %v791
    %v805 = vpack.c.b16 %v794, %v793
    %v806 = vpack.c.b16 %v796, %v795
    %v807 = vpack.c.b16 %v798, %v797
    %v808 = vpack.c.b16 %v800, %v799
    %817 = vmatprep.subr.bf16.mxu0 0
    %818 = vmatpush1.bf16.msra.mxu0 %v801
    %819 = vmatprep.subr.bf16.mxu0 0
    %820 = vmatpush1.bf16.msra.mxu0 %v802
    %821 = vmatprep.subr.bf16.mxu0 0
    %822 = vmatpush1.bf16.msra.mxu0 %v803
    %823 = vmatprep.subr.bf16.mxu0 0
    %824 = vmatpush1.bf16.msra.mxu0 %v804
    %825 = vmatprep.subr.bf16.mxu0 0
    %826 = vmatpush1.bf16.msra.mxu0 %v805
    %827 = vmatprep.subr.bf16.mxu0 0
    %828 = vmatpush1.bf16.msra.mxu0 %v806
    %829 = vmatprep.subr.bf16.mxu0 0
    %830 = vmatpush1.bf16.msra.mxu0 %v807
    %831 = vmatprep.subr.bf16.mxu0 0
    %832 = vmatpush1.bf16.msra.mxu0 %v808
    %833 = vmatprep.subr.bf16.mxu0 0
    %834 = vmatpush1.bf16.msra.mxu0 0
    %835 = vmatprep.subr.bf16.mxu0 0
    %836 = vmatpush1.bf16.msra.mxu0 0
    %837 = vmatprep.subr.bf16.mxu0 0
    %838 = vmatpush1.bf16.msra.mxu0 0
    %839 = vmatprep.subr.bf16.mxu0 0
    %840 = vmatpush1.bf16.msra.mxu0 0
    %841 = vmatprep.subr.bf16.mxu0 0
    %842 = vmatpush1.bf16.msra.mxu0 0
    %843 = vmatprep.subr.bf16.mxu0 0
    %844 = vmatpush1.bf16.msra.mxu0 0
    %845 = vmatprep.subr.bf16.mxu0 0
    %846 = vmatpush1.bf16.msra.mxu0 0
    %847 = vmatprep.subr.bf16.mxu0 0
    %848 = vmatpush1.bf16.msra.mxu0 0
    %849 = vmatprep.mubr.bf16.mxu0 0
    %850 = vmatmul.mubr.bf16.gmra.mrb[0].mxu0 %v737
    %v851 = vpop.f32.mrb[0].mxu0
    %v852 = vadd.f32 0.0, %v851
    %v853 = vpop.f32.mrb[0].mxu0
    %v854 = vpop.f32.mrb[0].mxu0
    %v855 = vadd.f32 0.0, %v854
    %v856 = vpop.f32.mrb[0].mxu0
    %857 = vmatprep.mubr.bf16.mxu0 0
    %858 = vmatmul.mubr.bf16.gmra.mrb[0].mxu0 %v738
    %v859 = vpop.f32.mrb[0].mxu0
    %v860 = vadd.f32 0.0, %v859
    %v861 = vpop.f32.mrb[0].mxu0
    %v862 = vpop.f32.mrb[0].mxu0
    %v863 = vadd.f32 0.0, %v862
    %v864 = vpop.f32.mrb[0].mxu0
    %865 = vmatprep.mubr.bf16.mxu0 0
    %866 = vmatmul.mubr.bf16.gmra.mrb[0].mxu0 %v739
    %v867 = vpop.f32.mrb[0].mxu0
    %v868 = vadd.f32 0.0, %v867
    %v869 = vpop.f32.mrb[0].mxu0
    %v870 = vpop.f32.mrb[0].mxu0
    %v871 = vadd.f32 0.0, %v870
    %v872 = vpop.f32.mrb[0].mxu0
    %873 = vmatprep.mubr.bf16.mxu0 0
    %874 = vmatmul.mubr.bf16.gmra.mrb[0].mxu0 %v740
    %v875 = vpop.f32.mrb[0].mxu0
    %v876 = vadd.f32 0.0, %v875
    %v877 = vpop.f32.mrb[0].mxu0
    %v878 = vpop.f32.mrb[0].mxu0
    %v879 = vadd.f32 0.0, %v878
    %v880 = vpop.f32.mrb[0].mxu0
    %881 = vmatprep.mubr.bf16.mxu0 0
    %882 = vmatmul.mubr.bf16.gmra.mrb[0].mxu0 %v741
    %v883 = vpop.f32.mrb[0].mxu0
    %v884 = vadd.f32 0.0, %v883
    %v885 = vpop.f32.mrb[0].mxu0
    %v886 = vpop.f32.mrb[0].mxu0
    %v887 = vadd.f32 0.0, %v886
    %v888 = vpop.f32.mrb[0].mxu0
    %889 = vmatprep.mubr.bf16.mxu0 0
    %890 = vmatmul.mubr.bf16.gmra.mrb[0].mxu0 %v742
    %v891 = vpop.f32.mrb[0].mxu0
    %v892 = vadd.f32 0.0, %v891
    %v893 = vpop.f32.mrb[0].mxu0
    %v894 = vpop.f32.mrb[0].mxu0
    %v895 = vadd.f32 0.0, %v894
    %v896 = vpop.f32.mrb[0].mxu0
    %897 = vmatprep.mubr.bf16.mxu0 0
    %898 = vmatmul.mubr.bf16.gmra.mrb[0].mxu0 %v743
    %v899 = vpop.f32.mrb[0].mxu0
    %v900 = vadd.f32 0.0, %v899
    %v901 = vpop.f32.mrb[0].mxu0
    %v902 = vpop.f32.mrb[0].mxu0
    %v903 = vadd.f32 0.0, %v902
    %v904 = vpop.f32.mrb[0].mxu0
    %905 = vmatprep.mubr.bf16.mxu0 0
    %906 = vmatmul.mubr.bf16.gmra.mrb[0].mxu0 %v744
    %v907 = vpop.f32.mrb[0].mxu0
    %v908 = vadd.f32 0.0, %v907
    %v909 = vpop.f32.mrb[0].mxu0
    %v910 = vpop.f32.mrb[0].mxu0
    %v911 = vadd.f32 0.0, %v910
    %v912 = vpop.f32.mrb[0].mxu0
    %913 = vmatprep.mubr.bf16.mxu0 0
    %914 = vmatmul.mubr.bf16.gmra.mrb[0].mxu0 %v745
    %v915 = vpop.f32.mrb[0].mxu0
    %v916 = vadd.f32 0.0, %v915
    %v917 = vpop.f32.mrb[0].mxu0
    %v918 = vpop.f32.mrb[0].mxu0
    %v919 = vadd.f32 0.0, %v918
    %v920 = vpop.f32.mrb[0].mxu0
    %921 = vmatprep.mubr.bf16.mxu0 0
    %922 = vmatmul.mubr.bf16.gmra.mrb[0].mxu0 %v746
    %v923 = vpop.f32.mrb[0].mxu0
    %v924 = vadd.f32 0.0, %v923
    %v925 = vpop.f32.mrb[0].mxu0
    %v926 = vpop.f32.mrb[0].mxu0
    %v927 = vadd.f32 0.0, %v926
    %v928 = vpop.f32.mrb[0].mxu0
    %929 = vmatprep.mubr.bf16.mxu0 0
    %930 = vmatmul.mubr.bf16.gmra.mrb[0].mxu0 %v747
    %v931 = vpop.f32.mrb[0].mxu0
    %v932 = vadd.f32 0.0, %v931
    %v933 = vpop.f32.mrb[0].mxu0
    %v934 = vpop.f32.mrb[0].mxu0
    %v935 = vadd.f32 0.0, %v934
    %v936 = vpop.f32.mrb[0].mxu0
    %937 = vmatprep.mubr.bf16.mxu0 0
    %938 = vmatmul.mubr.bf16.gmra.mrb[0].mxu0 %v748
    %v939 = vpop.f32.mrb[0].mxu0
    %v940 = vadd.f32 0.0, %v939
    %v941 = vpop.f32.mrb[0].mxu0
    %v942 = vpop.f32.mrb[0].mxu0
    %v943 = vadd.f32 0.0, %v942
    %v944 = vpop.f32.mrb[0].mxu0
    %945 = vmatprep.mubr.bf16.mxu0 0
    %946 = vmatmul.mubr.bf16.gmra.mrb[0].mxu0 %v749
    %v947 = vpop.f32.mrb[0].mxu0
    %v948 = vadd.f32 0.0, %v947
    %v949 = vpop.f32.mrb[0].mxu0
    %v950 = vpop.f32.mrb[0].mxu0
    %v951 = vadd.f32 0.0, %v950
    %v952 = vpop.f32.mrb[0].mxu0
    %953 = vmatprep.mubr.bf16.mxu0 0
    %954 = vmatmul.mubr.bf16.gmra.mrb[0].mxu0 %v750
    %v955 = vpop.f32.mrb[0].mxu0
    %v956 = vadd.f32 0.0, %v955
    %v957 = vpop.f32.mrb[0].mxu0
    %v958 = vpop.f32.mrb[0].mxu0
    %v959 = vadd.f32 0.0, %v958
    %v960 = vpop.f32.mrb[0].mxu0
    %961 = vmatprep.mubr.bf16.mxu0 0
    %962 = vmatmul.mubr.bf16.gmra.mrb[0].mxu0 %v751
    %v963 = vpop.f32.mrb[0].mxu0
    %v964 = vadd.f32 0.0, %v963
    %v965 = vpop.f32.mrb[0].mxu0
    %v966 = vpop.f32.mrb[0].mxu0
    %v967 = vadd.f32 0.0, %v966
    %v968 = vpop.f32.mrb[0].mxu0
    %969 = vmatprep.mubr.bf16.mxu0 0
    %970 = vmatmul.mubr.bf16.gmra.mrb[0].mxu0 %v752
    %v971 = vpop.f32.mrb[0].mxu0
    %v972 = vadd.f32 0.0, %v971
    %v973 = vpop.f32.mrb[0].mxu0
    %v974 = vpop.f32.mrb[0].mxu0
    %v975 = vadd.f32 0.0, %v974
    %v976 = vpop.f32.mrb[0].mxu0
    %977 = vdwg.mxu0
    %v978 = vpack.c.bf16 %v855, %v852
    %v979 = vpack.c.bf16 %v863, %v860
    %v980 = vpack.c.bf16 %v871, %v868
    %v981 = vpack.c.bf16 %v879, %v876
    %v982 = vpack.c.bf16 %v887, %v884
    %v983 = vpack.c.bf16 %v895, %v892
    %v984 = vpack.c.bf16 %v903, %v900
    %v985 = vpack.c.bf16 %v911, %v908
    %v986 = vpack.c.bf16 %v919, %v916
    %v987 = vpack.c.bf16 %v927, %v924
    %v988 = vpack.c.bf16 %v935, %v932
    %v989 = vpack.c.bf16 %v943, %v940
    %v990 = vpack.c.bf16 %v951, %v948
    %v991 = vpack.c.bf16 %v959, %v956
    %v992 = vpack.c.bf16 %v967, %v964
    %v993 = vpack.c.bf16 %v975, %v972
    %v1010 = vunpack.c.l.b16 %v978
    %v1011 = vunpack.c.h.b16 %v978
    %v1012 = vunpack.c.l.b16 %v979
    %v1013 = vunpack.c.h.b16 %v979
    %v1014 = vunpack.c.l.b16 %v980
    %v1015 = vunpack.c.h.b16 %v980
    %v1016 = vunpack.c.l.b16 %v981
    %v1017 = vunpack.c.h.b16 %v981
    %v1018 = vunpack.c.l.b16 %v982
    %v1019 = vunpack.c.h.b16 %v982
    %v1020 = vunpack.c.l.b16 %v983
    %v1021 = vunpack.c.h.b16 %v983
    %v1022 = vunpack.c.l.b16 %v984
    %v1023 = vunpack.c.h.b16 %v984
    %v1024 = vunpack.c.l.b16 %v985
    %v1025 = vunpack.c.h.b16 %v985
    %v1026 = vunpack.c.l.b16 %v986
    %v1027 = vunpack.c.h.b16 %v986
    %v1028 = vunpack.c.l.b16 %v987
    %v1029 = vunpack.c.h.b16 %v987
    %v1030 = vunpack.c.l.b16 %v988
    %v1031 = vunpack.c.h.b16 %v988
    %v1032 = vunpack.c.l.b16 %v989
    %v1033 = vunpack.c.h.b16 %v989
    %v1034 = vunpack.c.l.b16 %v990
    %v1035 = vunpack.c.h.b16 %v990
    %v1036 = vunpack.c.l.b16 %v991
    %v1037 = vunpack.c.h.b16 %v991
    %v1038 = vunpack.c.l.b16 %v992
    %v1039 = vunpack.c.h.b16 %v992
    %v1040 = vunpack.c.l.b16 %v993
    %v1041 = vunpack.c.h.b16 %v993
    %v1042 = vpack.c.b16 %v1010, %v1010
    %v1043 = vpack.c.b16 %v1011, %v1011
    %v1044 = vpack.c.b16 %v1012, %v1012
    %v1045 = vpack.c.b16 %v1013, %v1013
    %v1046 = vpack.c.b16 %v1014, %v1014
    %v1047 = vpack.c.b16 %v1015, %v1015
    %v1048 = vpack.c.b16 %v1016, %v1016
    %v1049 = vpack.c.b16 %v1017, %v1017
    %v1050 = vpack.c.b16 %v1018, %v1018
    %v1051 = vpack.c.b16 %v1019, %v1019
    %v1052 = vpack.c.b16 %v1020, %v1020
    %v1053 = vpack.c.b16 %v1021, %v1021
    %v1054 = vpack.c.b16 %v1022, %v1022
    %v1055 = vpack.c.b16 %v1023, %v1023
    %v1056 = vpack.c.b16 %v1024, %v1024
    %v1057 = vpack.c.b16 %v1025, %v1025
    %v1058 = vpack.c.b16 %v1026, %v1026
    %v1059 = vpack.c.b16 %v1027, %v1027
    %v1060 = vpack.c.b16 %v1028, %v1028
    %v1061 = vpack.c.b16 %v1029, %v1029
    %v1062 = vpack.c.b16 %v1030, %v1030
    %v1063 = vpack.c.b16 %v1031, %v1031
    %v1064 = vpack.c.b16 %v1032, %v1032
    %v1065 = vpack.c.b16 %v1033, %v1033
    %v1066 = vpack.c.b16 %v1034, %v1034
    %v1067 = vpack.c.b16 %v1035, %v1035
    %v1068 = vpack.c.b16 %v1036, %v1036
    %v1069 = vpack.c.b16 %v1037, %v1037
    %v1070 = vpack.c.b16 %v1038, %v1038
    %v1071 = vpack.c.b16 %v1039, %v1039
    %v1072 = vpack.c.b16 %v1040, %v1040
    %v1073 = vpack.c.b16 %v1041, %v1041
    %1106 = vst [vmem:[%s4] sm:$0xf] %v1042
    %1107 = vst [vmem:[%s4 + $0x4] sm:$0xf] %v1043
    %1108 = vst [vmem:[%s4 + $0x8] sm:$0xf] %v1044
    %1109 = vst [vmem:[%s4 + $0xc] sm:$0xf] %v1045
    %1110 = vst [vmem:[%s4 + $0x10] sm:$0xf] %v1046
    %1111 = vst [vmem:[%s4 + $0x14] sm:$0xf] %v1047
    %1112 = vst [vmem:[%s4 + $0x18] sm:$0xf] %v1048
    %1113 = vst [vmem:[%s4 + $0x1c] sm:$0xf] %v1049
    %1114 = vst [vmem:[%s4 + $0x20] sm:$0xf] %v1050
    %1115 = vst [vmem:[%s4 + $0x24] sm:$0xf] %v1051
    %1116 = vst [vmem:[%s4 + $0x28] sm:$0xf] %v1052
    %1117 = vst [vmem:[%s4 + $0x2c] sm:$0xf] %v1053
    %1118 = vst [vmem:[%s4 + $0x30] sm:$0xf] %v1054
    %1119 = vst [vmem:[%s4 + $0x34] sm:$0xf] %v1055
    %1120 = vst [vmem:[%s4 + $0x38] sm:$0xf] %v1056
    %1121 = vst [vmem:[%s4 + $0x3c] sm:$0xf] %v1057
    %1122 = vst [vmem:[%s4 + $0x40] sm:$0xf] %v1058
    %1123 = vst [vmem:[%s4 + $0x44] sm:$0xf] %v1059
    %1124 = vst [vmem:[%s4 + $0x48] sm:$0xf] %v1060
    %1125 = vst [vmem:[%s4 + $0x4c] sm:$0xf] %v1061
    %1126 = vst [vmem:[%s4 + $0x50] sm:$0xf] %v1062
    %1127 = vst [vmem:[%s4 + $0x54] sm:$0xf] %v1063
    %1128 = vst [vmem:[%s4 + $0x58] sm:$0xf] %v1064
    %1129 = vst [vmem:[%s4 + $0x5c] sm:$0xf] %v1065
    %1130 = vst [vmem:[%s4 + $0x60] sm:$0xf] %v1066
    %1131 = vst [vmem:[%s4 + $0x64] sm:$0xf] %v1067
    %1132 = vst [vmem:[%s4 + $0x68] sm:$0xf] %v1068
    %1133 = vst [vmem:[%s4 + $0x6c] sm:$0xf] %v1069
    %1134 = vst [vmem:[%s4 + $0x70] sm:$0xf] %v1070
    %1135 = vst [vmem:[%s4 + $0x74] sm:$0xf] %v1071
    %1136 = vst [vmem:[%s4 + $0x78] sm:$0xf] %v1072
    %1137 = vst [vmem:[%s4 + $0x7c] sm:$0xf] %v1073
  $region25: #{gnn_policy_forward.5} parent=0 // pred_fallthru
    _
  // Predicated region
  $region26: #{gnn_policy_forward.5} parent=0 // pred_check
    _
  $region27: #{gnn_policy_forward.5} parent=0 // pred_check_branch
    %1139 = sbr.rel (0) target = $region29
  $region28: #{gnn_policy_forward.5} parent=0 // pred_region
    _
  $region29: #{gnn_policy_forward.5} parent=0 // pred_fallthru
    _
  // Predicated region
  $region30: #{gnn_policy_forward.5} parent=0 // pred_check
    _
  $region31: #{gnn_policy_forward.5} parent=0 // pred_check_branch
    %1141 = sbr.rel (0) target = $region33
  $region32: #{gnn_policy_forward.5} parent=0 // pred_region
    _
  $region33: #{gnn_policy_forward.5} parent=0 // pred_fallthru
    _

// kernel: gnn_policy_forward.6
$region0: #{gnn_policy_forward.6}
  #allocation0 [shape = 'u32[]', space=smem, size = 0x4, offset = 0x4, fixed_abs, tag = 'smem constant byte address 0x4 - core index']
  #allocation1 [shape = 'u32[144,128]{1,0:T(1,128)}', space=vmem, size = 0x12000, scoped, tag = 'internal scratch']
  #allocation2 [shape = 'f32[256,128]{1,0:T(8,128)}', space=vmem, size = 0x20000, scoped, tag = 'scratch operand']
  %s0 = inlined_call_operand.vmem [shape: bf16[256,256], index: 0, kind: input, shape index: {}]
  %s1 = inlined_call_operand.vmem [shape: bf16[256,128], index: 1, kind: input, shape index: {}]
  %s2 = inlined_call_operand.vmem [shape: f32[1,128], index: 2, kind: input, shape index: {}]
  %s3 = inlined_call_operand.vmem [shape: bf16[128,256], index: 3, kind: input, shape index: {}]
  %s4 = inlined_call_operand.vmem [shape: bf16[256,256], index: 4, kind: output, shape index: {}]
  %s5 = sld [smem:[#allocation0]]
  $region34: #{gnn_policy_forward.6} parent=0
    _
  %s7 = ssub.s32 1, %s5
  %s8 = scalar_select 0, %s7, %s5
  // Predicated region
  $region2: #{gnn_policy_forward.6} parent=0 // pred_check
    _
  $region3: #{gnn_policy_forward.6} parent=0 // pred_check_branch
    %10 = sbr.rel (0) target = $region5
  $region4: #{gnn_policy_forward.6} parent=0 // pred_region
    _
  $region5: #{gnn_policy_forward.6} parent=0 // pred_fallthru
    _
  // Predicated region
  $region6: #{gnn_policy_forward.6} parent=0 // pred_check
    _
  $region7: #{gnn_policy_forward.6} parent=0 // pred_check_branch
    %12 = sbr.rel (0) target = $region9
  $region8: #{gnn_policy_forward.6} parent=0 // pred_region
    _
  $region9: #{gnn_policy_forward.6} parent=0 // pred_fallthru
    _
  // Predicated region
  $region10: #{gnn_policy_forward.6} parent=0 // pred_check
    _
  $region11: #{gnn_policy_forward.6} parent=0 // pred_check_branch
    %14 = sbr.rel (0) target = $region13
  $region12: #{gnn_policy_forward.6} parent=0 // pred_region
    _
  $region13: #{gnn_policy_forward.6} parent=0 // pred_fallthru
    _
  // Predicated region
  $region14: #{gnn_policy_forward.6} parent=0 // pred_check
    _
  $region15: #{gnn_policy_forward.6} parent=0 // pred_check_branch
    %16 = sbr.rel (0) target = $region17
  $region16: #{gnn_policy_forward.6} parent=0 // pred_region
    _
  $region17: #{gnn_policy_forward.6} parent=0 // pred_fallthru
    _
  %p18 = scmp.eq.s32.totalorder 0, 0
  // Predicated region
  $region18: #{gnn_policy_forward.6} parent=0 // pred_check
    %p19 = pneg %p18
  $region19: #{gnn_policy_forward.6} parent=0 // pred_check_branch
    %21 = sbr.rel (%p19) target = $region21
  $region20: #{gnn_policy_forward.6} parent=0 // pred_region
    %22 = vst [vmem:[#allocation2] sm:$0xff] 0.0
    %23 = vst [vmem:[#allocation2 + $0x8] sm:$0xff] 0.0
    %24 = vst [vmem:[#allocation2 + $0x10] sm:$0xff] 0.0
    %25 = vst [vmem:[#allocation2 + $0x18] sm:$0xff] 0.0
    %26 = vst [vmem:[#allocation2 + $0x20] sm:$0xff] 0.0
    %27 = vst [vmem:[#allocation2 + $0x28] sm:$0xff] 0.0
    %28 = vst [vmem:[#allocation2 + $0x30] sm:$0xff] 0.0
    %29 = vst [vmem:[#allocation2 + $0x38] sm:$0xff] 0.0
    %30 = vst [vmem:[#allocation2 + $0x40] sm:$0xff] 0.0
    %31 = vst [vmem:[#allocation2 + $0x48] sm:$0xff] 0.0
    %32 = vst [vmem:[#allocation2 + $0x50] sm:$0xff] 0.0
    %33 = vst [vmem:[#allocation2 + $0x58] sm:$0xff] 0.0
    %34 = vst [vmem:[#allocation2 + $0x60] sm:$0xff] 0.0
    %35 = vst [vmem:[#allocation2 + $0x68] sm:$0xff] 0.0
    %36 = vst [vmem:[#allocation2 + $0x70] sm:$0xff] 0.0
    %37 = vst [vmem:[#allocation2 + $0x78] sm:$0xff] 0.0
    %38 = vst [vmem:[#allocation2 + $0x80] sm:$0xff] 0.0
    %39 = vst [vmem:[#allocation2 + $0x88] sm:$0xff] 0.0
    %40 = vst [vmem:[#allocation2 + $0x90] sm:$0xff] 0.0
    %41 = vst [vmem:[#allocation2 + $0x98] sm:$0xff] 0.0
    %42 = vst [vmem:[#allocation2 + $0xa0] sm:$0xff] 0.0
    %43 = vst [vmem:[#allocation2 + $0xa8] sm:$0xff] 0.0
    %44 = vst [vmem:[#allocation2 + $0xb0] sm:$0xff] 0.0
    %45 = vst [vmem:[#allocation2 + $0xb8] sm:$0xff] 0.0
    %46 = vst [vmem:[#allocation2 + $0xc0] sm:$0xff] 0.0
    %47 = vst [vmem:[#allocation2 + $0xc8] sm:$0xff] 0.0
    %48 = vst [vmem:[#allocation2 + $0xd0] sm:$0xff] 0.0
    %49 = vst [vmem:[#allocation2 + $0xd8] sm:$0xff] 0.0
    %50 = vst [vmem:[#allocation2 + $0xe0] sm:$0xff] 0.0
    %51 = vst [vmem:[#allocation2 + $0xe8] sm:$0xff] 0.0
    %52 = vst [vmem:[#allocation2 + $0xf0] sm:$0xff] 0.0
    %53 = vst [vmem:[#allocation2 + $0xf8] sm:$0xff] 0.0
  $region21: #{gnn_policy_forward.6} parent=0 // pred_fallthru
    _
  %v54 = vld [vmem:[#allocation2] sm:$0xff]
  %v55 = vld [vmem:[#allocation2 + $0x8] sm:$0xff]
  %v56 = vld [vmem:[#allocation2 + $0x10] sm:$0xff]
  %v57 = vld [vmem:[#allocation2 + $0x18] sm:$0xff]
  %v58 = vld [vmem:[#allocation2 + $0x20] sm:$0xff]
  %v59 = vld [vmem:[#allocation2 + $0x28] sm:$0xff]
  %v60 = vld [vmem:[#allocation2 + $0x30] sm:$0xff]
  %v61 = vld [vmem:[#allocation2 + $0x38] sm:$0xff]
  %v62 = vld [vmem:[#allocation2 + $0x40] sm:$0xff]
  %v63 = vld [vmem:[#allocation2 + $0x48] sm:$0xff]
  %v64 = vld [vmem:[#allocation2 + $0x50] sm:$0xff]
  %v65 = vld [vmem:[#allocation2 + $0x58] sm:$0xff]
  %v66 = vld [vmem:[#allocation2 + $0x60] sm:$0xff]
  %v67 = vld [vmem:[#allocation2 + $0x68] sm:$0xff]
  %v68 = vld [vmem:[#allocation2 + $0x70] sm:$0xff]
  %v69 = vld [vmem:[#allocation2 + $0x78] sm:$0xff]
  %v70 = vld [vmem:[#allocation2 + $0x80] sm:$0xff]
  %v71 = vld [vmem:[#allocation2 + $0x88] sm:$0xff]
  %v72 = vld [vmem:[#allocation2 + $0x90] sm:$0xff]
  %v73 = vld [vmem:[#allocation2 + $0x98] sm:$0xff]
  %v74 = vld [vmem:[#allocation2 + $0xa0] sm:$0xff]
  %v75 = vld [vmem:[#allocation2 + $0xa8] sm:$0xff]
  %v76 = vld [vmem:[#allocation2 + $0xb0] sm:$0xff]
  %v77 = vld [vmem:[#allocation2 + $0xb8] sm:$0xff]
  %v78 = vld [vmem:[#allocation2 + $0xc0] sm:$0xff]
  %v79 = vld [vmem:[#allocation2 + $0xc8] sm:$0xff]
  %v80 = vld [vmem:[#allocation2 + $0xd0] sm:$0xff]
  %v81 = vld [vmem:[#allocation2 + $0xd8] sm:$0xff]
  %v82 = vld [vmem:[#allocation2 + $0xe0] sm:$0xff]
  %v83 = vld [vmem:[#allocation2 + $0xe8] sm:$0xff]
  %v84 = vld [vmem:[#allocation2 + $0xf0] sm:$0xff]
  %v85 = vld [vmem:[#allocation2 + $0xf8] sm:$0xff]
  %v86 = vld [vmem:[%s0] sm:$0xff]
  %v87 = vld [vmem:[%s0 + $0x8] sm:$0xff]
  %v88 = vld [vmem:[%s0 + $0x10] sm:$0xff]
  %v89 = vld [vmem:[%s0 + $0x18] sm:$0xff]
  %v90 = vld [vmem:[%s0 + $0x20] sm:$0xff]
  %v91 = vld [vmem:[%s0 + $0x28] sm:$0xff]
  %v92 = vld [vmem:[%s0 + $0x30] sm:$0xff]
  %v93 = vld [vmem:[%s0 + $0x38] sm:$0xff]
  %v94 = vld [vmem:[%s0 + $0x40] sm:$0xff]
  %v95 = vld [vmem:[%s0 + $0x48] sm:$0xff]
  %v96 = vld [vmem:[%s0 + $0x50] sm:$0xff]
  %v97 = vld [vmem:[%s0 + $0x58] sm:$0xff]
  %v98 = vld [vmem:[%s0 + $0x60] sm:$0xff]
  %v99 = vld [vmem:[%s0 + $0x68] sm:$0xff]
  %v100 = vld [vmem:[%s0 + $0x70] sm:$0xff]
  %v101 = vld [vmem:[%s0 + $0x78] sm:$0xff]
  %v102 = vld [vmem:[%s0 + $0x80] sm:$0xff]
  %v103 = vld [vmem:[%s0 + $0x88] sm:$0xff]
  %v104 = vld [vmem:[%s0 + $0x90] sm:$0xff]
  %v105 = vld [vmem:[%s0 + $0x98] sm:$0xff]
  %v106 = vld [vmem:[%s0 + $0xa0] sm:$0xff]
  %v107 = vld [vmem:[%s0 + $0xa8] sm:$0xff]
  %v108 = vld [vmem:[%s0 + $0xb0] sm:$0xff]
  %v109 = vld [vmem:[%s0 + $0xb8] sm:$0xff]
  %v110 = vld [vmem:[%s0 + $0xc0] sm:$0xff]
  %v111 = vld [vmem:[%s0 + $0xc8] sm:$0xff]
  %v112 = vld [vmem:[%s0 + $0xd0] sm:$0xff]
  %v113 = vld [vmem:[%s0 + $0xd8] sm:$0xff]
  %v114 = vld [vmem:[%s0 + $0xe0] sm:$0xff]
  %v115 = vld [vmem:[%s0 + $0xe8] sm:$0xff]
  %v116 = vld [vmem:[%s0 + $0xf0] sm:$0xff]
  %v117 = vld [vmem:[%s0 + $0xf8] sm:$0xff]
  %v118 = vld [vmem:[%s1] sm:$0xf]
  %v119 = vld [vmem:[%s1 + $0x4] sm:$0xf]
  %v120 = vld [vmem:[%s1 + $0x8] sm:$0xf]
  %v121 = vld [vmem:[%s1 + $0xc] sm:$0xf]
  %v122 = vld [vmem:[%s1 + $0x10] sm:$0xf]
  %v123 = vld [vmem:[%s1 + $0x14] sm:$0xf]
  %v124 = vld [vmem:[%s1 + $0x18] sm:$0xf]
  %v125 = vld [vmem:[%s1 + $0x1c] sm:$0xf]
  %v126 = vld [vmem:[%s1 + $0x20] sm:$0xf]
  %v127 = vld [vmem:[%s1 + $0x24] sm:$0xf]
  %v128 = vld [vmem:[%s1 + $0x28] sm:$0xf]
  %v129 = vld [vmem:[%s1 + $0x2c] sm:$0xf]
  %v130 = vld [vmem:[%s1 + $0x30] sm:$0xf]
  %v131 = vld [vmem:[%s1 + $0x34] sm:$0xf]
  %v132 = vld [vmem:[%s1 + $0x38] sm:$0xf]
  %v133 = vld [vmem:[%s1 + $0x3c] sm:$0xf]
  %v134 = vld [vmem:[%s1 + $0x40] sm:$0xf]
  %v135 = vld [vmem:[%s1 + $0x44] sm:$0xf]
  %v136 = vld [vmem:[%s1 + $0x48] sm:$0xf]
  %v137 = vld [vmem:[%s1 + $0x4c] sm:$0xf]
  %v138 = vld [vmem:[%s1 + $0x50] sm:$0xf]
  %v139 = vld [vmem:[%s1 + $0x54] sm:$0xf]
  %v140 = vld [vmem:[%s1 + $0x58] sm:$0xf]
  %v141 = vld [vmem:[%s1 + $0x5c] sm:$0xf]
  %v142 = vld [vmem:[%s1 + $0x60] sm:$0xf]
  %v143 = vld [vmem:[%s1 + $0x64] sm:$0xf]
  %v144 = vld [vmem:[%s1 + $0x68] sm:$0xf]
  %v145 = vld [vmem:[%s1 + $0x6c] sm:$0xf]
  %v146 = vld [vmem:[%s1 + $0x70] sm:$0xf]
  %v147 = vld [vmem:[%s1 + $0x74] sm:$0xf]
  %v148 = vld [vmem:[%s1 + $0x78] sm:$0xf]
  %v149 = vld [vmem:[%s1 + $0x7c] sm:$0xf]
  %v182 = vunpack.c.l.b16 %v86
  %v183 = vunpack.c.h.b16 %v86
  %v184 = vunpack.c.l.b16 %v87
  %v185 = vunpack.c.h.b16 %v87
  %v186 = vunpack.c.l.b16 %v88
  %v187 = vunpack.c.h.b16 %v88
  %v188 = vunpack.c.l.b16 %v89
  %v189 = vunpack.c.h.b16 %v89
  %v190 = vunpack.c.l.b16 %v90
  %v191 = vunpack.c.h.b16 %v90
  %v192 = vunpack.c.l.b16 %v91
  %v193 = vunpack.c.h.b16 %v91
  %v194 = vunpack.c.l.b16 %v92
  %v195 = vunpack.c.h.b16 %v92
  %v196 = vunpack.c.l.b16 %v93
  %v197 = vunpack.c.h.b16 %v93
  %v198 = vunpack.c.l.b16 %v94
  %v199 = vunpack.c.h.b16 %v94
  %v200 = vunpack.c.l.b16 %v95
  %v201 = vunpack.c.h.b16 %v95
  %v202 = vunpack.c.l.b16 %v96
  %v203 = vunpack.c.h.b16 %v96
  %v204 = vunpack.c.l.b16 %v97
  %v205 = vunpack.c.h.b16 %v97
  %v206 = vunpack.c.l.b16 %v98
  %v207 = vunpack.c.h.b16 %v98
  %v208 = vunpack.c.l.b16 %v99
  %v209 = vunpack.c.h.b16 %v99
  %v210 = vunpack.c.l.b16 %v100
  %v211 = vunpack.c.h.b16 %v100
  %v212 = vunpack.c.l.b16 %v101
  %v213 = vunpack.c.h.b16 %v101
  %v214 = vunpack.c.l.b16 %v102
  %v215 = vunpack.c.h.b16 %v102
  %v216 = vunpack.c.l.b16 %v103
  %v217 = vunpack.c.h.b16 %v103
  %v218 = vunpack.c.l.b16 %v104
  %v219 = vunpack.c.h.b16 %v104
  %v220 = vunpack.c.l.b16 %v105
  %v221 = vunpack.c.h.b16 %v105
  %v222 = vunpack.c.l.b16 %v106
  %v223 = vunpack.c.h.b16 %v106
  %v224 = vunpack.c.l.b16 %v107
  %v225 = vunpack.c.h.b16 %v107
  %v226 = vunpack.c.l.b16 %v108
  %v227 = vunpack.c.h.b16 %v108
  %v228 = vunpack.c.l.b16 %v109
  %v229 = vunpack.c.h.b16 %v109
  %v230 = vunpack.c.l.b16 %v110
  %v231 = vunpack.c.h.b16 %v110
  %v232 = vunpack.c.l.b16 %v111
  %v233 = vunpack.c.h.b16 %v111
  %v234 = vunpack.c.l.b16 %v112
  %v235 = vunpack.c.h.b16 %v112
  %v236 = vunpack.c.l.b16 %v113
  %v237 = vunpack.c.h.b16 %v113
  %v238 = vunpack.c.l.b16 %v114
  %v239 = vunpack.c.h.b16 %v114
  %v240 = vunpack.c.l.b16 %v115
  %v241 = vunpack.c.h.b16 %v115
  %v242 = vunpack.c.l.b16 %v116
  %v243 = vunpack.c.h.b16 %v116
  %v244 = vunpack.c.l.b16 %v117
  %v245 = vunpack.c.h.b16 %v117
  %v246 = vpack.c.b16 %v184, %v182
  %v247 = vpack.c.b16 %v185, %v183
  %v248 = vpack.c.b16 %v188, %v186
  %v249 = vpack.c.b16 %v189, %v187
  %v250 = vpack.c.b16 %v192, %v190
  %v251 = vpack.c.b16 %v193, %v191
  %v252 = vpack.c.b16 %v196, %v194
  %v253 = vpack.c.b16 %v197, %v195
  %v254 = vpack.c.b16 %v200, %v198
  %v255 = vpack.c.b16 %v201, %v199
  %v256 = vpack.c.b16 %v204, %v202
  %v257 = vpack.c.b16 %v205, %v203
  %v258 = vpack.c.b16 %v208, %v206
  %v259 = vpack.c.b16 %v209, %v207
  %v260 = vpack.c.b16 %v212, %v210
  %v261 = vpack.c.b16 %v213, %v211
  %v262 = vpack.c.b16 %v216, %v214
  %v263 = vpack.c.b16 %v217, %v215
  %v264 = vpack.c.b16 %v220, %v218
  %v265 = vpack.c.b16 %v221, %v219
  %v266 = vpack.c.b16 %v224, %v222
  %v267 = vpack.c.b16 %v225, %v223
  %v268 = vpack.c.b16 %v228, %v226
  %v269 = vpack.c.b16 %v229, %v227
  %v270 = vpack.c.b16 %v232, %v230
  %v271 = vpack.c.b16 %v233, %v231
  %v272 = vpack.c.b16 %v236, %v234
  %v273 = vpack.c.b16 %v237, %v235
  %v274 = vpack.c.b16 %v240, %v238
  %v275 = vpack.c.b16 %v241, %v239
  %v276 = vpack.c.b16 %v244, %v242
  %v277 = vpack.c.b16 %v245, %v243
  %v342 = vunpack.c.l.b16 %v118
  %v343 = vunpack.c.l.b16 %v119
  %v344 = vunpack.c.l.b16 %v120
  %v345 = vunpack.c.l.b16 %v121
  %v346 = vunpack.c.l.b16 %v122
  %v347 = vunpack.c.l.b16 %v123
  %v348 = vunpack.c.l.b16 %v124
  %v349 = vunpack.c.l.b16 %v125
  %v350 = vunpack.c.l.b16 %v126
  %v351 = vunpack.c.l.b16 %v127
  %v352 = vunpack.c.l.b16 %v128
  %v353 = vunpack.c.l.b16 %v129
  %v354 = vunpack.c.l.b16 %v130
  %v355 = vunpack.c.l.b16 %v131
  %v356 = vunpack.c.l.b16 %v132
  %v357 = vunpack.c.l.b16 %v133
  %v358 = vunpack.c.l.b16 %v134
  %v359 = vunpack.c.l.b16 %v135
  %v360 = vunpack.c.l.b16 %v136
  %v361 = vunpack.c.l.b16 %v137
  %v362 = vunpack.c.l.b16 %v138
  %v363 = vunpack.c.l.b16 %v139
  %v364 = vunpack.c.l.b16 %v140
  %v365 = vunpack.c.l.b16 %v141
  %v366 = vunpack.c.l.b16 %v142
  %v367 = vunpack.c.l.b16 %v143
  %v368 = vunpack.c.l.b16 %v144
  %v369 = vunpack.c.l.b16 %v145
  %v370 = vunpack.c.l.b16 %v146
  %v371 = vunpack.c.l.b16 %v147
  %v372 = vunpack.c.l.b16 %v148
  %v373 = vunpack.c.l.b16 %v149
  %v374 = vpack.c.b16 %v343, %v342
  %v375 = vpack.c.b16 %v345, %v344
  %v376 = vpack.c.b16 %v347, %v346
  %v377 = vpack.c.b16 %v349, %v348
  %v378 = vpack.c.b16 %v351, %v350
  %v379 = vpack.c.b16 %v353, %v352
  %v380 = vpack.c.b16 %v355, %v354
  %v381 = vpack.c.b16 %v357, %v356
  %v382 = vpack.c.b16 %v359, %v358
  %v383 = vpack.c.b16 %v361, %v360
  %v384 = vpack.c.b16 %v363, %v362
  %v385 = vpack.c.b16 %v365, %v364
  %v386 = vpack.c.b16 %v367, %v366
  %v387 = vpack.c.b16 %v369, %v368
  %v388 = vpack.c.b16 %v371, %v370
  %v389 = vpack.c.b16 %v373, %v372
  %406 = vmatprep.subr.bf16.mxu0 0
  %407 = vmatpush1.bf16.msra.mxu0 %v374
  %408 = vmatprep.subr.bf16.mxu0 0
  %409 = vmatpush1.bf16.msra.mxu0 %v375
  %410 = vmatprep.subr.bf16.mxu0 0
  %411 = vmatpush1.bf16.msra.mxu0 %v376
  %412 = vmatprep.subr.bf16.mxu0 0
  %413 = vmatpush1.bf16.msra.mxu0 %v377
  %414 = vmatprep.subr.bf16.mxu0 0
  %415 = vmatpush1.bf16.msra.mxu0 %v378
  %416 = vmatprep.subr.bf16.mxu0 0
  %417 = vmatpush1.bf16.msra.mxu0 %v379
  %418 = vmatprep.subr.bf16.mxu0 0
  %419 = vmatpush1.bf16.msra.mxu0 %v380
  %420 = vmatprep.subr.bf16.mxu0 0
  %421 = vmatpush1.bf16.msra.mxu0 %v381
  %422 = vmatprep.subr.bf16.mxu0 0
  %423 = vmatpush1.bf16.msra.mxu0 %v382
  %424 = vmatprep.subr.bf16.mxu0 0
  %425 = vmatpush1.bf16.msra.mxu0 %v383
  %426 = vmatprep.subr.bf16.mxu0 0
  %427 = vmatpush1.bf16.msra.mxu0 %v384
  %428 = vmatprep.subr.bf16.mxu0 0
  %429 = vmatpush1.bf16.msra.mxu0 %v385
  %430 = vmatprep.subr.bf16.mxu0 0
  %431 = vmatpush1.bf16.msra.mxu0 %v386
  %432 = vmatprep.subr.bf16.mxu0 0
  %433 = vmatpush1.bf16.msra.mxu0 %v387
  %434 = vmatprep.subr.bf16.mxu0 0
  %435 = vmatpush1.bf16.msra.mxu0 %v388
  %436 = vmatprep.subr.bf16.mxu0 0
  %437 = vmatpush1.bf16.msra.mxu0 %v389
  %438 = vmatprep.mubr.bf16.mxu0 %v247
  %439 = vmatmul.mubr.bf16.gmra.mrb[0].mxu0 %v246
  %v440 = vpop.f32.mrb[0].mxu0
  %v441 = vadd.f32 0.0, %v440
  %v442 = vpop.f32.mrb[0].mxu0
  %v443 = vpop.f32.mrb[0].mxu0
  %v444 = vadd.f32 0.0, %v443
  %v445 = vpop.f32.mrb[0].mxu0
  %446 = vmatprep.mubr.bf16.mxu0 %v249
  %447 = vmatmul.mubr.bf16.gmra.mrb[0].mxu0 %v248
  %v448 = vpop.f32.mrb[0].mxu0
  %v449 = vadd.f32 0.0, %v448
  %v450 = vpop.f32.mrb[0].mxu0
  %v451 = vpop.f32.mrb[0].mxu0
  %v452 = vadd.f32 0.0, %v451
  %v453 = vpop.f32.mrb[0].mxu0
  %454 = vmatprep.mubr.bf16.mxu0 %v251
  %455 = vmatmul.mubr.bf16.gmra.mrb[0].mxu0 %v250
  %v456 = vpop.f32.mrb[0].mxu0
  %v457 = vadd.f32 0.0, %v456
  %v458 = vpop.f32.mrb[0].mxu0
  %v459 = vpop.f32.mrb[0].mxu0
  %v460 = vadd.f32 0.0, %v459
  %v461 = vpop.f32.mrb[0].mxu0
  %462 = vmatprep.mubr.bf16.mxu0 %v253
  %463 = vmatmul.mubr.bf16.gmra.mrb[0].mxu0 %v252
  %v464 = vpop.f32.mrb[0].mxu0
  %v465 = vadd.f32 0.0, %v464
  %v466 = vpop.f32.mrb[0].mxu0
  %v467 = vpop.f32.mrb[0].mxu0
  %v468 = vadd.f32 0.0, %v467
  %v469 = vpop.f32.mrb[0].mxu0
  %470 = vmatprep.mubr.bf16.mxu0 %v255
  %471 = vmatmul.mubr.bf16.gmra.mrb[0].mxu0 %v254
  %v472 = vpop.f32.mrb[0].mxu0
  %v473 = vadd.f32 0.0, %v472
  %v474 = vpop.f32.mrb[0].mxu0
  %v475 = vpop.f32.mrb[0].mxu0
  %v476 = vadd.f32 0.0, %v475
  %v477 = vpop.f32.mrb[0].mxu0
  %478 = vmatprep.mubr.bf16.mxu0 %v257
  %479 = vmatmul.mubr.bf16.gmra.mrb[0].mxu0 %v256
  %v480 = vpop.f32.mrb[0].mxu0
  %v481 = vadd.f32 0.0, %v480
  %v482 = vpop.f32.mrb[0].mxu0
  %v483 = vpop.f32.mrb[0].mxu0
  %v484 = vadd.f32 0.0, %v483
  %v485 = vpop.f32.mrb[0].mxu0
  %486 = vmatprep.mubr.bf16.mxu0 %v259
  %487 = vmatmul.mubr.bf16.gmra.mrb[0].mxu0 %v258
  %v488 = vpop.f32.mrb[0].mxu0
  %v489 = vadd.f32 0.0, %v488
  %v490 = vpop.f32.mrb[0].mxu0
  %v491 = vpop.f32.mrb[0].mxu0
  %v492 = vadd.f32 0.0, %v491
  %v493 = vpop.f32.mrb[0].mxu0
  %494 = vmatprep.mubr.bf16.mxu0 %v261
  %495 = vmatmul.mubr.bf16.gmra.mrb[0].mxu0 %v260
  %v496 = vpop.f32.mrb[0].mxu0
  %v497 = vadd.f32 0.0, %v496
  %v498 = vpop.f32.mrb[0].mxu0
  %v499 = vpop.f32.mrb[0].mxu0
  %v500 = vadd.f32 0.0, %v499
  %v501 = vpop.f32.mrb[0].mxu0
  %502 = vmatprep.mubr.bf16.mxu0 %v263
  %503 = vmatmul.mubr.bf16.gmra.mrb[0].mxu0 %v262
  %v504 = vpop.f32.mrb[0].mxu0
  %v505 = vadd.f32 0.0, %v504
  %v506 = vpop.f32.mrb[0].mxu0
  %v507 = vpop.f32.mrb[0].mxu0
  %v508 = vadd.f32 0.0, %v507
  %v509 = vpop.f32.mrb[0].mxu0
  %510 = vmatprep.mubr.bf16.mxu0 %v265
  %511 = vmatmul.mubr.bf16.gmra.mrb[0].mxu0 %v264
  %v512 = vpop.f32.mrb[0].mxu0
  %v513 = vadd.f32 0.0, %v512
  %v514 = vpop.f32.mrb[0].mxu0
  %v515 = vpop.f32.mrb[0].mxu0
  %v516 = vadd.f32 0.0, %v515
  %v517 = vpop.f32.mrb[0].mxu0
  %518 = vmatprep.mubr.bf16.mxu0 %v267
  %519 = vmatmul.mubr.bf16.gmra.mrb[0].mxu0 %v266
  %v520 = vpop.f32.mrb[0].mxu0
  %v521 = vadd.f32 0.0, %v520
  %v522 = vpop.f32.mrb[0].mxu0
  %v523 = vpop.f32.mrb[0].mxu0
  %v524 = vadd.f32 0.0, %v523
  %v525 = vpop.f32.mrb[0].mxu0
  %526 = vmatprep.mubr.bf16.mxu0 %v269
  %527 = vmatmul.mubr.bf16.gmra.mrb[0].mxu0 %v268
  %v528 = vpop.f32.mrb[0].mxu0
  %v529 = vadd.f32 0.0, %v528
  %v530 = vpop.f32.mrb[0].mxu0
  %v531 = vpop.f32.mrb[0].mxu0
  %v532 = vadd.f32 0.0, %v531
  %v533 = vpop.f32.mrb[0].mxu0
  %534 = vmatprep.mubr.bf16.mxu0 %v271
  %535 = vmatmul.mubr.bf16.gmra.mrb[0].mxu0 %v270
  %v536 = vpop.f32.mrb[0].mxu0
  %v537 = vadd.f32 0.0, %v536
  %v538 = vpop.f32.mrb[0].mxu0
  %v539 = vpop.f32.mrb[0].mxu0
  %v540 = vadd.f32 0.0, %v539
  %v541 = vpop.f32.mrb[0].mxu0
  %542 = vmatprep.mubr.bf16.mxu0 %v273
  %543 = vmatmul.mubr.bf16.gmra.mrb[0].mxu0 %v272
  %v544 = vpop.f32.mrb[0].mxu0
  %v545 = vadd.f32 0.0, %v544
  %v546 = vpop.f32.mrb[0].mxu0
  %v547 = vpop.f32.mrb[0].mxu0
  %v548 = vadd.f32 0.0, %v547
  %v549 = vpop.f32.mrb[0].mxu0
  %550 = vmatprep.mubr.bf16.mxu0 %v275
  %551 = vmatmul.mubr.bf16.gmra.mrb[0].mxu0 %v274
  %v552 = vpop.f32.mrb[0].mxu0
  %v553 = vadd.f32 0.0, %v552
  %v554 = vpop.f32.mrb[0].mxu0
  %v555 = vpop.f32.mrb[0].mxu0
  %v556 = vadd.f32 0.0, %v555
  %v557 = vpop.f32.mrb[0].mxu0
  %558 = vmatprep.mubr.bf16.mxu0 %v277
  %559 = vmatmul.mubr.bf16.gmra.mrb[0].mxu0 %v276
  %v560 = vpop.f32.mrb[0].mxu0
  %v561 = vadd.f32 0.0, %v560
  %v562 = vpop.f32.mrb[0].mxu0
  %v563 = vpop.f32.mrb[0].mxu0
  %v564 = vadd.f32 0.0, %v563
  %v565 = vpop.f32.mrb[0].mxu0
  %566 = vdwg.mxu0
  %v567 = vadd.f32 %v54, %v441
  %v568 = vadd.f32 %v55, %v444
  %v569 = vadd.f32 %v56, %v449
  %v570 = vadd.f32 %v57, %v452
  %v571 = vadd.f32 %v58, %v457
  %v572 = vadd.f32 %v59, %v460
  %v573 = vadd.f32 %v60, %v465
  %v574 = vadd.f32 %v61, %v468
  %v575 = vadd.f32 %v62, %v473
  %v576 = vadd.f32 %v63, %v476
  %v577 = vadd.f32 %v64, %v481
  %v578 = vadd.f32 %v65, %v484
  %v579 = vadd.f32 %v66, %v489
  %v580 = vadd.f32 %v67, %v492
  %v581 = vadd.f32 %v68, %v497
  %v582 = vadd.f32 %v69, %v500
  %v583 = vadd.f32 %v70, %v505
  %v584 = vadd.f32 %v71, %v508
  %v585 = vadd.f32 %v72, %v513
  %v586 = vadd.f32 %v73, %v516
  %v587 = vadd.f32 %v74, %v521
  %v588 = vadd.f32 %v75, %v524
  %v589 = vadd.f32 %v76, %v529
  %v590 = vadd.f32 %v77, %v532
  %v591 = vadd.f32 %v78, %v537
  %v592 = vadd.f32 %v79, %v540
  %v593 = vadd.f32 %v80, %v545
  %v594 = vadd.f32 %v81, %v548
  %v595 = vadd.f32 %v82, %v553
  %v596 = vadd.f32 %v83, %v556
  %v597 = vadd.f32 %v84, %v561
  %v598 = vadd.f32 %v85, %v564
  %599 = vst [vmem:[#allocation2] sm:$0xff] %v567
  %600 = vst [vmem:[#allocation2 + $0x8] sm:$0xff] %v568
  %601 = vst [vmem:[#allocation2 + $0x10] sm:$0xff] %v569
  %602 = vst [vmem:[#allocation2 + $0x18] sm:$0xff] %v570
  %603 = vst [vmem:[#allocation2 + $0x20] sm:$0xff] %v571
  %604 = vst [vmem:[#allocation2 + $0x28] sm:$0xff] %v572
  %605 = vst [vmem:[#allocation2 + $0x30] sm:$0xff] %v573
  %606 = vst [vmem:[#allocation2 + $0x38] sm:$0xff] %v574
  %607 = vst [vmem:[#allocation2 + $0x40] sm:$0xff] %v575
  %608 = vst [vmem:[#allocation2 + $0x48] sm:$0xff] %v576
  %609 = vst [vmem:[#allocation2 + $0x50] sm:$0xff] %v577
  %610 = vst [vmem:[#allocation2 + $0x58] sm:$0xff] %v578
  %611 = vst [vmem:[#allocation2 + $0x60] sm:$0xff] %v579
  %612 = vst [vmem:[#allocation2 + $0x68] sm:$0xff] %v580
  %613 = vst [vmem:[#allocation2 + $0x70] sm:$0xff] %v581
  %614 = vst [vmem:[#allocation2 + $0x78] sm:$0xff] %v582
  %615 = vst [vmem:[#allocation2 + $0x80] sm:$0xff] %v583
  %616 = vst [vmem:[#allocation2 + $0x88] sm:$0xff] %v584
  %617 = vst [vmem:[#allocation2 + $0x90] sm:$0xff] %v585
  %618 = vst [vmem:[#allocation2 + $0x98] sm:$0xff] %v586
  %619 = vst [vmem:[#allocation2 + $0xa0] sm:$0xff] %v587
  %620 = vst [vmem:[#allocation2 + $0xa8] sm:$0xff] %v588
  %621 = vst [vmem:[#allocation2 + $0xb0] sm:$0xff] %v589
  %622 = vst [vmem:[#allocation2 + $0xb8] sm:$0xff] %v590
  %623 = vst [vmem:[#allocation2 + $0xc0] sm:$0xff] %v591
  %624 = vst [vmem:[#allocation2 + $0xc8] sm:$0xff] %v592
  %625 = vst [vmem:[#allocation2 + $0xd0] sm:$0xff] %v593
  %626 = vst [vmem:[#allocation2 + $0xd8] sm:$0xff] %v594
  %627 = vst [vmem:[#allocation2 + $0xe0] sm:$0xff] %v595
  %628 = vst [vmem:[#allocation2 + $0xe8] sm:$0xff] %v596
  %629 = vst [vmem:[#allocation2 + $0xf0] sm:$0xff] %v597
  %630 = vst [vmem:[#allocation2 + $0xf8] sm:$0xff] %v598
  // Predicated region
  $region22: #{gnn_policy_forward.6} parent=0 // pred_check
    %p631 = pneg %p18
  $region23: #{gnn_policy_forward.6} parent=0 // pred_check_branch
    %633 = sbr.rel (%p631) target = $region25
  $region24: #{gnn_policy_forward.6} parent=0 // pred_region
    %v634 = vld [vmem:[#allocation2] sm:$0xff]
    %v635 = vld [vmem:[#allocation2 + $0x8] sm:$0xff]
    %v636 = vld [vmem:[#allocation2 + $0x10] sm:$0xff]
    %v637 = vld [vmem:[#allocation2 + $0x18] sm:$0xff]
    %v638 = vld [vmem:[#allocation2 + $0x20] sm:$0xff]
    %v639 = vld [vmem:[#allocation2 + $0x28] sm:$0xff]
    %v640 = vld [vmem:[#allocation2 + $0x30] sm:$0xff]
    %v641 = vld [vmem:[#allocation2 + $0x38] sm:$0xff]
    %v642 = vld [vmem:[#allocation2 + $0x40] sm:$0xff]
    %v643 = vld [vmem:[#allocation2 + $0x48] sm:$0xff]
    %v644 = vld [vmem:[#allocation2 + $0x50] sm:$0xff]
    %v645 = vld [vmem:[#allocation2 + $0x58] sm:$0xff]
    %v646 = vld [vmem:[#allocation2 + $0x60] sm:$0xff]
    %v647 = vld [vmem:[#allocation2 + $0x68] sm:$0xff]
    %v648 = vld [vmem:[#allocation2 + $0x70] sm:$0xff]
    %v649 = vld [vmem:[#allocation2 + $0x78] sm:$0xff]
    %v650 = vld [vmem:[#allocation2 + $0x80] sm:$0xff]
    %v651 = vld [vmem:[#allocation2 + $0x88] sm:$0xff]
    %v652 = vld [vmem:[#allocation2 + $0x90] sm:$0xff]
    %v653 = vld [vmem:[#allocation2 + $0x98] sm:$0xff]
    %v654 = vld [vmem:[#allocation2 + $0xa0] sm:$0xff]
    %v655 = vld [vmem:[#allocation2 + $0xa8] sm:$0xff]
    %v656 = vld [vmem:[#allocation2 + $0xb0] sm:$0xff]
    %v657 = vld [vmem:[#allocation2 + $0xb8] sm:$0xff]
    %v658 = vld [vmem:[#allocation2 + $0xc0] sm:$0xff]
    %v659 = vld [vmem:[#allocation2 + $0xc8] sm:$0xff]
    %v660 = vld [vmem:[#allocation2 + $0xd0] sm:$0xff]
    %v661 = vld [vmem:[#allocation2 + $0xd8] sm:$0xff]
    %v662 = vld [vmem:[#allocation2 + $0xe0] sm:$0xff]
    %v663 = vld [vmem:[#allocation2 + $0xe8] sm:$0xff]
    %v664 = vld [vmem:[#allocation2 + $0xf0] sm:$0xff]
    %v665 = vld [vmem:[#allocation2 + $0xf8] sm:$0xff]
    %v666 = vld [vmem:[%s2] sm:$0x1]
    %v668 = vlaneseq
    %v669 = vshrl.u32 %v668, 7
    %v670 = vsub.s32 0, %v669
    %v671 = vrot.slane %v666, %v670
    %v673 = vadd.f32 %v634, %v671
    %v674 = vadd.f32 %v635, %v671
    %v675 = vadd.f32 %v636, %v671
    %v676 = vadd.f32 %v637, %v671
    %v677 = vadd.f32 %v638, %v671
    %v678 = vadd.f32 %v639, %v671
    %v679 = vadd.f32 %v640, %v671
    %v680 = vadd.f32 %v641, %v671
    %v681 = vadd.f32 %v642, %v671
    %v682 = vadd.f32 %v643, %v671
    %v683 = vadd.f32 %v644, %v671
    %v684 = vadd.f32 %v645, %v671
    %v685 = vadd.f32 %v646, %v671
    %v686 = vadd.f32 %v647, %v671
    %v687 = vadd.f32 %v648, %v671
    %v688 = vadd.f32 %v649, %v671
    %v689 = vadd.f32 %v650, %v671
    %v690 = vadd.f32 %v651, %v671
    %v691 = vadd.f32 %v652, %v671
    %v692 = vadd.f32 %v653, %v671
    %v693 = vadd.f32 %v654, %v671
    %v694 = vadd.f32 %v655, %v671
    %v695 = vadd.f32 %v656, %v671
    %v696 = vadd.f32 %v657, %v671
    %v697 = vadd.f32 %v658, %v671
    %v698 = vadd.f32 %v659, %v671
    %v699 = vadd.f32 %v660, %v671
    %v700 = vadd.f32 %v661, %v671
    %v701 = vadd.f32 %v662, %v671
    %v702 = vadd.f32 %v663, %v671
    %v703 = vadd.f32 %v664, %v671
    %v704 = vadd.f32 %v665, %v671
    %v705 = vmax.f32 %v673, 0.0
    %v706 = vmax.f32 %v674, 0.0
    %v707 = vmax.f32 %v675, 0.0
    %v708 = vmax.f32 %v676, 0.0
    %v709 = vmax.f32 %v677, 0.0
    %v710 = vmax.f32 %v678, 0.0
    %v711 = vmax.f32 %v679, 0.0
    %v712 = vmax.f32 %v680, 0.0
    %v713 = vmax.f32 %v681, 0.0
    %v714 = vmax.f32 %v682, 0.0
    %v715 = vmax.f32 %v683, 0.0
    %v716 = vmax.f32 %v684, 0.0
    %v717 = vmax.f32 %v685, 0.0
    %v718 = vmax.f32 %v686, 0.0
    %v719 = vmax.f32 %v687, 0.0
    %v720 = vmax.f32 %v688, 0.0
    %v721 = vmax.f32 %v689, 0.0
    %v722 = vmax.f32 %v690, 0.0
    %v723 = vmax.f32 %v691, 0.0
    %v724 = vmax.f32 %v692, 0.0
    %v725 = vmax.f32 %v693, 0.0
    %v726 = vmax.f32 %v694, 0.0
    %v727 = vmax.f32 %v695, 0.0
    %v728 = vmax.f32 %v696, 0.0
    %v729 = vmax.f32 %v697, 0.0
    %v730 = vmax.f32 %v698, 0.0
    %v731 = vmax.f32 %v699, 0.0
    %v732 = vmax.f32 %v700, 0.0
    %v733 = vmax.f32 %v701, 0.0
    %v734 = vmax.f32 %v702, 0.0
    %v735 = vmax.f32 %v703, 0.0
    %v736 = vmax.f32 %v704, 0.0
    %v737 = vpack.c.bf16 %v706, %v705
    %v738 = vpack.c.bf16 %v708, %v707
    %v739 = vpack.c.bf16 %v710, %v709
    %v740 = vpack.c.bf16 %v712, %v711
    %v741 = vpack.c.bf16 %v714, %v713
    %v742 = vpack.c.bf16 %v716, %v715
    %v743 = vpack.c.bf16 %v718, %v717
    %v744 = vpack.c.bf16 %v720, %v719
    %v745 = vpack.c.bf16 %v722, %v721
    %v746 = vpack.c.bf16 %v724, %v723
    %v747 = vpack.c.bf16 %v726, %v725
    %v748 = vpack.c.bf16 %v728, %v727
    %v749 = vpack.c.bf16 %v730, %v729
    %v750 = vpack.c.bf16 %v732, %v731
    %v751 = vpack.c.bf16 %v734, %v733
    %v752 = vpack.c.bf16 %v736, %v735
    %v753 = vld [vmem:[%s3] sm:$0xff]
    %v754 = vld [vmem:[%s3 + $0x8] sm:$0xff]
    %v755 = vld [vmem:[%s3 + $0x10] sm:$0xff]
    %v756 = vld [vmem:[%s3 + $0x18] sm:$0xff]
    %v757 = vld [vmem:[%s3 + $0x20] sm:$0xff]
    %v758 = vld [vmem:[%s3 + $0x28] sm:$0xff]
    %v759 = vld [vmem:[%s3 + $0x30] sm:$0xff]
    %v760 = vld [vmem:[%s3 + $0x38] sm:$0xff]
    %v761 = vld [vmem:[%s3 + $0x40] sm:$0xff]
    %v762 = vld [vmem:[%s3 + $0x48] sm:$0xff]
    %v763 = vld [vmem:[%s3 + $0x50] sm:$0xff]
    %v764 = vld [vmem:[%s3 + $0x58] sm:$0xff]
    %v765 = vld [vmem:[%s3 + $0x60] sm:$0xff]
    %v766 = vld [vmem:[%s3 + $0x68] sm:$0xff]
    %v767 = vld [vmem:[%s3 + $0x70] sm:$0xff]
    %v768 = vld [vmem:[%s3 + $0x78] sm:$0xff]
    %v785 = vunpack.c.l.b16 %v753
    %v786 = vunpack.c.h.b16 %v753
    %v787 = vunpack.c.l.b16 %v754
    %v788 = vunpack.c.h.b16 %v754
    %v789 = vunpack.c.l.b16 %v755
    %v790 = vunpack.c.h.b16 %v755
    %v791 = vunpack.c.l.b16 %v756
    %v792 = vunpack.c.h.b16 %v756
    %v793 = vunpack.c.l.b16 %v757
    %v794 = vunpack.c.h.b16 %v757
    %v795 = vunpack.c.l.b16 %v758
    %v796 = vunpack.c.h.b16 %v758
    %v797 = vunpack.c.l.b16 %v759
    %v798 = vunpack.c.h.b16 %v759
    %v799 = vunpack.c.l.b16 %v760
    %v800 = vunpack.c.h.b16 %v760
    %v801 = vunpack.c.l.b16 %v761
    %v802 = vunpack.c.h.b16 %v761
    %v803 = vunpack.c.l.b16 %v762
    %v804 = vunpack.c.h.b16 %v762
    %v805 = vunpack.c.l.b16 %v763
    %v806 = vunpack.c.h.b16 %v763
    %v807 = vunpack.c.l.b16 %v764
    %v808 = vunpack.c.h.b16 %v764
    %v809 = vunpack.c.l.b16 %v765
    %v810 = vunpack.c.h.b16 %v765
    %v811 = vunpack.c.l.b16 %v766
    %v812 = vunpack.c.h.b16 %v766
    %v813 = vunpack.c.l.b16 %v767
    %v814 = vunpack.c.h.b16 %v767
    %v815 = vunpack.c.l.b16 %v768
    %v816 = vunpack.c.h.b16 %v768
    %v817 = vpack.c.b16 %v787, %v785
    %v818 = vpack.c.b16 %v788, %v786
    %v819 = vpack.c.b16 %v791, %v789
    %v820 = vpack.c.b16 %v792, %v790
    %v821 = vpack.c.b16 %v795, %v793
    %v822 = vpack.c.b16 %v796, %v794
    %v823 = vpack.c.b16 %v799, %v797
    %v824 = vpack.c.b16 %v800, %v798
    %v825 = vpack.c.b16 %v803, %v801
    %v826 = vpack.c.b16 %v804, %v802
    %v827 = vpack.c.b16 %v807, %v805
    %v828 = vpack.c.b16 %v808, %v806
    %v829 = vpack.c.b16 %v811, %v809
    %v830 = vpack.c.b16 %v812, %v810
    %v831 = vpack.c.b16 %v815, %v813
    %v832 = vpack.c.b16 %v816, %v814
    %849 = vmatprep.subr.bf16.mxu0 %v818
    %850 = vmatpush1.bf16.msra.mxu0 %v817
    %851 = vmatprep.subr.bf16.mxu0 %v820
    %852 = vmatpush1.bf16.msra.mxu0 %v819
    %853 = vmatprep.subr.bf16.mxu0 %v822
    %854 = vmatpush1.bf16.msra.mxu0 %v821
    %855 = vmatprep.subr.bf16.mxu0 %v824
    %856 = vmatpush1.bf16.msra.mxu0 %v823
    %857 = vmatprep.subr.bf16.mxu0 %v826
    %858 = vmatpush1.bf16.msra.mxu0 %v825
    %859 = vmatprep.subr.bf16.mxu0 %v828
    %860 = vmatpush1.bf16.msra.mxu0 %v827
    %861 = vmatprep.subr.bf16.mxu0 %v830
    %862 = vmatpush1.bf16.msra.mxu0 %v829
    %863 = vmatprep.subr.bf16.mxu0 %v832
    %864 = vmatpush1.bf16.msra.mxu0 %v831
    %865 = vmatprep.subr.bf16.mxu0 0
    %866 = vmatpush1.bf16.msra.mxu0 0
    %867 = vmatprep.subr.bf16.mxu0 0
    %868 = vmatpush1.bf16.msra.mxu0 0
    %869 = vmatprep.subr.bf16.mxu0 0
    %870 = vmatpush1.bf16.msra.mxu0 0
    %871 = vmatprep.subr.bf16.mxu0 0
    %872 = vmatpush1.bf16.msra.mxu0 0
    %873 = vmatprep.subr.bf16.mxu0 0
    %874 = vmatpush1.bf16.msra.mxu0 0
    %875 = vmatprep.subr.bf16.mxu0 0
    %876 = vmatpush1.bf16.msra.mxu0 0
    %877 = vmatprep.subr.bf16.mxu0 0
    %878 = vmatpush1.bf16.msra.mxu0 0
    %879 = vmatprep.subr.bf16.mxu0 0
    %880 = vmatpush1.bf16.msra.mxu0 0
    %881 = vmatprep.mubr.bf16.mxu0 0
    %882 = vmatmul.mubr.bf16.gmra.mrb[0].mxu0 %v737
    %v883 = vpop.f32.mrb[0].mxu0
    %v884 = vadd.f32 0.0, %v883
    %v885 = vpop.f32.mrb[0].mxu0
    %v886 = vadd.f32 0.0, %v885
    %v887 = vpop.f32.mrb[0].mxu0
    %v888 = vadd.f32 0.0, %v887
    %v889 = vpop.f32.mrb[0].mxu0
    %v890 = vadd.f32 0.0, %v889
    %891 = vmatprep.mubr.bf16.mxu0 0
    %892 = vmatmul.mubr.bf16.gmra.mrb[0].mxu0 %v738
    %v893 = vpop.f32.mrb[0].mxu0
    %v894 = vadd.f32 0.0, %v893
    %v895 = vpop.f32.mrb[0].mxu0
    %v896 = vadd.f32 0.0, %v895
    %v897 = vpop.f32.mrb[0].mxu0
    %v898 = vadd.f32 0.0, %v897
    %v899 = vpop.f32.mrb[0].mxu0
    %v900 = vadd.f32 0.0, %v899
    %901 = vmatprep.mubr.bf16.mxu0 0
    %902 = vmatmul.mubr.bf16.gmra.mrb[0].mxu0 %v739
    %v903 = vpop.f32.mrb[0].mxu0
    %v904 = vadd.f32 0.0, %v903
    %v905 = vpop.f32.mrb[0].mxu0
    %v906 = vadd.f32 0.0, %v905
    %v907 = vpop.f32.mrb[0].mxu0
    %v908 = vadd.f32 0.0, %v907
    %v909 = vpop.f32.mrb[0].mxu0
    %v910 = vadd.f32 0.0, %v909
    %911 = vmatprep.mubr.bf16.mxu0 0
    %912 = vmatmul.mubr.bf16.gmra.mrb[0].mxu0 %v740
    %v913 = vpop.f32.mrb[0].mxu0
    %v914 = vadd.f32 0.0, %v913
    %v915 = vpop.f32.mrb[0].mxu0
    %v916 = vadd.f32 0.0, %v915
    %v917 = vpop.f32.mrb[0].mxu0
    %v918 = vadd.f32 0.0, %v917
    %v919 = vpop.f32.mrb[0].mxu0
    %v920 = vadd.f32 0.0, %v919
    %921 = vmatprep.mubr.bf16.mxu0 0
    %922 = vmatmul.mubr.bf16.gmra.mrb[0].mxu0 %v741
    %v923 = vpop.f32.mrb[0].mxu0
    %v924 = vadd.f32 0.0, %v923
    %v925 = vpop.f32.mrb[0].mxu0
    %v926 = vadd.f32 0.0, %v925
    %v927 = vpop.f32.mrb[0].mxu0
    %v928 = vadd.f32 0.0, %v927
    %v929 = vpop.f32.mrb[0].mxu0
    %v930 = vadd.f32 0.0, %v929
    %931 = vmatprep.mubr.bf16.mxu0 0
    %932 = vmatmul.mubr.bf16.gmra.mrb[0].mxu0 %v742
    %v933 = vpop.f32.mrb[0].mxu0
    %v934 = vadd.f32 0.0, %v933
    %v935 = vpop.f32.mrb[0].mxu0
    %v936 = vadd.f32 0.0, %v935
    %v937 = vpop.f32.mrb[0].mxu0
    %v938 = vadd.f32 0.0, %v937
    %v939 = vpop.f32.mrb[0].mxu0
    %v940 = vadd.f32 0.0, %v939
    %941 = vmatprep.mubr.bf16.mxu0 0
    %942 = vmatmul.mubr.bf16.gmra.mrb[0].mxu0 %v743
    %v943 = vpop.f32.mrb[0].mxu0
    %v944 = vadd.f32 0.0, %v943
    %v945 = vpop.f32.mrb[0].mxu0
    %v946 = vadd.f32 0.0, %v945
    %v947 = vpop.f32.mrb[0].mxu0
    %v948 = vadd.f32 0.0, %v947
    %v949 = vpop.f32.mrb[0].mxu0
    %v950 = vadd.f32 0.0, %v949
    %951 = vmatprep.mubr.bf16.mxu0 0
    %952 = vmatmul.mubr.bf16.gmra.mrb[0].mxu0 %v744
    %v953 = vpop.f32.mrb[0].mxu0
    %v954 = vadd.f32 0.0, %v953
    %v955 = vpop.f32.mrb[0].mxu0
    %v956 = vadd.f32 0.0, %v955
    %v957 = vpop.f32.mrb[0].mxu0
    %v958 = vadd.f32 0.0, %v957
    %v959 = vpop.f32.mrb[0].mxu0
    %v960 = vadd.f32 0.0, %v959
    %961 = vmatprep.mubr.bf16.mxu0 0
    %962 = vmatmul.mubr.bf16.gmra.mrb[0].mxu0 %v745
    %v963 = vpop.f32.mrb[0].mxu0
    %v964 = vadd.f32 0.0, %v963
    %v965 = vpop.f32.mrb[0].mxu0
    %v966 = vadd.f32 0.0, %v965
    %v967 = vpop.f32.mrb[0].mxu0
    %v968 = vadd.f32 0.0, %v967
    %v969 = vpop.f32.mrb[0].mxu0
    %v970 = vadd.f32 0.0, %v969
    %971 = vmatprep.mubr.bf16.mxu0 0
    %972 = vmatmul.mubr.bf16.gmra.mrb[0].mxu0 %v746
    %v973 = vpop.f32.mrb[0].mxu0
    %v974 = vadd.f32 0.0, %v973
    %v975 = vpop.f32.mrb[0].mxu0
    %v976 = vadd.f32 0.0, %v975
    %v977 = vpop.f32.mrb[0].mxu0
    %v978 = vadd.f32 0.0, %v977
    %v979 = vpop.f32.mrb[0].mxu0
    %v980 = vadd.f32 0.0, %v979
    %981 = vmatprep.mubr.bf16.mxu0 0
    %982 = vmatmul.mubr.bf16.gmra.mrb[0].mxu0 %v747
    %v983 = vpop.f32.mrb[0].mxu0
    %v984 = vadd.f32 0.0, %v983
    %v985 = vpop.f32.mrb[0].mxu0
    %v986 = vadd.f32 0.0, %v985
    %v987 = vpop.f32.mrb[0].mxu0
    %v988 = vadd.f32 0.0, %v987
    %v989 = vpop.f32.mrb[0].mxu0
    %v990 = vadd.f32 0.0, %v989
    %991 = vmatprep.mubr.bf16.mxu0 0
    %992 = vmatmul.mubr.bf16.gmra.mrb[0].mxu0 %v748
    %v993 = vpop.f32.mrb[0].mxu0
    %v994 = vadd.f32 0.0, %v993
    %v995 = vpop.f32.mrb[0].mxu0
    %v996 = vadd.f32 0.0, %v995
    %v997 = vpop.f32.mrb[0].mxu0
    %v998 = vadd.f32 0.0, %v997
    %v999 = vpop.f32.mrb[0].mxu0
    %v1000 = vadd.f32 0.0, %v999
    %1001 = vmatprep.mubr.bf16.mxu0 0
    %1002 = vmatmul.mubr.bf16.gmra.mrb[0].mxu0 %v749
    %v1003 = vpop.f32.mrb[0].mxu0
    %v1004 = vadd.f32 0.0, %v1003
    %v1005 = vpop.f32.mrb[0].mxu0
    %v1006 = vadd.f32 0.0, %v1005
    %v1007 = vpop.f32.mrb[0].mxu0
    %v1008 = vadd.f32 0.0, %v1007
    %v1009 = vpop.f32.mrb[0].mxu0
    %v1010 = vadd.f32 0.0, %v1009
    %1011 = vmatprep.mubr.bf16.mxu0 0
    %1012 = vmatmul.mubr.bf16.gmra.mrb[0].mxu0 %v750
    %v1013 = vpop.f32.mrb[0].mxu0
    %v1014 = vadd.f32 0.0, %v1013
    %v1015 = vpop.f32.mrb[0].mxu0
    %v1016 = vadd.f32 0.0, %v1015
    %v1017 = vpop.f32.mrb[0].mxu0
    %v1018 = vadd.f32 0.0, %v1017
    %v1019 = vpop.f32.mrb[0].mxu0
    %v1020 = vadd.f32 0.0, %v1019
    %1021 = vmatprep.mubr.bf16.mxu0 0
    %1022 = vmatmul.mubr.bf16.gmra.mrb[0].mxu0 %v751
    %v1023 = vpop.f32.mrb[0].mxu0
    %v1024 = vadd.f32 0.0, %v1023
    %v1025 = vpop.f32.mrb[0].mxu0
    %v1026 = vadd.f32 0.0, %v1025
    %v1027 = vpop.f32.mrb[0].mxu0
    %v1028 = vadd.f32 0.0, %v1027
    %v1029 = vpop.f32.mrb[0].mxu0
    %v1030 = vadd.f32 0.0, %v1029
    %1031 = vmatprep.mubr.bf16.mxu0 0
    %1032 = vmatmul.mubr.bf16.gmra.mrb[0].mxu0 %v752
    %v1033 = vpop.f32.mrb[0].mxu0
    %v1034 = vadd.f32 0.0, %v1033
    %v1035 = vpop.f32.mrb[0].mxu0
    %v1036 = vadd.f32 0.0, %v1035
    %v1037 = vpop.f32.mrb[0].mxu0
    %v1038 = vadd.f32 0.0, %v1037
    %v1039 = vpop.f32.mrb[0].mxu0
    %v1040 = vadd.f32 0.0, %v1039
    %1041 = vdwg.mxu0
    %v1042 = vpack.c.bf16 %v888, %v884
    %v1043 = vpack.c.bf16 %v890, %v886
    %v1044 = vpack.c.bf16 %v898, %v894
    %v1045 = vpack.c.bf16 %v900, %v896
    %v1046 = vpack.c.bf16 %v908, %v904
    %v1047 = vpack.c.bf16 %v910, %v906
    %v1048 = vpack.c.bf16 %v918, %v914
    %v1049 = vpack.c.bf16 %v920, %v916
    %v1050 = vpack.c.bf16 %v928, %v924
    %v1051 = vpack.c.bf16 %v930, %v926
    %v1052 = vpack.c.bf16 %v938, %v934
    %v1053 = vpack.c.bf16 %v940, %v936
    %v1054 = vpack.c.bf16 %v948, %v944
    %v1055 = vpack.c.bf16 %v950, %v946
    %v1056 = vpack.c.bf16 %v958, %v954
    %v1057 = vpack.c.bf16 %v960, %v956
    %v1058 = vpack.c.bf16 %v968, %v964
    %v1059 = vpack.c.bf16 %v970, %v966
    %v1060 = vpack.c.bf16 %v978, %v974
    %v1061 = vpack.c.bf16 %v980, %v976
    %v1062 = vpack.c.bf16 %v988, %v984
    %v1063 = vpack.c.bf16 %v990, %v986
    %v1064 = vpack.c.bf16 %v998, %v994
    %v1065 = vpack.c.bf16 %v1000, %v996
    %v1066 = vpack.c.bf16 %v1008, %v1004
    %v1067 = vpack.c.bf16 %v1010, %v1006
    %v1068 = vpack.c.bf16 %v1018, %v1014
    %v1069 = vpack.c.bf16 %v1020, %v1016
    %v1070 = vpack.c.bf16 %v1028, %v1024
    %v1071 = vpack.c.bf16 %v1030, %v1026
    %v1072 = vpack.c.bf16 %v1038, %v1034
    %v1073 = vpack.c.bf16 %v1040, %v1036
    %v1106 = vunpack.c.l.b16 %v1042
    %v1107 = vunpack.c.l.b16 %v1043
    %v1108 = vunpack.c.h.b16 %v1042
    %v1109 = vunpack.c.h.b16 %v1043
    %v1110 = vunpack.c.l.b16 %v1044
    %v1111 = vunpack.c.l.b16 %v1045
    %v1112 = vunpack.c.h.b16 %v1044
    %v1113 = vunpack.c.h.b16 %v1045
    %v1114 = vunpack.c.l.b16 %v1046
    %v1115 = vunpack.c.l.b16 %v1047
    %v1116 = vunpack.c.h.b16 %v1046
    %v1117 = vunpack.c.h.b16 %v1047
    %v1118 = vunpack.c.l.b16 %v1048
    %v1119 = vunpack.c.l.b16 %v1049
    %v1120 = vunpack.c.h.b16 %v1048
    %v1121 = vunpack.c.h.b16 %v1049
    %v1122 = vunpack.c.l.b16 %v1050
    %v1123 = vunpack.c.l.b16 %v1051
    %v1124 = vunpack.c.h.b16 %v1050
    %v1125 = vunpack.c.h.b16 %v1051
    %v1126 = vunpack.c.l.b16 %v1052
    %v1127 = vunpack.c.l.b16 %v1053
    %v1128 = vunpack.c.h.b16 %v1052
    %v1129 = vunpack.c.h.b16 %v1053
    %v1130 = vunpack.c.l.b16 %v1054
    %v1131 = vunpack.c.l.b16 %v1055
    %v1132 = vunpack.c.h.b16 %v1054
    %v1133 = vunpack.c.h.b16 %v1055
    %v1134 = vunpack.c.l.b16 %v1056
    %v1135 = vunpack.c.l.b16 %v1057
    %v1136 = vunpack.c.h.b16 %v1056
    %v1137 = vunpack.c.h.b16 %v1057
    %v1138 = vunpack.c.l.b16 %v1058
    %v1139 = vunpack.c.l.b16 %v1059
    %v1140 = vunpack.c.h.b16 %v1058
    %v1141 = vunpack.c.h.b16 %v1059
    %v1142 = vunpack.c.l.b16 %v1060
    %v1143 = vunpack.c.l.b16 %v1061
    %v1144 = vunpack.c.h.b16 %v1060
    %v1145 = vunpack.c.h.b16 %v1061
    %v1146 = vunpack.c.l.b16 %v1062
    %v1147 = vunpack.c.l.b16 %v1063
    %v1148 = vunpack.c.h.b16 %v1062
    %v1149 = vunpack.c.h.b16 %v1063
    %v1150 = vunpack.c.l.b16 %v1064
    %v1151 = vunpack.c.l.b16 %v1065
    %v1152 = vunpack.c.h.b16 %v1064
    %v1153 = vunpack.c.h.b16 %v1065
    %v1154 = vunpack.c.l.b16 %v1066
    %v1155 = vunpack.c.l.b16 %v1067
    %v1156 = vunpack.c.h.b16 %v1066
    %v1157 = vunpack.c.h.b16 %v1067
    %v1158 = vunpack.c.l.b16 %v1068
    %v1159 = vunpack.c.l.b16 %v1069
    %v1160 = vunpack.c.h.b16 %v1068
    %v1161 = vunpack.c.h.b16 %v1069
    %v1162 = vunpack.c.l.b16 %v1070
    %v1163 = vunpack.c.l.b16 %v1071
    %v1164 = vunpack.c.h.b16 %v1070
    %v1165 = vunpack.c.h.b16 %v1071
    %v1166 = vunpack.c.l.b16 %v1072
    %v1167 = vunpack.c.l.b16 %v1073
    %v1168 = vunpack.c.h.b16 %v1072
    %v1169 = vunpack.c.h.b16 %v1073
    %v1170 = vpack.c.b16 %v1107, %v1106
    %v1171 = vpack.c.b16 %v1109, %v1108
    %v1172 = vpack.c.b16 %v1111, %v1110
    %v1173 = vpack.c.b16 %v1113, %v1112
    %v1174 = vpack.c.b16 %v1115, %v1114
    %v1175 = vpack.c.b16 %v1117, %v1116
    %v1176 = vpack.c.b16 %v1119, %v1118
    %v1177 = vpack.c.b16 %v1121, %v1120
    %v1178 = vpack.c.b16 %v1123, %v1122
    %v1179 = vpack.c.b16 %v1125, %v1124
    %v1180 = vpack.c.b16 %v1127, %v1126
    %v1181 = vpack.c.b16 %v1129, %v1128
    %v1182 = vpack.c.b16 %v1131, %v1130
    %v1183 = vpack.c.b16 %v1133, %v1132
    %v1184 = vpack.c.b16 %v1135, %v1134
    %v1185 = vpack.c.b16 %v1137, %v1136
    %v1186 = vpack.c.b16 %v1139, %v1138
    %v1187 = vpack.c.b16 %v1141, %v1140
    %v1188 = vpack.c.b16 %v1143, %v1142
    %v1189 = vpack.c.b16 %v1145, %v1144
    %v1190 = vpack.c.b16 %v1147, %v1146
    %v1191 = vpack.c.b16 %v1149, %v1148
    %v1192 = vpack.c.b16 %v1151, %v1150
    %v1193 = vpack.c.b16 %v1153, %v1152
    %v1194 = vpack.c.b16 %v1155, %v1154
    %v1195 = vpack.c.b16 %v1157, %v1156
    %v1196 = vpack.c.b16 %v1159, %v1158
    %v1197 = vpack.c.b16 %v1161, %v1160
    %v1198 = vpack.c.b16 %v1163, %v1162
    %v1199 = vpack.c.b16 %v1165, %v1164
    %v1200 = vpack.c.b16 %v1167, %v1166
    %v1201 = vpack.c.b16 %v1169, %v1168
    %1234 = vst [vmem:[%s4] sm:$0xff] %v1170
    %1235 = vst [vmem:[%s4 + $0x8] sm:$0xff] %v1171
    %1236 = vst [vmem:[%s4 + $0x10] sm:$0xff] %v1172
    %1237 = vst [vmem:[%s4 + $0x18] sm:$0xff] %v1173
    %1238 = vst [vmem:[%s4 + $0x20] sm:$0xff] %v1174
    %1239 = vst [vmem:[%s4 + $0x28] sm:$0xff] %v1175
    %1240 = vst [vmem:[%s4 + $0x30] sm:$0xff] %v1176
    %1241 = vst [vmem:[%s4 + $0x38] sm:$0xff] %v1177
    %1242 = vst [vmem:[%s4 + $0x40] sm:$0xff] %v1178
    %1243 = vst [vmem:[%s4 + $0x48] sm:$0xff] %v1179
    %1244 = vst [vmem:[%s4 + $0x50] sm:$0xff] %v1180
    %1245 = vst [vmem:[%s4 + $0x58] sm:$0xff] %v1181
    %1246 = vst [vmem:[%s4 + $0x60] sm:$0xff] %v1182
    %1247 = vst [vmem:[%s4 + $0x68] sm:$0xff] %v1183
    %1248 = vst [vmem:[%s4 + $0x70] sm:$0xff] %v1184
    %1249 = vst [vmem:[%s4 + $0x78] sm:$0xff] %v1185
    %1250 = vst [vmem:[%s4 + $0x80] sm:$0xff] %v1186
    %1251 = vst [vmem:[%s4 + $0x88] sm:$0xff] %v1187
    %1252 = vst [vmem:[%s4 + $0x90] sm:$0xff] %v1188
    %1253 = vst [vmem:[%s4 + $0x98] sm:$0xff] %v1189
    %1254 = vst [vmem:[%s4 + $0xa0] sm:$0xff] %v1190
    %1255 = vst [vmem:[%s4 + $0xa8] sm:$0xff] %v1191
    %1256 = vst [vmem:[%s4 + $0xb0] sm:$0xff] %v1192
    %1257 = vst [vmem:[%s4 + $0xb8] sm:$0xff] %v1193
    %1258 = vst [vmem:[%s4 + $0xc0] sm:$0xff] %v1194
    %1259 = vst [vmem:[%s4 + $0xc8] sm:$0xff] %v1195
    %1260 = vst [vmem:[%s4 + $0xd0] sm:$0xff] %v1196
    %1261 = vst [vmem:[%s4 + $0xd8] sm:$0xff] %v1197
    %1262 = vst [vmem:[%s4 + $0xe0] sm:$0xff] %v1198
    %1263 = vst [vmem:[%s4 + $0xe8] sm:$0xff] %v1199
    %1264 = vst [vmem:[%s4 + $0xf0] sm:$0xff] %v1200
    %1265 = vst [vmem:[%s4 + $0xf8] sm:$0xff] %v1201
  $region25: #{gnn_policy_forward.6} parent=0 // pred_fallthru
    _
  // Predicated region
  $region26: #{gnn_policy_forward.6} parent=0 // pred_check
    _
  $region27: #{gnn_policy_forward.6} parent=0 // pred_check_branch
    %1267 = sbr.rel (0) target = $region29
  $region28: #{gnn_policy_forward.6} parent=0 // pred_region
    _
  $region29: #{gnn_policy_forward.6} parent=0 // pred_fallthru
    _
  // Predicated region
  $region30: #{gnn_policy_forward.6} parent=0 // pred_check
    _
  $region31: #{gnn_policy_forward.6} parent=0 // pred_check_branch
    %1269 = sbr.rel (0) target = $region33
  $region32: #{gnn_policy_forward.6} parent=0 // pred_region
    _
  $region33: #{gnn_policy_forward.6} parent=0 // pred_fallthru
    _

// kernel: gnn_policy_forward.7
$region0: #{gnn_policy_forward.7}
  #allocation0 [shape = 'u32[]', space=smem, size = 0x4, offset = 0x4, fixed_abs, tag = 'smem constant byte address 0x4 - core index']
  #allocation1 [shape = 'u32[144,128]{1,0:T(1,128)}', space=vmem, size = 0x12000, scoped, tag = 'internal scratch']
  #allocation2 [shape = 'f32[1,1]{1,0:T(1,128)S(1)}', space=vmem, size = 0x200, scoped, tag = 'scoped memory for gnn_policy_forward.7']
  %s0 = inlined_call_operand.vmem [shape: bf16[512,128], index: 0, kind: input, shape index: {}]
  %s1 = inlined_call_operand.vmem [shape: bf16[512,128], index: 1, kind: input, shape index: {}]
  %s2 = inlined_call_operand.vmem [shape: f32[1,128], index: 2, kind: input, shape index: {}]
  %s3 = inlined_call_operand.<no memory space> [shape: f32[1,1], index: 3, kind: input, shape index: {}]
  %s4 = inlined_call_operand.vmem [shape: f32[1,512], index: 4, kind: output, shape index: {}]
  %s5 = sld [smem:[#allocation0]]
  $region26: #{gnn_policy_forward.7} parent=0
    _
  %s7 = ssub.s32 1, %s5
  %s8 = scalar_select 0, %s7, %s5
  %v9 = vstv %s3
  %10 = vst [vmem:[#allocation2] sm:$0x1] %v9
  // Predicated region
  $region2: #{gnn_policy_forward.7} parent=0 // pred_check
    _
  $region3: #{gnn_policy_forward.7} parent=0 // pred_check_branch
    %12 = sbr.rel (0) target = $region5
  $region4: #{gnn_policy_forward.7} parent=0 // pred_region
    _
  $region5: #{gnn_policy_forward.7} parent=0 // pred_fallthru
    _
  // Predicated region
  $region6: #{gnn_policy_forward.7} parent=0 // pred_check
    _
  $region7: #{gnn_policy_forward.7} parent=0 // pred_check_branch
    %14 = sbr.rel (0) target = $region9
  $region8: #{gnn_policy_forward.7} parent=0 // pred_region
    _
  $region9: #{gnn_policy_forward.7} parent=0 // pred_fallthru
    _
  // Predicated region
  $region10: #{gnn_policy_forward.7} parent=0 // pred_check
    _
  $region11: #{gnn_policy_forward.7} parent=0 // pred_check_branch
    %16 = sbr.rel (0) target = $region13
  $region12: #{gnn_policy_forward.7} parent=0 // pred_region
    _
  $region13: #{gnn_policy_forward.7} parent=0 // pred_fallthru
    _
  // Predicated region
  $region14: #{gnn_policy_forward.7} parent=0 // pred_check
    _
  $region15: #{gnn_policy_forward.7} parent=0 // pred_check_branch
    %18 = sbr.rel (0) target = $region17
  $region16: #{gnn_policy_forward.7} parent=0 // pred_region
    _
  $region17: #{gnn_policy_forward.7} parent=0 // pred_fallthru
    _
  %v19 = vld [vmem:[%s0] sm:$0xf]
  %v20 = vld [vmem:[%s0 + $0x4] sm:$0xf]
  %v21 = vld [vmem:[%s0 + $0x8] sm:$0xf]
  %v22 = vld [vmem:[%s0 + $0xc] sm:$0xf]
  %v23 = vld [vmem:[%s0 + $0x10] sm:$0xf]
  %v24 = vld [vmem:[%s0 + $0x14] sm:$0xf]
  %v25 = vld [vmem:[%s0 + $0x18] sm:$0xf]
  %v26 = vld [vmem:[%s0 + $0x1c] sm:$0xf]
  %v27 = vld [vmem:[%s0 + $0x20] sm:$0xf]
  %v28 = vld [vmem:[%s0 + $0x24] sm:$0xf]
  %v29 = vld [vmem:[%s0 + $0x28] sm:$0xf]
  %v30 = vld [vmem:[%s0 + $0x2c] sm:$0xf]
  %v31 = vld [vmem:[%s0 + $0x30] sm:$0xf]
  %v32 = vld [vmem:[%s0 + $0x34] sm:$0xf]
  %v33 = vld [vmem:[%s0 + $0x38] sm:$0xf]
  %v34 = vld [vmem:[%s0 + $0x3c] sm:$0xf]
  %v35 = vld [vmem:[%s0 + $0x40] sm:$0xf]
  %v36 = vld [vmem:[%s0 + $0x44] sm:$0xf]
  %v37 = vld [vmem:[%s0 + $0x48] sm:$0xf]
  %v38 = vld [vmem:[%s0 + $0x4c] sm:$0xf]
  %v39 = vld [vmem:[%s0 + $0x50] sm:$0xf]
  %v40 = vld [vmem:[%s0 + $0x54] sm:$0xf]
  %v41 = vld [vmem:[%s0 + $0x58] sm:$0xf]
  %v42 = vld [vmem:[%s0 + $0x5c] sm:$0xf]
  %v43 = vld [vmem:[%s0 + $0x60] sm:$0xf]
  %v44 = vld [vmem:[%s0 + $0x64] sm:$0xf]
  %v45 = vld [vmem:[%s0 + $0x68] sm:$0xf]
  %v46 = vld [vmem:[%s0 + $0x6c] sm:$0xf]
  %v47 = vld [vmem:[%s0 + $0x70] sm:$0xf]
  %v48 = vld [vmem:[%s0 + $0x74] sm:$0xf]
  %v49 = vld [vmem:[%s0 + $0x78] sm:$0xf]
  %v50 = vld [vmem:[%s0 + $0x7c] sm:$0xf]
  %v51 = vld [vmem:[%s0 + $0x80] sm:$0xf]
  %v52 = vld [vmem:[%s0 + $0x84] sm:$0xf]
  %v53 = vld [vmem:[%s0 + $0x88] sm:$0xf]
  %v54 = vld [vmem:[%s0 + $0x8c] sm:$0xf]
  %v55 = vld [vmem:[%s0 + $0x90] sm:$0xf]
  %v56 = vld [vmem:[%s0 + $0x94] sm:$0xf]
  %v57 = vld [vmem:[%s0 + $0x98] sm:$0xf]
  %v58 = vld [vmem:[%s0 + $0x9c] sm:$0xf]
  %v59 = vld [vmem:[%s0 + $0xa0] sm:$0xf]
  %v60 = vld [vmem:[%s0 + $0xa4] sm:$0xf]
  %v61 = vld [vmem:[%s0 + $0xa8] sm:$0xf]
  %v62 = vld [vmem:[%s0 + $0xac] sm:$0xf]
  %v63 = vld [vmem:[%s0 + $0xb0] sm:$0xf]
  %v64 = vld [vmem:[%s0 + $0xb4] sm:$0xf]
  %v65 = vld [vmem:[%s0 + $0xb8] sm:$0xf]
  %v66 = vld [vmem:[%s0 + $0xbc] sm:$0xf]
  %v67 = vld [vmem:[%s0 + $0xc0] sm:$0xf]
  %v68 = vld [vmem:[%s0 + $0xc4] sm:$0xf]
  %v69 = vld [vmem:[%s0 + $0xc8] sm:$0xf]
  %v70 = vld [vmem:[%s0 + $0xcc] sm:$0xf]
  %v71 = vld [vmem:[%s0 + $0xd0] sm:$0xf]
  %v72 = vld [vmem:[%s0 + $0xd4] sm:$0xf]
  %v73 = vld [vmem:[%s0 + $0xd8] sm:$0xf]
  %v74 = vld [vmem:[%s0 + $0xdc] sm:$0xf]
  %v75 = vld [vmem:[%s0 + $0xe0] sm:$0xf]
  %v76 = vld [vmem:[%s0 + $0xe4] sm:$0xf]
  %v77 = vld [vmem:[%s0 + $0xe8] sm:$0xf]
  %v78 = vld [vmem:[%s0 + $0xec] sm:$0xf]
  %v79 = vld [vmem:[%s0 + $0xf0] sm:$0xf]
  %v80 = vld [vmem:[%s0 + $0xf4] sm:$0xf]
  %v81 = vld [vmem:[%s0 + $0xf8] sm:$0xf]
  %v82 = vld [vmem:[%s0 + $0xfc] sm:$0xf]
  %v83 = vunpack.c.l.bf16 %v19
  %v84 = vunpack.c.l.bf16 %v20
  %v85 = vunpack.c.l.bf16 %v21
  %v86 = vunpack.c.l.bf16 %v22
  %v87 = vunpack.c.l.bf16 %v23
  %v88 = vunpack.c.l.bf16 %v24
  %v89 = vunpack.c.l.bf16 %v25
  %v90 = vunpack.c.l.bf16 %v26
  %v91 = vunpack.c.l.bf16 %v27
  %v92 = vunpack.c.l.bf16 %v28
  %v93 = vunpack.c.l.bf16 %v29
  %v94 = vunpack.c.l.bf16 %v30
  %v95 = vunpack.c.l.bf16 %v31
  %v96 = vunpack.c.l.bf16 %v32
  %v97 = vunpack.c.l.bf16 %v33
  %v98 = vunpack.c.l.bf16 %v34
  %v99 = vunpack.c.l.bf16 %v35
  %v100 = vunpack.c.l.bf16 %v36
  %v101 = vunpack.c.l.bf16 %v37
  %v102 = vunpack.c.l.bf16 %v38
  %v103 = vunpack.c.l.bf16 %v39
  %v104 = vunpack.c.l.bf16 %v40
  %v105 = vunpack.c.l.bf16 %v41
  %v106 = vunpack.c.l.bf16 %v42
  %v107 = vunpack.c.l.bf16 %v43
  %v108 = vunpack.c.l.bf16 %v44
  %v109 = vunpack.c.l.bf16 %v45
  %v110 = vunpack.c.l.bf16 %v46
  %v111 = vunpack.c.l.bf16 %v47
  %v112 = vunpack.c.l.bf16 %v48
  %v113 = vunpack.c.l.bf16 %v49
  %v114 = vunpack.c.l.bf16 %v50
  %v115 = vunpack.c.l.bf16 %v51
  %v116 = vunpack.c.l.bf16 %v52
  %v117 = vunpack.c.l.bf16 %v53
  %v118 = vunpack.c.l.bf16 %v54
  %v119 = vunpack.c.l.bf16 %v55
  %v120 = vunpack.c.l.bf16 %v56
  %v121 = vunpack.c.l.bf16 %v57
  %v122 = vunpack.c.l.bf16 %v58
  %v123 = vunpack.c.l.bf16 %v59
  %v124 = vunpack.c.l.bf16 %v60
  %v125 = vunpack.c.l.bf16 %v61
  %v126 = vunpack.c.l.bf16 %v62
  %v127 = vunpack.c.l.bf16 %v63
  %v128 = vunpack.c.l.bf16 %v64
  %v129 = vunpack.c.l.bf16 %v65
  %v130 = vunpack.c.l.bf16 %v66
  %v131 = vunpack.c.l.bf16 %v67
  %v132 = vunpack.c.l.bf16 %v68
  %v133 = vunpack.c.l.bf16 %v69
  %v134 = vunpack.c.l.bf16 %v70
  %v135 = vunpack.c.l.bf16 %v71
  %v136 = vunpack.c.l.bf16 %v72
  %v137 = vunpack.c.l.bf16 %v73
  %v138 = vunpack.c.l.bf16 %v74
  %v139 = vunpack.c.l.bf16 %v75
  %v140 = vunpack.c.l.bf16 %v76
  %v141 = vunpack.c.l.bf16 %v77
  %v142 = vunpack.c.l.bf16 %v78
  %v143 = vunpack.c.l.bf16 %v79
  %v144 = vunpack.c.l.bf16 %v80
  %v145 = vunpack.c.l.bf16 %v81
  %v146 = vunpack.c.l.bf16 %v82
  %v147 = vld [vmem:[%s1] sm:$0xf]
  %v148 = vld [vmem:[%s1 + $0x4] sm:$0xf]
  %v149 = vld [vmem:[%s1 + $0x8] sm:$0xf]
  %v150 = vld [vmem:[%s1 + $0xc] sm:$0xf]
  %v151 = vld [vmem:[%s1 + $0x10] sm:$0xf]
  %v152 = vld [vmem:[%s1 + $0x14] sm:$0xf]
  %v153 = vld [vmem:[%s1 + $0x18] sm:$0xf]
  %v154 = vld [vmem:[%s1 + $0x1c] sm:$0xf]
  %v155 = vld [vmem:[%s1 + $0x20] sm:$0xf]
  %v156 = vld [vmem:[%s1 + $0x24] sm:$0xf]
  %v157 = vld [vmem:[%s1 + $0x28] sm:$0xf]
  %v158 = vld [vmem:[%s1 + $0x2c] sm:$0xf]
  %v159 = vld [vmem:[%s1 + $0x30] sm:$0xf]
  %v160 = vld [vmem:[%s1 + $0x34] sm:$0xf]
  %v161 = vld [vmem:[%s1 + $0x38] sm:$0xf]
  %v162 = vld [vmem:[%s1 + $0x3c] sm:$0xf]
  %v163 = vld [vmem:[%s1 + $0x40] sm:$0xf]
  %v164 = vld [vmem:[%s1 + $0x44] sm:$0xf]
  %v165 = vld [vmem:[%s1 + $0x48] sm:$0xf]
  %v166 = vld [vmem:[%s1 + $0x4c] sm:$0xf]
  %v167 = vld [vmem:[%s1 + $0x50] sm:$0xf]
  %v168 = vld [vmem:[%s1 + $0x54] sm:$0xf]
  %v169 = vld [vmem:[%s1 + $0x58] sm:$0xf]
  %v170 = vld [vmem:[%s1 + $0x5c] sm:$0xf]
  %v171 = vld [vmem:[%s1 + $0x60] sm:$0xf]
  %v172 = vld [vmem:[%s1 + $0x64] sm:$0xf]
  %v173 = vld [vmem:[%s1 + $0x68] sm:$0xf]
  %v174 = vld [vmem:[%s1 + $0x6c] sm:$0xf]
  %v175 = vld [vmem:[%s1 + $0x70] sm:$0xf]
  %v176 = vld [vmem:[%s1 + $0x74] sm:$0xf]
  %v177 = vld [vmem:[%s1 + $0x78] sm:$0xf]
  %v178 = vld [vmem:[%s1 + $0x7c] sm:$0xf]
  %v179 = vld [vmem:[%s1 + $0x80] sm:$0xf]
  %v180 = vld [vmem:[%s1 + $0x84] sm:$0xf]
  %v181 = vld [vmem:[%s1 + $0x88] sm:$0xf]
  %v182 = vld [vmem:[%s1 + $0x8c] sm:$0xf]
  %v183 = vld [vmem:[%s1 + $0x90] sm:$0xf]
  %v184 = vld [vmem:[%s1 + $0x94] sm:$0xf]
  %v185 = vld [vmem:[%s1 + $0x98] sm:$0xf]
  %v186 = vld [vmem:[%s1 + $0x9c] sm:$0xf]
  %v187 = vld [vmem:[%s1 + $0xa0] sm:$0xf]
  %v188 = vld [vmem:[%s1 + $0xa4] sm:$0xf]
  %v189 = vld [vmem:[%s1 + $0xa8] sm:$0xf]
  %v190 = vld [vmem:[%s1 + $0xac] sm:$0xf]
  %v191 = vld [vmem:[%s1 + $0xb0] sm:$0xf]
  %v192 = vld [vmem:[%s1 + $0xb4] sm:$0xf]
  %v193 = vld [vmem:[%s1 + $0xb8] sm:$0xf]
  %v194 = vld [vmem:[%s1 + $0xbc] sm:$0xf]
  %v195 = vld [vmem:[%s1 + $0xc0] sm:$0xf]
  %v196 = vld [vmem:[%s1 + $0xc4] sm:$0xf]
  %v197 = vld [vmem:[%s1 + $0xc8] sm:$0xf]
  %v198 = vld [vmem:[%s1 + $0xcc] sm:$0xf]
  %v199 = vld [vmem:[%s1 + $0xd0] sm:$0xf]
  %v200 = vld [vmem:[%s1 + $0xd4] sm:$0xf]
  %v201 = vld [vmem:[%s1 + $0xd8] sm:$0xf]
  %v202 = vld [vmem:[%s1 + $0xdc] sm:$0xf]
  %v203 = vld [vmem:[%s1 + $0xe0] sm:$0xf]
  %v204 = vld [vmem:[%s1 + $0xe4] sm:$0xf]
  %v205 = vld [vmem:[%s1 + $0xe8] sm:$0xf]
  %v206 = vld [vmem:[%s1 + $0xec] sm:$0xf]
  %v207 = vld [vmem:[%s1 + $0xf0] sm:$0xf]
  %v208 = vld [vmem:[%s1 + $0xf4] sm:$0xf]
  %v209 = vld [vmem:[%s1 + $0xf8] sm:$0xf]
  %v210 = vld [vmem:[%s1 + $0xfc] sm:$0xf]
  %v211 = vunpack.c.l.bf16 %v147
  %v212 = vunpack.c.l.bf16 %v148
  %v213 = vunpack.c.l.bf16 %v149
  %v214 = vunpack.c.l.bf16 %v150
  %v215 = vunpack.c.l.bf16 %v151
  %v216 = vunpack.c.l.bf16 %v152
  %v217 = vunpack.c.l.bf16 %v153
  %v218 = vunpack.c.l.bf16 %v154
  %v219 = vunpack.c.l.bf16 %v155
  %v220 = vunpack.c.l.bf16 %v156
  %v221 = vunpack.c.l.bf16 %v157
  %v222 = vunpack.c.l.bf16 %v158
  %v223 = vunpack.c.l.bf16 %v159
  %v224 = vunpack.c.l.bf16 %v160
  %v225 = vunpack.c.l.bf16 %v161
  %v226 = vunpack.c.l.bf16 %v162
  %v227 = vunpack.c.l.bf16 %v163
  %v228 = vunpack.c.l.bf16 %v164
  %v229 = vunpack.c.l.bf16 %v165
  %v230 = vunpack.c.l.bf16 %v166
  %v231 = vunpack.c.l.bf16 %v167
  %v232 = vunpack.c.l.bf16 %v168
  %v233 = vunpack.c.l.bf16 %v169
  %v234 = vunpack.c.l.bf16 %v170
  %v235 = vunpack.c.l.bf16 %v171
  %v236 = vunpack.c.l.bf16 %v172
  %v237 = vunpack.c.l.bf16 %v173
  %v238 = vunpack.c.l.bf16 %v174
  %v239 = vunpack.c.l.bf16 %v175
  %v240 = vunpack.c.l.bf16 %v176
  %v241 = vunpack.c.l.bf16 %v177
  %v242 = vunpack.c.l.bf16 %v178
  %v243 = vunpack.c.l.bf16 %v179
  %v244 = vunpack.c.l.bf16 %v180
  %v245 = vunpack.c.l.bf16 %v181
  %v246 = vunpack.c.l.bf16 %v182
  %v247 = vunpack.c.l.bf16 %v183
  %v248 = vunpack.c.l.bf16 %v184
  %v249 = vunpack.c.l.bf16 %v185
  %v250 = vunpack.c.l.bf16 %v186
  %v251 = vunpack.c.l.bf16 %v187
  %v252 = vunpack.c.l.bf16 %v188
  %v253 = vunpack.c.l.bf16 %v189
  %v254 = vunpack.c.l.bf16 %v190
  %v255 = vunpack.c.l.bf16 %v191
  %v256 = vunpack.c.l.bf16 %v192
  %v257 = vunpack.c.l.bf16 %v193
  %v258 = vunpack.c.l.bf16 %v194
  %v259 = vunpack.c.l.bf16 %v195
  %v260 = vunpack.c.l.bf16 %v196
  %v261 = vunpack.c.l.bf16 %v197
  %v262 = vunpack.c.l.bf16 %v198
  %v263 = vunpack.c.l.bf16 %v199
  %v264 = vunpack.c.l.bf16 %v200
  %v265 = vunpack.c.l.bf16 %v201
  %v266 = vunpack.c.l.bf16 %v202
  %v267 = vunpack.c.l.bf16 %v203
  %v268 = vunpack.c.l.bf16 %v204
  %v269 = vunpack.c.l.bf16 %v205
  %v270 = vunpack.c.l.bf16 %v206
  %v271 = vunpack.c.l.bf16 %v207
  %v272 = vunpack.c.l.bf16 %v208
  %v273 = vunpack.c.l.bf16 %v209
  %v274 = vunpack.c.l.bf16 %v210
  %v275 = vadd.f32 %v83, %v211
  %v276 = vadd.f32 %v84, %v212
  %v277 = vadd.f32 %v85, %v213
  %v278 = vadd.f32 %v86, %v214
  %v279 = vadd.f32 %v87, %v215
  %v280 = vadd.f32 %v88, %v216
  %v281 = vadd.f32 %v89, %v217
  %v282 = vadd.f32 %v90, %v218
  %v283 = vadd.f32 %v91, %v219
  %v284 = vadd.f32 %v92, %v220
  %v285 = vadd.f32 %v93, %v221
  %v286 = vadd.f32 %v94, %v222
  %v287 = vadd.f32 %v95, %v223
  %v288 = vadd.f32 %v96, %v224
  %v289 = vadd.f32 %v97, %v225
  %v290 = vadd.f32 %v98, %v226
  %v291 = vadd.f32 %v99, %v227
  %v292 = vadd.f32 %v100, %v228
  %v293 = vadd.f32 %v101, %v229
  %v294 = vadd.f32 %v102, %v230
  %v295 = vadd.f32 %v103, %v231
  %v296 = vadd.f32 %v104, %v232
  %v297 = vadd.f32 %v105, %v233
  %v298 = vadd.f32 %v106, %v234
  %v299 = vadd.f32 %v107, %v235
  %v300 = vadd.f32 %v108, %v236
  %v301 = vadd.f32 %v109, %v237
  %v302 = vadd.f32 %v110, %v238
  %v303 = vadd.f32 %v111, %v239
  %v304 = vadd.f32 %v112, %v240
  %v305 = vadd.f32 %v113, %v241
  %v306 = vadd.f32 %v114, %v242
  %v307 = vadd.f32 %v115, %v243
  %v308 = vadd.f32 %v116, %v244
  %v309 = vadd.f32 %v117, %v245
  %v310 = vadd.f32 %v118, %v246
  %v311 = vadd.f32 %v119, %v247
  %v312 = vadd.f32 %v120, %v248
  %v313 = vadd.f32 %v121, %v249
  %v314 = vadd.f32 %v122, %v250
  %v315 = vadd.f32 %v123, %v251
  %v316 = vadd.f32 %v124, %v252
  %v317 = vadd.f32 %v125, %v253
  %v318 = vadd.f32 %v126, %v254
  %v319 = vadd.f32 %v127, %v255
  %v320 = vadd.f32 %v128, %v256
  %v321 = vadd.f32 %v129, %v257
  %v322 = vadd.f32 %v130, %v258
  %v323 = vadd.f32 %v131, %v259
  %v324 = vadd.f32 %v132, %v260
  %v325 = vadd.f32 %v133, %v261
  %v326 = vadd.f32 %v134, %v262
  %v327 = vadd.f32 %v135, %v263
  %v328 = vadd.f32 %v136, %v264
  %v329 = vadd.f32 %v137, %v265
  %v330 = vadd.f32 %v138, %v266
  %v331 = vadd.f32 %v139, %v267
  %v332 = vadd.f32 %v140, %v268
  %v333 = vadd.f32 %v141, %v269
  %v334 = vadd.f32 %v142, %v270
  %v335 = vadd.f32 %v143, %v271
  %v336 = vadd.f32 %v144, %v272
  %v337 = vadd.f32 %v145, %v273
  %v338 = vadd.f32 %v146, %v274
  %v339 = vmax.f32 %v275, 0.0
  %v340 = vmax.f32 %v276, 0.0
  %v341 = vmax.f32 %v277, 0.0
  %v342 = vmax.f32 %v278, 0.0
  %v343 = vmax.f32 %v279, 0.0
  %v344 = vmax.f32 %v280, 0.0
  %v345 = vmax.f32 %v281, 0.0
  %v346 = vmax.f32 %v282, 0.0
  %v347 = vmax.f32 %v283, 0.0
  %v348 = vmax.f32 %v284, 0.0
  %v349 = vmax.f32 %v285, 0.0
  %v350 = vmax.f32 %v286, 0.0
  %v351 = vmax.f32 %v287, 0.0
  %v352 = vmax.f32 %v288, 0.0
  %v353 = vmax.f32 %v289, 0.0
  %v354 = vmax.f32 %v290, 0.0
  %v355 = vmax.f32 %v291, 0.0
  %v356 = vmax.f32 %v292, 0.0
  %v357 = vmax.f32 %v293, 0.0
  %v358 = vmax.f32 %v294, 0.0
  %v359 = vmax.f32 %v295, 0.0
  %v360 = vmax.f32 %v296, 0.0
  %v361 = vmax.f32 %v297, 0.0
  %v362 = vmax.f32 %v298, 0.0
  %v363 = vmax.f32 %v299, 0.0
  %v364 = vmax.f32 %v300, 0.0
  %v365 = vmax.f32 %v301, 0.0
  %v366 = vmax.f32 %v302, 0.0
  %v367 = vmax.f32 %v303, 0.0
  %v368 = vmax.f32 %v304, 0.0
  %v369 = vmax.f32 %v305, 0.0
  %v370 = vmax.f32 %v306, 0.0
  %v371 = vmax.f32 %v307, 0.0
  %v372 = vmax.f32 %v308, 0.0
  %v373 = vmax.f32 %v309, 0.0
  %v374 = vmax.f32 %v310, 0.0
  %v375 = vmax.f32 %v311, 0.0
  %v376 = vmax.f32 %v312, 0.0
  %v377 = vmax.f32 %v313, 0.0
  %v378 = vmax.f32 %v314, 0.0
  %v379 = vmax.f32 %v315, 0.0
  %v380 = vmax.f32 %v316, 0.0
  %v381 = vmax.f32 %v317, 0.0
  %v382 = vmax.f32 %v318, 0.0
  %v383 = vmax.f32 %v319, 0.0
  %v384 = vmax.f32 %v320, 0.0
  %v385 = vmax.f32 %v321, 0.0
  %v386 = vmax.f32 %v322, 0.0
  %v387 = vmax.f32 %v323, 0.0
  %v388 = vmax.f32 %v324, 0.0
  %v389 = vmax.f32 %v325, 0.0
  %v390 = vmax.f32 %v326, 0.0
  %v391 = vmax.f32 %v327, 0.0
  %v392 = vmax.f32 %v328, 0.0
  %v393 = vmax.f32 %v329, 0.0
  %v394 = vmax.f32 %v330, 0.0
  %v395 = vmax.f32 %v331, 0.0
  %v396 = vmax.f32 %v332, 0.0
  %v397 = vmax.f32 %v333, 0.0
  %v398 = vmax.f32 %v334, 0.0
  %v399 = vmax.f32 %v335, 0.0
  %v400 = vmax.f32 %v336, 0.0
  %v401 = vmax.f32 %v337, 0.0
  %v402 = vmax.f32 %v338, 0.0
  %v403 = vld [vmem:[%s2] sm:$0x1]
  %v404 = vld [vmem:[#allocation2] sm:$0x1]
  %406 = vset.pattern.permute.xlu0 0
  %407 = vperm.xlu0 %406, %v404
  %v408 = vpop.permute.xlu0 %407
  %v410 = vlaneseq
  %v411 = vshrl.u32 %v410, 7
  %v412 = vsub.s32 0, %v411
  %v413 = vrot.slane %v408, %v412
  %414 = vmatprep.subr.mxu0 0.0
  %415 = vmatpush1.xpose.msra.mxu0 %v339
  %416 = vmatprep.subr.mxu0 0.0
  %417 = vmatpush1.xpose.msra.mxu0 %v340
  %418 = vmatprep.subr.mxu0 0.0
  %419 = vmatpush1.xpose.msra.mxu0 %v341
  %420 = vmatprep.subr.mxu0 0.0
  %421 = vmatpush1.xpose.msra.mxu0 %v342
  %422 = vmatprep.subr.mxu0 0.0
  %423 = vmatpush1.xpose.msra.mxu0 %v343
  %424 = vmatprep.subr.mxu0 0.0
  %425 = vmatpush1.xpose.msra.mxu0 %v344
  %426 = vmatprep.subr.mxu0 0.0
  %427 = vmatpush1.xpose.msra.mxu0 %v345
  %428 = vmatprep.subr.mxu0 0.0
  %429 = vmatpush1.xpose.msra.mxu0 %v346
  %430 = vmatprep.subr.mxu0 0.0
  %431 = vmatpush1.xpose.msra.mxu0 %v347
  %432 = vmatprep.subr.mxu0 0.0
  %433 = vmatpush1.xpose.msra.mxu0 %v348
  %434 = vmatprep.subr.mxu0 0.0
  %435 = vmatpush1.xpose.msra.mxu0 %v349
  %436 = vmatprep.subr.mxu0 0.0
  %437 = vmatpush1.xpose.msra.mxu0 %v350
  %438 = vmatprep.subr.mxu0 0.0
  %439 = vmatpush1.xpose.msra.mxu0 %v351
  %440 = vmatprep.subr.mxu0 0.0
  %441 = vmatpush1.xpose.msra.mxu0 %v352
  %442 = vmatprep.subr.mxu0 0.0
  %443 = vmatpush1.xpose.msra.mxu0 %v353
  %444 = vmatprep.subr.mxu0 0.0
  %445 = vmatpush1.xpose.msra.mxu0 %v354
  %446 = vmatprep.subr.mxu0 0.0
  %447 = vmatpush1.xpose.msra.mxu0 %v355
  %448 = vmatprep.subr.mxu0 0.0
  %449 = vmatpush1.xpose.msra.mxu0 %v356
  %450 = vmatprep.subr.mxu0 0.0
  %451 = vmatpush1.xpose.msra.mxu0 %v357
  %452 = vmatprep.subr.mxu0 0.0
  %453 = vmatpush1.xpose.msra.mxu0 %v358
  %454 = vmatprep.subr.mxu0 0.0
  %455 = vmatpush1.xpose.msra.mxu0 %v359
  %456 = vmatprep.subr.mxu0 0.0
  %457 = vmatpush1.xpose.msra.mxu0 %v360
  %458 = vmatprep.subr.mxu0 0.0
  %459 = vmatpush1.xpose.msra.mxu0 %v361
  %460 = vmatprep.subr.mxu0 0.0
  %461 = vmatpush1.xpose.msra.mxu0 %v362
  %462 = vmatprep.subr.mxu0 0.0
  %463 = vmatpush1.xpose.msra.mxu0 %v363
  %464 = vmatprep.subr.mxu0 0.0
  %465 = vmatpush1.xpose.msra.mxu0 %v364
  %466 = vmatprep.subr.mxu0 0.0
  %467 = vmatpush1.xpose.msra.mxu0 %v365
  %468 = vmatprep.subr.mxu0 0.0
  %469 = vmatpush1.xpose.msra.mxu0 %v366
  %470 = vmatprep.subr.mxu0 0.0
  %471 = vmatpush1.xpose.msra.mxu0 %v367
  %472 = vmatprep.subr.mxu0 0.0
  %473 = vmatpush1.xpose.msra.mxu0 %v368
  %474 = vmatprep.subr.mxu0 0.0
  %475 = vmatpush1.xpose.msra.mxu0 %v369
  %476 = vmatprep.subr.mxu0 0.0
  %477 = vmatpush1.xpose.msra.mxu0 %v370
  %478 = vmatprep.mubr.f32.mxu0 0.0
  %479 = vmatmul.mubr.f32.gmra.mrb[0].mxu0 %v403
  %v480 = vpop.f32.mrb[0].mxu0
  %v481 = vadd.f32 %v413, %v480
  %v482 = vpop.f32.mrb[0].mxu0
  %v483 = vadd.f32 %v413, %v482
  %484 = vdwg.mxu0
  %485 = vmatprep.subr.mxu0 0.0
  %486 = vmatpush1.xpose.msra.mxu0 %v371
  %487 = vmatprep.subr.mxu0 0.0
  %488 = vmatpush1.xpose.msra.mxu0 %v372
  %489 = vmatprep.subr.mxu0 0.0
  %490 = vmatpush1.xpose.msra.mxu0 %v373
  %491 = vmatprep.subr.mxu0 0.0
  %492 = vmatpush1.xpose.msra.mxu0 %v374
  %493 = vmatprep.subr.mxu0 0.0
  %494 = vmatpush1.xpose.msra.mxu0 %v375
  %495 = vmatprep.subr.mxu0 0.0
  %496 = vmatpush1.xpose.msra.mxu0 %v376
  %497 = vmatprep.subr.mxu0 0.0
  %498 = vmatpush1.xpose.msra.mxu0 %v377
  %499 = vmatprep.subr.mxu0 0.0
  %500 = vmatpush1.xpose.msra.mxu0 %v378
  %501 = vmatprep.subr.mxu0 0.0
  %502 = vmatpush1.xpose.msra.mxu0 %v379
  %503 = vmatprep.subr.mxu0 0.0
  %504 = vmatpush1.xpose.msra.mxu0 %v380
  %505 = vmatprep.subr.mxu0 0.0
  %506 = vmatpush1.xpose.msra.mxu0 %v381
  %507 = vmatprep.subr.mxu0 0.0
  %508 = vmatpush1.xpose.msra.mxu0 %v382
  %509 = vmatprep.subr.mxu0 0.0
  %510 = vmatpush1.xpose.msra.mxu0 %v383
  %511 = vmatprep.subr.mxu0 0.0
  %512 = vmatpush1.xpose.msra.mxu0 %v384
  %513 = vmatprep.subr.mxu0 0.0
  %514 = vmatpush1.xpose.msra.mxu0 %v385
  %515 = vmatprep.subr.mxu0 0.0
  %516 = vmatpush1.xpose.msra.mxu0 %v386
  %517 = vmatprep.subr.mxu0 0.0
  %518 = vmatpush1.xpose.msra.mxu0 %v387
  %519 = vmatprep.subr.mxu0 0.0
  %520 = vmatpush1.xpose.msra.mxu0 %v388
  %521 = vmatprep.subr.mxu0 0.0
  %522 = vmatpush1.xpose.msra.mxu0 %v389
  %523 = vmatprep.subr.mxu0 0.0
  %524 = vmatpush1.xpose.msra.mxu0 %v390
  %525 = vmatprep.subr.mxu0 0.0
  %526 = vmatpush1.xpose.msra.mxu0 %v391
  %527 = vmatprep.subr.mxu0 0.0
  %528 = vmatpush1.xpose.msra.mxu0 %v392
  %529 = vmatprep.subr.mxu0 0.0
  %530 = vmatpush1.xpose.msra.mxu0 %v393
  %531 = vmatprep.subr.mxu0 0.0
  %532 = vmatpush1.xpose.msra.mxu0 %v394
  %533 = vmatprep.subr.mxu0 0.0
  %534 = vmatpush1.xpose.msra.mxu0 %v395
  %535 = vmatprep.subr.mxu0 0.0
  %536 = vmatpush1.xpose.msra.mxu0 %v396
  %537 = vmatprep.subr.mxu0 0.0
  %538 = vmatpush1.xpose.msra.mxu0 %v397
  %539 = vmatprep.subr.mxu0 0.0
  %540 = vmatpush1.xpose.msra.mxu0 %v398
  %541 = vmatprep.subr.mxu0 0.0
  %542 = vmatpush1.xpose.msra.mxu0 %v399
  %543 = vmatprep.subr.mxu0 0.0
  %544 = vmatpush1.xpose.msra.mxu0 %v400
  %545 = vmatprep.subr.mxu0 0.0
  %546 = vmatpush1.xpose.msra.mxu0 %v401
  %547 = vmatprep.subr.mxu0 0.0
  %548 = vmatpush1.xpose.msra.mxu0 %v402
  %549 = vmatprep.mubr.f32.mxu0 0.0
  %550 = vmatmul.mubr.f32.gmra.mrb[0].mxu0 %v403
  %v551 = vpop.f32.mrb[0].mxu0
  %v552 = vadd.f32 %v413, %v551
  %v553 = vpop.f32.mrb[0].mxu0
  %v554 = vadd.f32 %v413, %v553
  %555 = vdwg.mxu0
  %v560 = vcombine.low %v481, %v483
  %v561 = vcombine.low %v552, %v554
  %v563 = vunpack.c.l.s4 1966171168
  %v564 = vunpack.c.0.s8 %v563
  %v565 = vlaneseq
  %v566 = vshrl.u32 %v565, 7
  %v567 = vsub.s32 %v564, %v566
  %v568 = vrot.slane %v560, %v567
  %v570 = vunpack.c.l.s4 1966171168
  %v571 = vunpack.c.0.s8 %v570
  %v572 = vlaneseq
  %v573 = vshrl.u32 %v572, 7
  %v574 = vsub.s32 %v571, %v573
  %v575 = vrot.slane %v561, %v574
  %v576 = vcombine.low %v568, %v575
  %v578 = vunpack.c.l.s4 1966171168
  %v579 = vunpack.c.0.s8 %v578
  %v580 = vlaneseq
  %v581 = vshrl.u32 %v580, 7
  %v582 = vsub.s32 %v579, %v581
  %v583 = vrot.slane %v576, %v582
  %v585 = vlaneseq
  %vm586 = vcmp.ge.s32.totalorder %v585, 0
  %vm587 = vcmp.lt.s32.totalorder %v585, 512
  %vm588 = vmand %vm586, %vm587
  %589 = vst.msk [vmem:[%s4] sm:$0xf] %vm588, %v583
  // Predicated region
  $region18: #{gnn_policy_forward.7} parent=0 // pred_check
    _
  $region19: #{gnn_policy_forward.7} parent=0 // pred_check_branch
    %591 = sbr.rel (0) target = $region21
  $region20: #{gnn_policy_forward.7} parent=0 // pred_region
    _
  $region21: #{gnn_policy_forward.7} parent=0 // pred_fallthru
    _
  // Predicated region
  $region22: #{gnn_policy_forward.7} parent=0 // pred_check
    _
  $region23: #{gnn_policy_forward.7} parent=0 // pred_check_branch
    %593 = sbr.rel (0) target = $region25
  $region24: #{gnn_policy_forward.7} parent=0 // pred_region
    _
  $region25: #{gnn_policy_forward.7} parent=0 // pred_fallthru
    _

</llo_original>
